<compile_context>
chip_gen: v5e
topology: v5e:2x2
jax: 0.10.0
libtpu: 0.0.40
codegen_flags: <defaults>
</compile_context>

<pallas_src>
import functools
import math

import jax
import jax.numpy as jnp
from jax import lax
from jax.experimental import pallas as pl
from jax.experimental.pallas import tpu as pltpu

# Hyperparameters matching the PyTorch module defaults.
INPUT_DIM = 4
D_MODEL = 64
NHEAD = 4
NUM_LAYERS = 4
DIM_FF = 2048          # nn.TransformerEncoderLayer default dim_feedforward
LN_EPS = 1e-5          # nn.LayerNorm default eps
HEAD_DIM = D_MODEL // NHEAD
NUM_CLASSES = 3


def _layernorm(v, g, b):
    mu = jnp.mean(v, axis=-1, keepdims=True)
    var = jnp.mean((v - mu) ** 2, axis=-1, keepdims=True)
    return (v - mu) * lax.rsqrt(var + LN_EPS) * g + b


def ntt_kernel(x_ref, pos_ref, emb_w_ref, emb_b_ref,
               q_w_ref, q_b_ref, k_w_ref, k_b_ref, v_w_ref, v_b_ref,
               ow_ref, ob_ref, ln1_g_ref, ln1_b_ref,
               ff1_w_ref, ff1_b_ref, ff2_w_ref, ff2_b_ref,
               ln2_g_ref, ln2_b_ref,
               c1_w_ref, c1_b_ref, c2_w_ref, c2_b_ref, c3_w_ref, c3_b_ref,
               out_ref, h_ref, ctx_ref, *, batch, seq):
    l = pl.program_id(0)
    scale = 1.0 / math.sqrt(HEAD_DIM)

    # ---- first grid step: embedding + positional encoding into resident h ----
    @pl.when(l == 0)
    def _():
        h0 = jnp.dot(x_ref[...], emb_w_ref[...],
                     preferred_element_type=jnp.float32)
        h_ref[...] = h0 + emb_b_ref[...] + pos_ref[...]

    h = h_ref[...]                                       # (B*S, D_MODEL) f32

    # ---- multi-head self attention (post-norm encoder layer `l`) ----
    q = jnp.dot(h, q_w_ref[...], preferred_element_type=jnp.float32) + q_b_ref[...]
    k = jnp.dot(h, k_w_ref[...], preferred_element_type=jnp.float32) + k_b_ref[...]
    v = jnp.dot(h, v_w_ref[...], preferred_element_type=jnp.float32) + v_b_ref[...]

    for b in range(batch):                               # tiny static loops
        rs = slice(b * seq, (b + 1) * seq)
        for hh in range(NHEAD):
            cs = slice(hh * HEAD_DIM, (hh + 1) * HEAD_DIM)
            qh, kh, vh = q[rs, cs], k[rs, cs], v[rs, cs]
            s = lax.dot_general(qh, kh, (((1,), (1,)), ((), ())),
                                preferred_element_type=jnp.float32) * scale
            s = s - jnp.max(s, axis=-1, keepdims=True)
            p = jnp.exp(s)
            p = p * pl.reciprocal(jnp.sum(p, axis=-1, keepdims=True), approx=True)
            ctx_ref[rs, cs] = jnp.dot(p, vh, preferred_element_type=jnp.float32)

    attn = jnp.dot(ctx_ref[...], ow_ref[...],
                   preferred_element_type=jnp.float32) + ob_ref[...]
    h = _layernorm(h + attn, ln1_g_ref[...], ln1_b_ref[...])

    # ---- feed-forward (bf16 weights DMA'd, upcast, f32 accumulate) ----
    ff = jnp.dot(h, ff1_w_ref[...].astype(jnp.float32),
                 preferred_element_type=jnp.float32) + ff1_b_ref[...]
    ff = jnp.maximum(ff, 0.0)
    ff = jnp.dot(ff, ff2_w_ref[...].astype(jnp.float32),
                 preferred_element_type=jnp.float32) + ff2_b_ref[...]
    h = _layernorm(h + ff, ln2_g_ref[...], ln2_b_ref[...])
    h_ref[...] = h

    # ---- last grid step: classifier MLP on the last token of every batch ----
    @pl.when(l == NUM_LAYERS - 1)
    def _():
        last = jnp.concatenate(
            [h[b * seq + seq - 1: b * seq + seq, :] for b in range(batch)],
            axis=0)                                      # (B, D_MODEL)
        c = jnp.maximum(
            jnp.dot(last, c1_w_ref[...], preferred_element_type=jnp.float32)
            + c1_b_ref[...], 0.0)
        c = jnp.maximum(
            jnp.dot(c, c2_w_ref[...], preferred_element_type=jnp.float32)
            + c2_b_ref[...], 0.0)
        out_ref[...] = (jnp.dot(c, c3_w_ref[...],
                                preferred_element_type=jnp.float32)
                        + c3_b_ref[...])


def ntt_forward(x, params):
    B, S, _ = x.shape
    BS = B * S

    x2 = x.reshape(BS, INPUT_DIM).astype(jnp.float32)
    pos = jnp.tile(params["pos"][0, :S, :], (B, 1))      # (B*S, D_MODEL)

    # split fused qkv into lane-aligned q / k / v weights & biases
    qkv_w, qkv_b = params["qkv_w"], params["qkv_b"]
    q_w = qkv_w[:, :, 0:D_MODEL]
    k_w = qkv_w[:, :, D_MODEL:2 * D_MODEL]
    v_w = qkv_w[:, :, 2 * D_MODEL:3 * D_MODEL]
    q_b = qkv_b[:, :, 0:D_MODEL]
    k_b = qkv_b[:, :, D_MODEL:2 * D_MODEL]
    v_b = qkv_b[:, :, 2 * D_MODEL:3 * D_MODEL]

    # big FF weights travel as bf16 (half the HBM traffic), accumulate in f32
    ff1_w = params["ff1_w"].astype(jnp.bfloat16)
    ff2_w = params["ff2_w"].astype(jnp.bfloat16)

    inputs = (x2, pos, params["emb_w"], params["emb_b"],
              q_w, q_b, k_w, k_b, v_w, v_b,
              params["ow"], params["ob"], params["ln1_g"], params["ln1_b"],
              ff1_w, params["ff1_b"], ff2_w, params["ff2_b"],
              params["ln2_g"], params["ln2_b"],
              params["c1_w"], params["c1_b"], params["c2_w"], params["c2_b"],
              params["c3_w"], params["c3_b"])

    def const_spec(a):
        nd = a.ndim
        return pl.BlockSpec(a.shape, lambda l, _nd=nd: (0,) * _nd)

    def layer_spec(a):
        # leading NUM_LAYERS axis stepped by the grid and squeezed away
        n = a.ndim - 1
        return pl.BlockSpec((None,) + tuple(a.shape[1:]),
                            lambda l, _n=n: (l,) + (0,) * _n)

    in_specs = [
        const_spec(x2), const_spec(pos),
        const_spec(params["emb_w"]), const_spec(params["emb_b"]),
        layer_spec(q_w), layer_spec(q_b),
        layer_spec(k_w), layer_spec(k_b),
        layer_spec(v_w), layer_spec(v_b),
        layer_spec(params["ow"]), layer_spec(params["ob"]),
        layer_spec(params["ln1_g"]), layer_spec(params["ln1_b"]),
        layer_spec(ff1_w), layer_spec(params["ff1_b"]),
        layer_spec(ff2_w), layer_spec(params["ff2_b"]),
        layer_spec(params["ln2_g"]), layer_spec(params["ln2_b"]),
        const_spec(params["c1_w"]), const_spec(params["c1_b"]),
        const_spec(params["c2_w"]), const_spec(params["c2_b"]),
        const_spec(params["c3_w"]), const_spec(params["c3_b"]),
    ]

    kernel = functools.partial(ntt_kernel, batch=B, seq=S)
    return pl.pallas_call(
        kernel,
        out_shape=jax.ShapeDtypeStruct((B, NUM_CLASSES), jnp.float32),
        grid_spec=pltpu.PrefetchScalarGridSpec(
            num_scalar_prefetch=0,
            grid=(NUM_LAYERS,),
            in_specs=in_specs,
            out_specs=pl.BlockSpec((B, NUM_CLASSES), lambda l: (0, 0)),
            scratch_shapes=[pltpu.VMEM((BS, D_MODEL), jnp.float32),   # h
                            pltpu.VMEM((BS, D_MODEL), jnp.float32)],  # ctx
        ),
        compiler_params=pltpu.CompilerParams(
            dimension_semantics=("arbitrary",)),
    )(*inputs)


def ntt_reference(x, params):
    """Pure-JAX reference mirroring the PyTorch forward (inference mode).

    FF weights are round-tripped through bf16 to mirror the kernel's storage
    dtype; all math is f32.
    """
    B, S, _ = x.shape
    h = x @ params["emb_w"] + params["emb_b"]
    h = h + params["pos"][:, :S, :]
    scale = 1.0 / math.sqrt(HEAD_DIM)
    for l in range(NUM_LAYERS):
        qkv = h @ params["qkv_w"][l] + params["qkv_b"][l]
        q, k, v = (qkv[..., :D_MODEL], qkv[..., D_MODEL:2 * D_MODEL],
                   qkv[..., 2 * D_MODEL:])
        q = q.reshape(B, S, NHEAD, HEAD_DIM)
        k = k.reshape(B, S, NHEAD, HEAD_DIM)
        v = v.reshape(B, S, NHEAD, HEAD_DIM)
        s = jnp.einsum("bqhd,bkhd->bhqk", q, k) * scale
        p = jax.nn.softmax(s, axis=-1)
        ctx = jnp.einsum("bhqk,bkhd->bqhd", p, v).reshape(B, S, D_MODEL)
        attn_out = ctx @ params["ow"][l] + params["ob"][l]
        h = _layernorm(h + attn_out, params["ln1_g"][l], params["ln1_b"][l])
        ff1_w = params["ff1_w"][l].astype(jnp.bfloat16).astype(jnp.float32)
        ff2_w = params["ff2_w"][l].astype(jnp.bfloat16).astype(jnp.float32)
        ff = jnp.maximum(h @ ff1_w + params["ff1_b"][l], 0.0)
        ff = ff @ ff2_w + params["ff2_b"][l]
        h = _layernorm(h + ff, params["ln2_g"][l], params["ln2_b"][l])
    last = h[:, -1, :]
    c = jnp.maximum(last @ params["c1_w"] + params["c1_b"], 0.0)
    c = jnp.maximum(c @ params["c2_w"] + params["c2_b"], 0.0)
    return c @ params["c3_w"] + params["c3_b"]


def init_params(key):
    ks = jax.random.split(key, 20)

    def nrm(k, shape, s=0.05):
        return (s * jax.random.normal(k, shape)).astype(jnp.float32)

    p = {}
    p["emb_w"] = nrm(ks[0], (INPUT_DIM, D_MODEL))
    p["emb_b"] = nrm(ks[1], (1, D_MODEL))
    p["pos"] = nrm(ks[2], (1, 100, D_MODEL))             # nn.Parameter(1, 100, d_model)
    p["qkv_w"] = nrm(ks[3], (NUM_LAYERS, D_MODEL, 3 * D_MODEL))
    p["qkv_b"] = nrm(ks[4], (NUM_LAYERS, 1, 3 * D_MODEL))
    p["ow"] = nrm(ks[5], (NUM_LAYERS, D_MODEL, D_MODEL))
    p["ob"] = nrm(ks[6], (NUM_LAYERS, 1, D_MODEL))
    p["ln1_g"] = jnp.ones((NUM_LAYERS, 1, D_MODEL), jnp.float32)
    p["ln1_b"] = jnp.zeros((NUM_LAYERS, 1, D_MODEL), jnp.float32)
    p["ff1_w"] = nrm(ks[7], (NUM_LAYERS, D_MODEL, DIM_FF))
    p["ff1_b"] = nrm(ks[8], (NUM_LAYERS, 1, DIM_FF))
    p["ff2_w"] = nrm(ks[9], (NUM_LAYERS, DIM_FF, D_MODEL))
    p["ff2_b"] = nrm(ks[10], (NUM_LAYERS, 1, D_MODEL))
    p["ln2_g"] = jnp.ones((NUM_LAYERS, 1, D_MODEL), jnp.float32)
    p["ln2_b"] = jnp.zeros((NUM_LAYERS, 1, D_MODEL), jnp.float32)
    p["c1_w"] = nrm(ks[11], (D_MODEL, 128))
    p["c1_b"] = nrm(ks[12], (1, 128))
    p["c2_w"] = nrm(ks[13], (128, 64))
    p["c2_b"] = nrm(ks[14], (1, 64))
    p["c3_w"] = nrm(ks[15], (64, NUM_CLASSES))
    p["c3_b"] = nrm(ks[16], (1, NUM_CLASSES))
    return p


if __name__ == "__main__":
    key = jax.random.PRNGKey(0)
    pkey, xkey = jax.random.split(key)
    params = init_params(pkey)

    B, S = 2, 8                                          # batch=2, seq=8 (<=100)
    x = jax.random.normal(xkey, (B, S, INPUT_DIM), dtype=jnp.float32)

    out = jax.block_until_ready(ntt_forward(x, params))
    ref = ntt_reference(x, params)

    assert out.shape == (B, NUM_CLASSES), out.shape
    assert jnp.allclose(out, ref, rtol=2e-3, atol=2e-3), (out, ref)
    print("KERNEL_OK")
</pallas_src>

<mosaic_0001>
module attributes {stable_mosaic.version = 11 : i64} {
  func.func @ntt_kernel(%arg0: i32, %arg1: memref<16x4xf32, #tpu.memory_space<vmem>>, %arg2: memref<16x64xf32, #tpu.memory_space<vmem>>, %arg3: memref<4x64xf32, #tpu.memory_space<vmem>>, %arg4: memref<1x64xf32, #tpu.memory_space<vmem>>, %arg5: memref<1x64x64xf32, #tpu.memory_space<vmem>>, %arg6: memref<1x1x64xf32, #tpu.memory_space<vmem>>, %arg7: memref<1x64x64xf32, #tpu.memory_space<vmem>>, %arg8: memref<1x1x64xf32, #tpu.memory_space<vmem>>, %arg9: memref<1x64x64xf32, #tpu.memory_space<vmem>>, %arg10: memref<1x1x64xf32, #tpu.memory_space<vmem>>, %arg11: memref<1x64x64xf32, #tpu.memory_space<vmem>>, %arg12: memref<1x1x64xf32, #tpu.memory_space<vmem>>, %arg13: memref<1x1x64xf32, #tpu.memory_space<vmem>>, %arg14: memref<1x1x64xf32, #tpu.memory_space<vmem>>, %arg15: memref<1x64x2048xbf16, #tpu.memory_space<vmem>>, %arg16: memref<1x1x2048xf32, #tpu.memory_space<vmem>>, %arg17: memref<1x2048x64xbf16, #tpu.memory_space<vmem>>, %arg18: memref<1x1x64xf32, #tpu.memory_space<vmem>>, %arg19: memref<1x1x64xf32, #tpu.memory_space<vmem>>, %arg20: memref<1x1x64xf32, #tpu.memory_space<vmem>>, %arg21: memref<64x128xf32, #tpu.memory_space<vmem>>, %arg22: memref<1x128xf32, #tpu.memory_space<vmem>>, %arg23: memref<128x64xf32, #tpu.memory_space<vmem>>, %arg24: memref<1x64xf32, #tpu.memory_space<vmem>>, %arg25: memref<64x3xf32, #tpu.memory_space<vmem>>, %arg26: memref<1x3xf32, #tpu.memory_space<vmem>>, %arg27: memref<2x3xf32, #tpu.memory_space<vmem>>, %arg28: memref<16x64xf32, #tpu.memory_space<vmem>>, %arg29: memref<16x64xf32, #tpu.memory_space<vmem>>) attributes {dimension_semantics = [#tpu.dimension_semantics<arbitrary>], iteration_bounds = array<i64: 4>, scalar_prefetch = 0 : i64, scratch_operands = 2 : i64, tpu.core_type = #tpu.core_type<tc>, window_params = [{pipeline_mode = #tpu.pipeline_mode<synchronous>, transform_indices = @transform_0, window_bounds = array<i64: 16, 4>}, {pipeline_mode = #tpu.pipeline_mode<synchronous>, transform_indices = @transform_1, window_bounds = array<i64: 16, 64>}, {pipeline_mode = #tpu.pipeline_mode<synchronous>, transform_indices = @transform_2, window_bounds = array<i64: 4, 64>}, {pipeline_mode = #tpu.pipeline_mode<synchronous>, transform_indices = @transform_3, window_bounds = array<i64: 1, 64>}, {transform_indices = @transform_4, window_bounds = array<i64: 1, 64, 64>}, {transform_indices = @transform_5, window_bounds = array<i64: 1, 1, 64>}, {transform_indices = @transform_6, window_bounds = array<i64: 1, 64, 64>}, {transform_indices = @transform_7, window_bounds = array<i64: 1, 1, 64>}, {transform_indices = @transform_8, window_bounds = array<i64: 1, 64, 64>}, {transform_indices = @transform_9, window_bounds = array<i64: 1, 1, 64>}, {transform_indices = @transform_10, window_bounds = array<i64: 1, 64, 64>}, {transform_indices = @transform_11, window_bounds = array<i64: 1, 1, 64>}, {transform_indices = @transform_12, window_bounds = array<i64: 1, 1, 64>}, {transform_indices = @transform_13, window_bounds = array<i64: 1, 1, 64>}, {transform_indices = @transform_14, window_bounds = array<i64: 1, 64, 2048>}, {transform_indices = @transform_15, window_bounds = array<i64: 1, 1, 2048>}, {transform_indices = @transform_16, window_bounds = array<i64: 1, 2048, 64>}, {transform_indices = @transform_17, window_bounds = array<i64: 1, 1, 64>}, {transform_indices = @transform_18, window_bounds = array<i64: 1, 1, 64>}, {transform_indices = @transform_19, window_bounds = array<i64: 1, 1, 64>}, {pipeline_mode = #tpu.pipeline_mode<synchronous>, transform_indices = @transform_20, window_bounds = array<i64: 64, 128>}, {pipeline_mode = #tpu.pipeline_mode<synchronous>, transform_indices = @transform_21, window_bounds = array<i64: 1, 128>}, {pipeline_mode = #tpu.pipeline_mode<synchronous>, transform_indices = @transform_22, window_bounds = array<i64: 128, 64>}, {pipeline_mode = #tpu.pipeline_mode<synchronous>, transform_indices = @transform_23, window_bounds = array<i64: 1, 64>}, {pipeline_mode = #tpu.pipeline_mode<synchronous>, transform_indices = @transform_24, window_bounds = array<i64: 64, 3>}, {pipeline_mode = #tpu.pipeline_mode<synchronous>, transform_indices = @transform_25, window_bounds = array<i64: 1, 3>}, {pipeline_mode = #tpu.pipeline_mode<synchronous>, transform_indices = @transform_26, window_bounds = array<i64: 2, 3>}]} {
    %c0_i32 = arith.constant 0 : i32
    %0 = arith.cmpi eq, %arg0, %c0_i32 : i32
    %1 = arith.extui %0 : i1 to i32
    %c0_i32_0 = arith.constant 0 : i32
    %2 = arith.cmpi ne, %1, %c0_i32_0 : i32
    scf.if %2 {
      %c0_123 = arith.constant 0 : index
      %c0_124 = arith.constant 0 : index
      %253 = vector.load %arg1[%c0_123, %c0_124] : memref<16x4xf32, #tpu.memory_space<vmem>>, vector<16x4xf32>
      %c0_125 = arith.constant 0 : index
      %c0_126 = arith.constant 0 : index
      %254 = vector.load %arg3[%c0_125, %c0_126] : memref<4x64xf32, #tpu.memory_space<vmem>>, vector<4x64xf32>
      %cst_127 = arith.constant dense<0.000000e+00> : vector<16x64xf32>
      %255 = tpu.matmul %253, %254, %cst_127 {dimension_numbers = #tpu.dot_dimension_numbers<[1], [0], [0], [1], [0, 0, 1, 1], [], []>} : vector<16x4xf32>, vector<4x64xf32>, vector<16x64xf32> -> vector<16x64xf32>
      %c0_128 = arith.constant 0 : index
      %c0_129 = arith.constant 0 : index
      %256 = vector.load %arg4[%c0_128, %c0_129] : memref<1x64xf32, #tpu.memory_space<vmem>>, vector<1x64xf32>
      %257 = vector.broadcast %256 : vector<1x64xf32> to vector<16x64xf32>
      %258 = arith.addf %255, %257 : vector<16x64xf32>
      %c0_130 = arith.constant 0 : index
      %c0_131 = arith.constant 0 : index
      %259 = vector.load %arg2[%c0_130, %c0_131] : memref<16x64xf32, #tpu.memory_space<vmem>>, vector<16x64xf32>
      %260 = arith.addf %258, %259 : vector<16x64xf32>
      %c0_132 = arith.constant 0 : index
      %c0_133 = arith.constant 0 : index
      %261 = vector.load %arg28[%c0_132, %c0_133] : memref<16x64xf32, #tpu.memory_space<vmem>>, vector<16x64xf32>
      tpu.vector_store %arg28[%c0_132, %c0_133], %260 {strides = array<i32>} : memref<16x64xf32, #tpu.memory_space<vmem>>, vector<16x64xf32>,
    } else {
    }
    %c0 = arith.constant 0 : index
    %c0_1 = arith.constant 0 : index
    %3 = vector.load %arg28[%c0, %c0_1] : memref<16x64xf32, #tpu.memory_space<vmem>>, vector<16x64xf32>
    %c0_2 = arith.constant 0 : index
    %c0_3 = arith.constant 0 : index
    %c0_4 = arith.constant 0 : index
    %4 = vector.load %arg5[%c0_2, %c0_3, %c0_4] : memref<1x64x64xf32, #tpu.memory_space<vmem>>, vector<1x64x64xf32>
    %5 = vector.shape_cast %4 : vector<1x64x64xf32> to vector<64x64xf32>
    %cst = arith.constant dense<0.000000e+00> : vector<16x64xf32>
    %6 = tpu.matmul %3, %5, %cst {dimension_numbers = #tpu.dot_dimension_numbers<[1], [0], [0], [1], [0, 0, 1, 1], [], []>} : vector<16x64xf32>, vector<64x64xf32>, vector<16x64xf32> -> vector<16x64xf32>
    %c0_5 = arith.constant 0 : index
    %c0_6 = arith.constant 0 : index
    %c0_7 = arith.constant 0 : index
    %7 = vector.load %arg6[%c0_5, %c0_6, %c0_7] : memref<1x1x64xf32, #tpu.memory_space<vmem>>, vector<1x1x64xf32>
    %8 = vector.shape_cast %7 : vector<1x1x64xf32> to vector<1x64xf32>
    %9 = vector.broadcast %8 : vector<1x64xf32> to vector<16x64xf32>
    %10 = arith.addf %6, %9 : vector<16x64xf32>
    %c0_8 = arith.constant 0 : index
    %c0_9 = arith.constant 0 : index
    %c0_10 = arith.constant 0 : index
    %11 = vector.load %arg7[%c0_8, %c0_9, %c0_10] : memref<1x64x64xf32, #tpu.memory_space<vmem>>, vector<1x64x64xf32>
    %12 = vector.shape_cast %11 : vector<1x64x64xf32> to vector<64x64xf32>
    %cst_11 = arith.constant dense<0.000000e+00> : vector<16x64xf32>
    %13 = tpu.matmul %3, %12, %cst_11 {dimension_numbers = #tpu.dot_dimension_numbers<[1], [0], [0], [1], [0, 0, 1, 1], [], []>} : vector<16x64xf32>, vector<64x64xf32>, vector<16x64xf32> -> vector<16x64xf32>
    %c0_12 = arith.constant 0 : index
    %c0_13 = arith.constant 0 : index
    %c0_14 = arith.constant 0 : index
    %14 = vector.load %arg8[%c0_12, %c0_13, %c0_14] : memref<1x1x64xf32, #tpu.memory_space<vmem>>, vector<1x1x64xf32>
    %15 = vector.shape_cast %14 : vector<1x1x64xf32> to vector<1x64xf32>
    %16 = vector.broadcast %15 : vector<1x64xf32> to vector<16x64xf32>
    %17 = arith.addf %13, %16 : vector<16x64xf32>
    %c0_15 = arith.constant 0 : index
    %c0_16 = arith.constant 0 : index
    %c0_17 = arith.constant 0 : index
    %18 = vector.load %arg9[%c0_15, %c0_16, %c0_17] : memref<1x64x64xf32, #tpu.memory_space<vmem>>, vector<1x64x64xf32>
    %19 = vector.shape_cast %18 : vector<1x64x64xf32> to vector<64x64xf32>
    %cst_18 = arith.constant dense<0.000000e+00> : vector<16x64xf32>
    %20 = tpu.matmul %3, %19, %cst_18 {dimension_numbers = #tpu.dot_dimension_numbers<[1], [0], [0], [1], [0, 0, 1, 1], [], []>} : vector<16x64xf32>, vector<64x64xf32>, vector<16x64xf32> -> vector<16x64xf32>
    %c0_19 = arith.constant 0 : index
    %c0_20 = arith.constant 0 : index
    %c0_21 = arith.constant 0 : index
    %21 = vector.load %arg10[%c0_19, %c0_20, %c0_21] : memref<1x1x64xf32, #tpu.memory_space<vmem>>, vector<1x1x64xf32>
    %22 = vector.shape_cast %21 : vector<1x1x64xf32> to vector<1x64xf32>
    %23 = vector.broadcast %22 : vector<1x64xf32> to vector<16x64xf32>
    %24 = arith.addf %20, %23 : vector<16x64xf32>
    %25 = vector.extract_strided_slice %10 {offsets = [0, 0], sizes = [8, 16], strides = [1, 1]} : vector<16x64xf32> to vector<8x16xf32>
    %26 = vector.extract_strided_slice %17 {offsets = [0, 0], sizes = [8, 16], strides = [1, 1]} : vector<16x64xf32> to vector<8x16xf32>
    %27 = vector.extract_strided_slice %24 {offsets = [0, 0], sizes = [8, 16], strides = [1, 1]} : vector<16x64xf32> to vector<8x16xf32>
    %cst_22 = arith.constant dense<0.000000e+00> : vector<8x8xf32>
    %28 = tpu.matmul %25, %26, %cst_22 {dimension_numbers = #tpu.dot_dimension_numbers<[1], [1], [0], [0], [0, 0, 1, 0], [], []>} : vector<8x16xf32>, vector<8x16xf32>, vector<8x8xf32> -> vector<8x8xf32>
    %cst_23 = arith.constant 2.500000e-01 : f32
    %29 = vector.broadcast %cst_23 : f32 to vector<8x8xf32>
    %30 = arith.mulf %28, %29 : vector<8x8xf32>
    %cst_24 = arith.constant dense<0xFF800000> : vector<8xf32>
    %31 = vector.multi_reduction <maximumf>, %30, %cst_24 [1] : vector<8x8xf32> to vector<8xf32>
    %32 = vector.shape_cast %31 : vector<8xf32> to vector<8x1xf32>
    %33 = vector.broadcast %32 : vector<8x1xf32> to vector<8x8xf32>
    %34 = arith.subf %30, %33 : vector<8x8xf32>
    %35 = math.exp %34 : vector<8x8xf32>
    %cst_25 = arith.constant dense<0.000000e+00> : vector<8xf32>
    %36 = vector.multi_reduction <add>, %35, %cst_25 [1] : vector<8x8xf32> to vector<8xf32>
    %37 = vector.shape_cast %36 : vector<8xf32> to vector<8x1xf32>
    %38 = tpu.reciprocal %37 {approx = true} : vector<8x1xf32> -> vector<8x1xf32>
    %39 = vector.broadcast %38 : vector<8x1xf32> to vector<8x8xf32>
    %40 = arith.mulf %35, %39 : vector<8x8xf32>
    %cst_26 = arith.constant dense<0.000000e+00> : vector<8x16xf32>
    %41 = tpu.matmul %40, %27, %cst_26 {dimension_numbers = #tpu.dot_dimension_numbers<[1], [0], [0], [1], [0, 0, 1, 1], [], []>} : vector<8x8xf32>, vector<8x16xf32>, vector<8x16xf32> -> vector<8x16xf32>
    %c0_27 = arith.constant 0 : index
    %c0_28 = arith.constant 0 : index
    %42 = vector.load %arg29[%c0_27, %c0_28] : memref<16x64xf32, #tpu.memory_space<vmem>>, vector<8x16xf32>
    tpu.vector_store %arg29[%c0_27, %c0_28], %41 {strides = array<i32>} : memref<16x64xf32, #tpu.memory_space<vmem>>, vector<8x16xf32>,
    %43 = vector.extract_strided_slice %10 {offsets = [0, 16], sizes = [8, 16], strides = [1, 1]} : vector<16x64xf32> to vector<8x16xf32>
    %44 = vector.extract_strided_slice %17 {offsets = [0, 16], sizes = [8, 16], strides = [1, 1]} : vector<16x64xf32> to vector<8x16xf32>
    %45 = vector.extract_strided_slice %24 {offsets = [0, 16], sizes = [8, 16], strides = [1, 1]} : vector<16x64xf32> to vector<8x16xf32>
    %cst_29 = arith.constant dense<0.000000e+00> : vector<8x8xf32>
    %46 = tpu.matmul %43, %44, %cst_29 {dimension_numbers = #tpu.dot_dimension_numbers<[1], [1], [0], [0], [0, 0, 1, 0], [], []>} : vector<8x16xf32>, vector<8x16xf32>, vector<8x8xf32> -> vector<8x8xf32>
    %cst_30 = arith.constant 2.500000e-01 : f32
    %47 = vector.broadcast %cst_30 : f32 to vector<8x8xf32>
    %48 = arith.mulf %46, %47 : vector<8x8xf32>
    %cst_31 = arith.constant dense<0xFF800000> : vector<8xf32>
    %49 = vector.multi_reduction <maximumf>, %48, %cst_31 [1] : vector<8x8xf32> to vector<8xf32>
    %50 = vector.shape_cast %49 : vector<8xf32> to vector<8x1xf32>
    %51 = vector.broadcast %50 : vector<8x1xf32> to vector<8x8xf32>
    %52 = arith.subf %48, %51 : vector<8x8xf32>
    %53 = math.exp %52 : vector<8x8xf32>
    %cst_32 = arith.constant dense<0.000000e+00> : vector<8xf32>
    %54 = vector.multi_reduction <add>, %53, %cst_32 [1] : vector<8x8xf32> to vector<8xf32>
    %55 = vector.shape_cast %54 : vector<8xf32> to vector<8x1xf32>
    %56 = tpu.reciprocal %55 {approx = true} : vector<8x1xf32> -> vector<8x1xf32>
    %57 = vector.broadcast %56 : vector<8x1xf32> to vector<8x8xf32>
    %58 = arith.mulf %53, %57 : vector<8x8xf32>
    %cst_33 = arith.constant dense<0.000000e+00> : vector<8x16xf32>
    %59 = tpu.matmul %58, %45, %cst_33 {dimension_numbers = #tpu.dot_dimension_numbers<[1], [0], [0], [1], [0, 0, 1, 1], [], []>} : vector<8x8xf32>, vector<8x16xf32>, vector<8x16xf32> -> vector<8x16xf32>
    %c0_34 = arith.constant 0 : index
    %c16 = arith.constant 16 : index
    %60 = vector.load %arg29[%c0_34, %c16] : memref<16x64xf32, #tpu.memory_space<vmem>>, vector<8x16xf32>
    tpu.vector_store %arg29[%c0_34, %c16], %59 {strides = array<i32>} : memref<16x64xf32, #tpu.memory_space<vmem>>, vector<8x16xf32>,
    %61 = vector.extract_strided_slice %10 {offsets = [0, 32], sizes = [8, 16], strides = [1, 1]} : vector<16x64xf32> to vector<8x16xf32>
    %62 = vector.extract_strided_slice %17 {offsets = [0, 32], sizes = [8, 16], strides = [1, 1]} : vector<16x64xf32> to vector<8x16xf32>
    %63 = vector.extract_strided_slice %24 {offsets = [0, 32], sizes = [8, 16], strides = [1, 1]} : vector<16x64xf32> to vector<8x16xf32>
    %cst_35 = arith.constant dense<0.000000e+00> : vector<8x8xf32>
    %64 = tpu.matmul %61, %62, %cst_35 {dimension_numbers = #tpu.dot_dimension_numbers<[1], [1], [0], [0], [0, 0, 1, 0], [], []>} : vector<8x16xf32>, vector<8x16xf32>, vector<8x8xf32> -> vector<8x8xf32>
    %cst_36 = arith.constant 2.500000e-01 : f32
    %65 = vector.broadcast %cst_36 : f32 to vector<8x8xf32>
    %66 = arith.mulf %64, %65 : vector<8x8xf32>
    %cst_37 = arith.constant dense<0xFF800000> : vector<8xf32>
    %67 = vector.multi_reduction <maximumf>, %66, %cst_37 [1] : vector<8x8xf32> to vector<8xf32>
    %68 = vector.shape_cast %67 : vector<8xf32> to vector<8x1xf32>
    %69 = vector.broadcast %68 : vector<8x1xf32> to vector<8x8xf32>
    %70 = arith.subf %66, %69 : vector<8x8xf32>
    %71 = math.exp %70 : vector<8x8xf32>
    %cst_38 = arith.constant dense<0.000000e+00> : vector<8xf32>
    %72 = vector.multi_reduction <add>, %71, %cst_38 [1] : vector<8x8xf32> to vector<8xf32>
    %73 = vector.shape_cast %72 : vector<8xf32> to vector<8x1xf32>
    %74 = tpu.reciprocal %73 {approx = true} : vector<8x1xf32> -> vector<8x1xf32>
    %75 = vector.broadcast %74 : vector<8x1xf32> to vector<8x8xf32>
    %76 = arith.mulf %71, %75 : vector<8x8xf32>
    %cst_39 = arith.constant dense<0.000000e+00> : vector<8x16xf32>
    %77 = tpu.matmul %76, %63, %cst_39 {dimension_numbers = #tpu.dot_dimension_numbers<[1], [0], [0], [1], [0, 0, 1, 1], [], []>} : vector<8x8xf32>, vector<8x16xf32>, vector<8x16xf32> -> vector<8x16xf32>
    %c0_40 = arith.constant 0 : index
    %c32 = arith.constant 32 : index
    %78 = vector.load %arg29[%c0_40, %c32] : memref<16x64xf32, #tpu.memory_space<vmem>>, vector<8x16xf32>
    tpu.vector_store %arg29[%c0_40, %c32], %77 {strides = array<i32>} : memref<16x64xf32, #tpu.memory_space<vmem>>, vector<8x16xf32>,
    %79 = vector.extract_strided_slice %10 {offsets = [0, 48], sizes = [8, 16], strides = [1, 1]} : vector<16x64xf32> to vector<8x16xf32>
    %80 = vector.extract_strided_slice %17 {offsets = [0, 48], sizes = [8, 16], strides = [1, 1]} : vector<16x64xf32> to vector<8x16xf32>
    %81 = vector.extract_strided_slice %24 {offsets = [0, 48], sizes = [8, 16], strides = [1, 1]} : vector<16x64xf32> to vector<8x16xf32>
    %cst_41 = arith.constant dense<0.000000e+00> : vector<8x8xf32>
    %82 = tpu.matmul %79, %80, %cst_41 {dimension_numbers = #tpu.dot_dimension_numbers<[1], [1], [0], [0], [0, 0, 1, 0], [], []>} : vector<8x16xf32>, vector<8x16xf32>, vector<8x8xf32> -> vector<8x8xf32>
    %cst_42 = arith.constant 2.500000e-01 : f32
    %83 = vector.broadcast %cst_42 : f32 to vector<8x8xf32>
    %84 = arith.mulf %82, %83 : vector<8x8xf32>
    %cst_43 = arith.constant dense<0xFF800000> : vector<8xf32>
    %85 = vector.multi_reduction <maximumf>, %84, %cst_43 [1] : vector<8x8xf32> to vector<8xf32>
    %86 = vector.shape_cast %85 : vector<8xf32> to vector<8x1xf32>
    %87 = vector.broadcast %86 : vector<8x1xf32> to vector<8x8xf32>
    %88 = arith.subf %84, %87 : vector<8x8xf32>
    %89 = math.exp %88 : vector<8x8xf32>
    %cst_44 = arith.constant dense<0.000000e+00> : vector<8xf32>
    %90 = vector.multi_reduction <add>, %89, %cst_44 [1] : vector<8x8xf32> to vector<8xf32>
    %91 = vector.shape_cast %90 : vector<8xf32> to vector<8x1xf32>
    %92 = tpu.reciprocal %91 {approx = true} : vector<8x1xf32> -> vector<8x1xf32>
    %93 = vector.broadcast %92 : vector<8x1xf32> to vector<8x8xf32>
    %94 = arith.mulf %89, %93 : vector<8x8xf32>
    %cst_45 = arith.constant dense<0.000000e+00> : vector<8x16xf32>
    %95 = tpu.matmul %94, %81, %cst_45 {dimension_numbers = #tpu.dot_dimension_numbers<[1], [0], [0], [1], [0, 0, 1, 1], [], []>} : vector<8x8xf32>, vector<8x16xf32>, vector<8x16xf32> -> vector<8x16xf32>
    %c0_46 = arith.constant 0 : index
    %c48 = arith.constant 48 : index
    %96 = vector.load %arg29[%c0_46, %c48] : memref<16x64xf32, #tpu.memory_space<vmem>>, vector<8x16xf32>
    tpu.vector_store %arg29[%c0_46, %c48], %95 {strides = array<i32>} : memref<16x64xf32, #tpu.memory_space<vmem>>, vector<8x16xf32>,
    %97 = vector.extract_strided_slice %10 {offsets = [8, 0], sizes = [8, 16], strides = [1, 1]} : vector<16x64xf32> to vector<8x16xf32>
    %98 = vector.extract_strided_slice %17 {offsets = [8, 0], sizes = [8, 16], strides = [1, 1]} : vector<16x64xf32> to vector<8x16xf32>
    %99 = vector.extract_strided_slice %24 {offsets = [8, 0], sizes = [8, 16], strides = [1, 1]} : vector<16x64xf32> to vector<8x16xf32>
    %cst_47 = arith.constant dense<0.000000e+00> : vector<8x8xf32>
    %100 = tpu.matmul %97, %98, %cst_47 {dimension_numbers = #tpu.dot_dimension_numbers<[1], [1], [0], [0], [0, 0, 1, 0], [], []>} : vector<8x16xf32>, vector<8x16xf32>, vector<8x8xf32> -> vector<8x8xf32>
    %cst_48 = arith.constant 2.500000e-01 : f32
    %101 = vector.broadcast %cst_48 : f32 to vector<8x8xf32>
    %102 = arith.mulf %100, %101 : vector<8x8xf32>
    %cst_49 = arith.constant dense<0xFF800000> : vector<8xf32>
    %103 = vector.multi_reduction <maximumf>, %102, %cst_49 [1] : vector<8x8xf32> to vector<8xf32>
    %104 = vector.shape_cast %103 : vector<8xf32> to vector<8x1xf32>
    %105 = vector.broadcast %104 : vector<8x1xf32> to vector<8x8xf32>
    %106 = arith.subf %102, %105 : vector<8x8xf32>
    %107 = math.exp %106 : vector<8x8xf32>
    %cst_50 = arith.constant dense<0.000000e+00> : vector<8xf32>
    %108 = vector.multi_reduction <add>, %107, %cst_50 [1] : vector<8x8xf32> to vector<8xf32>
    %109 = vector.shape_cast %108 : vector<8xf32> to vector<8x1xf32>
    %110 = tpu.reciprocal %109 {approx = true} : vector<8x1xf32> -> vector<8x1xf32>
    %111 = vector.broadcast %110 : vector<8x1xf32> to vector<8x8xf32>
    %112 = arith.mulf %107, %111 : vector<8x8xf32>
    %cst_51 = arith.constant dense<0.000000e+00> : vector<8x16xf32>
    %113 = tpu.matmul %112, %99, %cst_51 {dimension_numbers = #tpu.dot_dimension_numbers<[1], [0], [0], [1], [0, 0, 1, 1], [], []>} : vector<8x8xf32>, vector<8x16xf32>, vector<8x16xf32> -> vector<8x16xf32>
    %c8 = arith.constant 8 : index
    %c0_52 = arith.constant 0 : index
    %114 = vector.load %arg29[%c8, %c0_52] : memref<16x64xf32, #tpu.memory_space<vmem>>, vector<8x16xf32>
    tpu.vector_store %arg29[%c8, %c0_52], %113 {strides = array<i32>} : memref<16x64xf32, #tpu.memory_space<vmem>>, vector<8x16xf32>,
    %115 = vector.extract_strided_slice %10 {offsets = [8, 16], sizes = [8, 16], strides = [1, 1]} : vector<16x64xf32> to vector<8x16xf32>
    %116 = vector.extract_strided_slice %17 {offsets = [8, 16], sizes = [8, 16], strides = [1, 1]} : vector<16x64xf32> to vector<8x16xf32>
    %117 = vector.extract_strided_slice %24 {offsets = [8, 16], sizes = [8, 16], strides = [1, 1]} : vector<16x64xf32> to vector<8x16xf32>
    %cst_53 = arith.constant dense<0.000000e+00> : vector<8x8xf32>
    %118 = tpu.matmul %115, %116, %cst_53 {dimension_numbers = #tpu.dot_dimension_numbers<[1], [1], [0], [0], [0, 0, 1, 0], [], []>} : vector<8x16xf32>, vector<8x16xf32>, vector<8x8xf32> -> vector<8x8xf32>
    %cst_54 = arith.constant 2.500000e-01 : f32
    %119 = vector.broadcast %cst_54 : f32 to vector<8x8xf32>
    %120 = arith.mulf %118, %119 : vector<8x8xf32>
    %cst_55 = arith.constant dense<0xFF800000> : vector<8xf32>
    %121 = vector.multi_reduction <maximumf>, %120, %cst_55 [1] : vector<8x8xf32> to vector<8xf32>
    %122 = vector.shape_cast %121 : vector<8xf32> to vector<8x1xf32>
    %123 = vector.broadcast %122 : vector<8x1xf32> to vector<8x8xf32>
    %124 = arith.subf %120, %123 : vector<8x8xf32>
    %125 = math.exp %124 : vector<8x8xf32>
    %cst_56 = arith.constant dense<0.000000e+00> : vector<8xf32>
    %126 = vector.multi_reduction <add>, %125, %cst_56 [1] : vector<8x8xf32> to vector<8xf32>
    %127 = vector.shape_cast %126 : vector<8xf32> to vector<8x1xf32>
    %128 = tpu.reciprocal %127 {approx = true} : vector<8x1xf32> -> vector<8x1xf32>
    %129 = vector.broadcast %128 : vector<8x1xf32> to vector<8x8xf32>
    %130 = arith.mulf %125, %129 : vector<8x8xf32>
    %cst_57 = arith.constant dense<0.000000e+00> : vector<8x16xf32>
    %131 = tpu.matmul %130, %117, %cst_57 {dimension_numbers = #tpu.dot_dimension_numbers<[1], [0], [0], [1], [0, 0, 1, 1], [], []>} : vector<8x8xf32>, vector<8x16xf32>, vector<8x16xf32> -> vector<8x16xf32>
    %c8_58 = arith.constant 8 : index
    %c16_59 = arith.constant 16 : index
    %132 = vector.load %arg29[%c8_58, %c16_59] : memref<16x64xf32, #tpu.memory_space<vmem>>, vector<8x16xf32>
    tpu.vector_store %arg29[%c8_58, %c16_59], %131 {strides = array<i32>} : memref<16x64xf32, #tpu.memory_space<vmem>>, vector<8x16xf32>,
    %133 = vector.extract_strided_slice %10 {offsets = [8, 32], sizes = [8, 16], strides = [1, 1]} : vector<16x64xf32> to vector<8x16xf32>
    %134 = vector.extract_strided_slice %17 {offsets = [8, 32], sizes = [8, 16], strides = [1, 1]} : vector<16x64xf32> to vector<8x16xf32>
    %135 = vector.extract_strided_slice %24 {offsets = [8, 32], sizes = [8, 16], strides = [1, 1]} : vector<16x64xf32> to vector<8x16xf32>
    %cst_60 = arith.constant dense<0.000000e+00> : vector<8x8xf32>
    %136 = tpu.matmul %133, %134, %cst_60 {dimension_numbers = #tpu.dot_dimension_numbers<[1], [1], [0], [0], [0, 0, 1, 0], [], []>} : vector<8x16xf32>, vector<8x16xf32>, vector<8x8xf32> -> vector<8x8xf32>
    %cst_61 = arith.constant 2.500000e-01 : f32
    %137 = vector.broadcast %cst_61 : f32 to vector<8x8xf32>
    %138 = arith.mulf %136, %137 : vector<8x8xf32>
    %cst_62 = arith.constant dense<0xFF800000> : vector<8xf32>
    %139 = vector.multi_reduction <maximumf>, %138, %cst_62 [1] : vector<8x8xf32> to vector<8xf32>
    %140 = vector.shape_cast %139 : vector<8xf32> to vector<8x1xf32>
    %141 = vector.broadcast %140 : vector<8x1xf32> to vector<8x8xf32>
    %142 = arith.subf %138, %141 : vector<8x8xf32>
    %143 = math.exp %142 : vector<8x8xf32>
    %cst_63 = arith.constant dense<0.000000e+00> : vector<8xf32>
    %144 = vector.multi_reduction <add>, %143, %cst_63 [1] : vector<8x8xf32> to vector<8xf32>
    %145 = vector.shape_cast %144 : vector<8xf32> to vector<8x1xf32>
    %146 = tpu.reciprocal %145 {approx = true} : vector<8x1xf32> -> vector<8x1xf32>
    %147 = vector.broadcast %146 : vector<8x1xf32> to vector<8x8xf32>
    %148 = arith.mulf %143, %147 : vector<8x8xf32>
    %cst_64 = arith.constant dense<0.000000e+00> : vector<8x16xf32>
    %149 = tpu.matmul %148, %135, %cst_64 {dimension_numbers = #tpu.dot_dimension_numbers<[1], [0], [0], [1], [0, 0, 1, 1], [], []>} : vector<8x8xf32>, vector<8x16xf32>, vector<8x16xf32> -> vector<8x16xf32>
    %c8_65 = arith.constant 8 : index
    %c32_66 = arith.constant 32 : index
    %150 = vector.load %arg29[%c8_65, %c32_66] : memref<16x64xf32, #tpu.memory_space<vmem>>, vector<8x16xf32>
    tpu.vector_store %arg29[%c8_65, %c32_66], %149 {strides = array<i32>} : memref<16x64xf32, #tpu.memory_space<vmem>>, vector<8x16xf32>,
    %151 = vector.extract_strided_slice %10 {offsets = [8, 48], sizes = [8, 16], strides = [1, 1]} : vector<16x64xf32> to vector<8x16xf32>
    %152 = vector.extract_strided_slice %17 {offsets = [8, 48], sizes = [8, 16], strides = [1, 1]} : vector<16x64xf32> to vector<8x16xf32>
    %153 = vector.extract_strided_slice %24 {offsets = [8, 48], sizes = [8, 16], strides = [1, 1]} : vector<16x64xf32> to vector<8x16xf32>
    %cst_67 = arith.constant dense<0.000000e+00> : vector<8x8xf32>
    %154 = tpu.matmul %151, %152, %cst_67 {dimension_numbers = #tpu.dot_dimension_numbers<[1], [1], [0], [0], [0, 0, 1, 0], [], []>} : vector<8x16xf32>, vector<8x16xf32>, vector<8x8xf32> -> vector<8x8xf32>
    %cst_68 = arith.constant 2.500000e-01 : f32
    %155 = vector.broadcast %cst_68 : f32 to vector<8x8xf32>
    %156 = arith.mulf %154, %155 : vector<8x8xf32>
    %cst_69 = arith.constant dense<0xFF800000> : vector<8xf32>
    %157 = vector.multi_reduction <maximumf>, %156, %cst_69 [1] : vector<8x8xf32> to vector<8xf32>
    %158 = vector.shape_cast %157 : vector<8xf32> to vector<8x1xf32>
    %159 = vector.broadcast %158 : vector<8x1xf32> to vector<8x8xf32>
    %160 = arith.subf %156, %159 : vector<8x8xf32>
    %161 = math.exp %160 : vector<8x8xf32>
    %cst_70 = arith.constant dense<0.000000e+00> : vector<8xf32>
    %162 = vector.multi_reduction <add>, %161, %cst_70 [1] : vector<8x8xf32> to vector<8xf32>
    %163 = vector.shape_cast %162 : vector<8xf32> to vector<8x1xf32>
    %164 = tpu.reciprocal %163 {approx = true} : vector<8x1xf32> -> vector<8x1xf32>
    %165 = vector.broadcast %164 : vector<8x1xf32> to vector<8x8xf32>
    %166 = arith.mulf %161, %165 : vector<8x8xf32>
    %cst_71 = arith.constant dense<0.000000e+00> : vector<8x16xf32>
    %167 = tpu.matmul %166, %153, %cst_71 {dimension_numbers = #tpu.dot_dimension_numbers<[1], [0], [0], [1], [0, 0, 1, 1], [], []>} : vector<8x8xf32>, vector<8x16xf32>, vector<8x16xf32> -> vector<8x16xf32>
    %c8_72 = arith.constant 8 : index
    %c48_73 = arith.constant 48 : index
    %168 = vector.load %arg29[%c8_72, %c48_73] : memref<16x64xf32, #tpu.memory_space<vmem>>, vector<8x16xf32>
    tpu.vector_store %arg29[%c8_72, %c48_73], %167 {strides = array<i32>} : memref<16x64xf32, #tpu.memory_space<vmem>>, vector<8x16xf32>,
    %c0_74 = arith.constant 0 : index
    %c0_75 = arith.constant 0 : index
    %169 = vector.load %arg29[%c0_74, %c0_75] : memref<16x64xf32, #tpu.memory_space<vmem>>, vector<16x64xf32>
    %c0_76 = arith.constant 0 : index
    %c0_77 = arith.constant 0 : index
    %c0_78 = arith.constant 0 : index
    %170 = vector.load %arg11[%c0_76, %c0_77, %c0_78] : memref<1x64x64xf32, #tpu.memory_space<vmem>>, vector<1x64x64xf32>
    %171 = vector.shape_cast %170 : vector<1x64x64xf32> to vector<64x64xf32>
    %cst_79 = arith.constant dense<0.000000e+00> : vector<16x64xf32>
    %172 = tpu.matmul %169, %171, %cst_79 {dimension_numbers = #tpu.dot_dimension_numbers<[1], [0], [0], [1], [0, 0, 1, 1], [], []>} : vector<16x64xf32>, vector<64x64xf32>, vector<16x64xf32> -> vector<16x64xf32>
    %c0_80 = arith.constant 0 : index
    %c0_81 = arith.constant 0 : index
    %c0_82 = arith.constant 0 : index
    %173 = vector.load %arg12[%c0_80, %c0_81, %c0_82] : memref<1x1x64xf32, #tpu.memory_space<vmem>>, vector<1x1x64xf32>
    %174 = vector.shape_cast %173 : vector<1x1x64xf32> to vector<1x64xf32>
    %175 = vector.broadcast %174 : vector<1x64xf32> to vector<16x64xf32>
    %176 = arith.addf %172, %175 : vector<16x64xf32>
    %177 = arith.addf %3, %176 : vector<16x64xf32>
    %c0_83 = arith.constant 0 : index
    %c0_84 = arith.constant 0 : index
    %c0_85 = arith.constant 0 : index
    %178 = vector.load %arg13[%c0_83, %c0_84, %c0_85] : memref<1x1x64xf32, #tpu.memory_space<vmem>>, vector<1x1x64xf32>
    %179 = vector.shape_cast %178 : vector<1x1x64xf32> to vector<1x64xf32>
    %c0_86 = arith.constant 0 : index
    %c0_87 = arith.constant 0 : index
    %c0_88 = arith.constant 0 : index
    %180 = vector.load %arg14[%c0_86, %c0_87, %c0_88] : memref<1x1x64xf32, #tpu.memory_space<vmem>>, vector<1x1x64xf32>
    %181 = vector.shape_cast %180 : vector<1x1x64xf32> to vector<1x64xf32>
    %cst_89 = arith.constant dense<0.000000e+00> : vector<16xf32>
    %182 = vector.multi_reduction <add>, %177, %cst_89 [1] : vector<16x64xf32> to vector<16xf32>
    %183 = vector.shape_cast %182 : vector<16xf32> to vector<16x1xf32>
    %cst_90 = arith.constant 6.400000e+01 : f32
    %184 = vector.broadcast %cst_90 : f32 to vector<16x1xf32>
    %185 = arith.divf %183, %184 : vector<16x1xf32>
    %186 = vector.broadcast %185 : vector<16x1xf32> to vector<16x64xf32>
    %187 = arith.subf %177, %186 : vector<16x64xf32>
    %188 = arith.mulf %187, %187 : vector<16x64xf32>
    %cst_91 = arith.constant dense<0.000000e+00> : vector<16xf32>
    %189 = vector.multi_reduction <add>, %188, %cst_91 [1] : vector<16x64xf32> to vector<16xf32>
    %190 = vector.shape_cast %189 : vector<16xf32> to vector<16x1xf32>
    %cst_92 = arith.constant 6.400000e+01 : f32
    %191 = vector.broadcast %cst_92 : f32 to vector<16x1xf32>
    %192 = arith.divf %190, %191 : vector<16x1xf32>
    %193 = vector.broadcast %185 : vector<16x1xf32> to vector<16x64xf32>
    %194 = arith.subf %177, %193 : vector<16x64xf32>
    %cst_93 = arith.constant 9.99999974E-6 : f32
    %195 = vector.broadcast %cst_93 : f32 to vector<16x1xf32>
    %196 = arith.addf %192, %195 : vector<16x1xf32>
    %197 = math.rsqrt %196 : vector<16x1xf32>
    %198 = vector.broadcast %197 : vector<16x1xf32> to vector<16x64xf32>
    %199 = arith.mulf %194, %198 : vector<16x64xf32>
    %200 = vector.broadcast %179 : vector<1x64xf32> to vector<16x64xf32>
    %201 = arith.mulf %199, %200 : vector<16x64xf32>
    %202 = vector.broadcast %181 : vector<1x64xf32> to vector<16x64xf32>
    %203 = arith.addf %201, %202 : vector<16x64xf32>
    %c0_94 = arith.constant 0 : index
    %c0_95 = arith.constant 0 : index
    %c0_96 = arith.constant 0 : index
    %204 = vector.load %arg15[%c0_94, %c0_95, %c0_96] : memref<1x64x2048xbf16, #tpu.memory_space<vmem>>, vector<1x64x2048xbf16>
    %205 = vector.shape_cast %204 : vector<1x64x2048xbf16> to vector<64x2048xbf16>
    %206 = arith.extf %205 : vector<64x2048xbf16> to vector<64x2048xf32>
    %cst_97 = arith.constant dense<0.000000e+00> : vector<16x2048xf32>
    %207 = tpu.matmul %203, %206, %cst_97 {dimension_numbers = #tpu.dot_dimension_numbers<[1], [0], [0], [1], [0, 0, 1, 1], [], []>} : vector<16x64xf32>, vector<64x2048xf32>, vector<16x2048xf32> -> vector<16x2048xf32>
    %c0_98 = arith.constant 0 : index
    %c0_99 = arith.constant 0 : index
    %c0_100 = arith.constant 0 : index
    %208 = vector.load %arg16[%c0_98, %c0_99, %c0_100] : memref<1x1x2048xf32, #tpu.memory_space<vmem>>, vector<1x1x2048xf32>
    %209 = vector.shape_cast %208 : vector<1x1x2048xf32> to vector<1x2048xf32>
    %210 = vector.broadcast %209 : vector<1x2048xf32> to vector<16x2048xf32>
    %211 = arith.addf %207, %210 : vector<16x2048xf32>
    %cst_101 = arith.constant 0.000000e+00 : f32
    %212 = vector.broadcast %cst_101 : f32 to vector<16x2048xf32>
    %213 = arith.maximumf %211, %212 : vector<16x2048xf32>
    %c0_102 = arith.constant 0 : index
    %c0_103 = arith.constant 0 : index
    %c0_104 = arith.constant 0 : index
    %214 = vector.load %arg17[%c0_102, %c0_103, %c0_104] : memref<1x2048x64xbf16, #tpu.memory_space<vmem>>, vector<1x2048x64xbf16>
    %215 = vector.shape_cast %214 : vector<1x2048x64xbf16> to vector<2048x64xbf16>
    %216 = arith.extf %215 : vector<2048x64xbf16> to vector<2048x64xf32>
    %cst_105 = arith.constant dense<0.000000e+00> : vector<16x64xf32>
    %217 = tpu.matmul %213, %216, %cst_105 {dimension_numbers = #tpu.dot_dimension_numbers<[1], [0], [0], [1], [0, 0, 1, 1], [], []>} : vector<16x2048xf32>, vector<2048x64xf32>, vector<16x64xf32> -> vector<16x64xf32>
    %c0_106 = arith.constant 0 : index
    %c0_107 = arith.constant 0 : index
    %c0_108 = arith.constant 0 : index
    %218 = vector.load %arg18[%c0_106, %c0_107, %c0_108] : memref<1x1x64xf32, #tpu.memory_space<vmem>>, vector<1x1x64xf32>
    %219 = vector.shape_cast %218 : vector<1x1x64xf32> to vector<1x64xf32>
    %220 = vector.broadcast %219 : vector<1x64xf32> to vector<16x64xf32>
    %221 = arith.addf %217, %220 : vector<16x64xf32>
    %222 = arith.addf %203, %221 : vector<16x64xf32>
    %c0_109 = arith.constant 0 : index
    %c0_110 = arith.constant 0 : index
    %c0_111 = arith.constant 0 : index
    %223 = vector.load %arg19[%c0_109, %c0_110, %c0_111] : memref<1x1x64xf32, #tpu.memory_space<vmem>>, vector<1x1x64xf32>
    %224 = vector.shape_cast %223 : vector<1x1x64xf32> to vector<1x64xf32>
    %c0_112 = arith.constant 0 : index
    %c0_113 = arith.constant 0 : index
    %c0_114 = arith.constant 0 : index
    %225 = vector.load %arg20[%c0_112, %c0_113, %c0_114] : memref<1x1x64xf32, #tpu.memory_space<vmem>>, vector<1x1x64xf32>
    %226 = vector.shape_cast %225 : vector<1x1x64xf32> to vector<1x64xf32>
    %cst_115 = arith.constant dense<0.000000e+00> : vector<16xf32>
    %227 = vector.multi_reduction <add>, %222, %cst_115 [1] : vector<16x64xf32> to vector<16xf32>
    %228 = vector.shape_cast %227 : vector<16xf32> to vector<16x1xf32>
    %cst_116 = arith.constant 6.400000e+01 : f32
    %229 = vector.broadcast %cst_116 : f32 to vector<16x1xf32>
    %230 = arith.divf %228, %229 : vector<16x1xf32>
    %231 = vector.broadcast %230 : vector<16x1xf32> to vector<16x64xf32>
    %232 = arith.subf %222, %231 : vector<16x64xf32>
    %233 = arith.mulf %232, %232 : vector<16x64xf32>
    %cst_117 = arith.constant dense<0.000000e+00> : vector<16xf32>
    %234 = vector.multi_reduction <add>, %233, %cst_117 [1] : vector<16x64xf32> to vector<16xf32>
    %235 = vector.shape_cast %234 : vector<16xf32> to vector<16x1xf32>
    %cst_118 = arith.constant 6.400000e+01 : f32
    %236 = vector.broadcast %cst_118 : f32 to vector<16x1xf32>
    %237 = arith.divf %235, %236 : vector<16x1xf32>
    %238 = vector.broadcast %230 : vector<16x1xf32> to vector<16x64xf32>
    %239 = arith.subf %222, %238 : vector<16x64xf32>
    %cst_119 = arith.constant 9.99999974E-6 : f32
    %240 = vector.broadcast %cst_119 : f32 to vector<16x1xf32>
    %241 = arith.addf %237, %240 : vector<16x1xf32>
    %242 = math.rsqrt %241 : vector<16x1xf32>
    %243 = vector.broadcast %242 : vector<16x1xf32> to vector<16x64xf32>
    %244 = arith.mulf %239, %243 : vector<16x64xf32>
    %245 = vector.broadcast %224 : vector<1x64xf32> to vector<16x64xf32>
    %246 = arith.mulf %244, %245 : vector<16x64xf32>
    %247 = vector.broadcast %226 : vector<1x64xf32> to vector<16x64xf32>
    %248 = arith.addf %246, %247 : vector<16x64xf32>
    %c0_120 = arith.constant 0 : index
    %c0_121 = arith.constant 0 : index
    %249 = vector.load %arg28[%c0_120, %c0_121] : memref<16x64xf32, #tpu.memory_space<vmem>>, vector<16x64xf32>
    tpu.vector_store %arg28[%c0_120, %c0_121], %248 {strides = array<i32>} : memref<16x64xf32, #tpu.memory_space<vmem>>, vector<16x64xf32>,
    %c3_i32 = arith.constant 3 : i32
    %250 = arith.cmpi eq, %arg0, %c3_i32 : i32
    %251 = arith.extui %250 : i1 to i32
    %c0_i32_122 = arith.constant 0 : i32
    %252 = arith.cmpi ne, %251, %c0_i32_122 : i32
    scf.if %252 {
      %253 = vector.extract_strided_slice %248 {offsets = [7, 0], sizes = [1, 64], strides = [1, 1]} : vector<16x64xf32> to vector<1x64xf32>
      %254 = vector.extract_strided_slice %248 {offsets = [15, 0], sizes = [1, 64], strides = [1, 1]} : vector<16x64xf32> to vector<1x64xf32>
      %255 = tpu.concatenate %253, %254 in 0 : vector<1x64xf32>, vector<1x64xf32> -> vector<2x64xf32>
      %c0_123 = arith.constant 0 : index
      %c0_124 = arith.constant 0 : index
      %256 = vector.load %arg21[%c0_123, %c0_124] : memref<64x128xf32, #tpu.memory_space<vmem>>, vector<64x128xf32>
      %cst_125 = arith.constant dense<0.000000e+00> : vector<2x128xf32>
      %257 = tpu.matmul %255, %256, %cst_125 {dimension_numbers = #tpu.dot_dimension_numbers<[1], [0], [0], [1], [0, 0, 1, 1], [], []>} : vector<2x64xf32>, vector<64x128xf32>, vector<2x128xf32> -> vector<2x128xf32>
      %c0_126 = arith.constant 0 : index
      %c0_127 = arith.constant 0 : index
      %258 = vector.load %arg22[%c0_126, %c0_127] : memref<1x128xf32, #tpu.memory_space<vmem>>, vector<1x128xf32>
      %259 = vector.broadcast %258 : vector<1x128xf32> to vector<2x128xf32>
      %260 = arith.addf %257, %259 : vector<2x128xf32>
      %cst_128 = arith.constant 0.000000e+00 : f32
      %261 = vector.broadcast %cst_128 : f32 to vector<2x128xf32>
      %262 = arith.maximumf %260, %261 : vector<2x128xf32>
      %c0_129 = arith.constant 0 : index
      %c0_130 = arith.constant 0 : index
      %263 = vector.load %arg23[%c0_129, %c0_130] : memref<128x64xf32, #tpu.memory_space<vmem>>, vector<128x64xf32>
      %cst_131 = arith.constant dense<0.000000e+00> : vector<2x64xf32>
      %264 = tpu.matmul %262, %263, %cst_131 {dimension_numbers = #tpu.dot_dimension_numbers<[1], [0], [0], [1], [0, 0, 1, 1], [], []>} : vector<2x128xf32>, vector<128x64xf32>, vector<2x64xf32> -> vector<2x64xf32>
      %c0_132 = arith.constant 0 : index
      %c0_133 = arith.constant 0 : index
      %265 = vector.load %arg24[%c0_132, %c0_133] : memref<1x64xf32, #tpu.memory_space<vmem>>, vector<1x64xf32>
      %266 = vector.broadcast %265 : vector<1x64xf32> to vector<2x64xf32>
      %267 = arith.addf %264, %266 : vector<2x64xf32>
      %cst_134 = arith.constant 0.000000e+00 : f32
      %268 = vector.broadcast %cst_134 : f32 to vector<2x64xf32>
      %269 = arith.maximumf %267, %268 : vector<2x64xf32>
      %c0_135 = arith.constant 0 : index
      %c0_136 = arith.constant 0 : index
      %270 = vector.load %arg25[%c0_135, %c0_136] : memref<64x3xf32, #tpu.memory_space<vmem>>, vector<64x3xf32>
      %cst_137 = arith.constant dense<0.000000e+00> : vector<2x3xf32>
      %271 = tpu.matmul %269, %270, %cst_137 {dimension_numbers = #tpu.dot_dimension_numbers<[1], [0], [0], [1], [0, 0, 1, 1], [], []>} : vector<2x64xf32>, vector<64x3xf32>, vector<2x3xf32> -> vector<2x3xf32>
      %c0_138 = arith.constant 0 : index
      %c0_139 = arith.constant 0 : index
      %272 = vector.load %arg26[%c0_138, %c0_139] : memref<1x3xf32, #tpu.memory_space<vmem>>, vector<1x3xf32>
      %273 = vector.broadcast %272 : vector<1x3xf32> to vector<2x3xf32>
      %274 = arith.addf %271, %273 : vector<2x3xf32>
      %c0_140 = arith.constant 0 : index
      %c0_141 = arith.constant 0 : index
      %275 = vector.load %arg27[%c0_140, %c0_141] : memref<2x3xf32, #tpu.memory_space<vmem>>, vector<2x3xf32>
      tpu.vector_store %arg27[%c0_140, %c0_141], %274 {strides = array<i32>} : memref<2x3xf32, #tpu.memory_space<vmem>>, vector<2x3xf32>,
    } else {
    }
    return
  }
  func.func @transform_0(%arg0: i32) -> (i32, i32) {
    %c0_i32 = arith.constant 0 : i32
    %c0_i32_0 = arith.constant 0 : i32
    %c0_i32_1 = arith.constant 0 : i32
    return %c0_i32, %c0_i32_0 : i32, i32
  }
  func.func @transform_1(%arg0: i32) -> (i32, i32) {
    %c0_i32 = arith.constant 0 : i32
    %c0_i32_0 = arith.constant 0 : i32
    %c0_i32_1 = arith.constant 0 : i32
    return %c0_i32, %c0_i32_0 : i32, i32
  }
  func.func @transform_2(%arg0: i32) -> (i32, i32) {
    %c0_i32 = arith.constant 0 : i32
    %c0_i32_0 = arith.constant 0 : i32
    %c0_i32_1 = arith.constant 0 : i32
    return %c0_i32, %c0_i32_0 : i32, i32
  }
  func.func @transform_3(%arg0: i32) -> (i32, i32) {
    %c0_i32 = arith.constant 0 : i32
    %c0_i32_0 = arith.constant 0 : i32
    %c0_i32_1 = arith.constant 0 : i32
    return %c0_i32, %c0_i32_0 : i32, i32
  }
  func.func @transform_4(%arg0: i32) -> (i32, i32, i32) {
    %c0_i32 = arith.constant 0 : i32
    %c0_i32_0 = arith.constant 0 : i32
    %c0_i32_1 = arith.constant 0 : i32
    return %arg0, %c0_i32, %c0_i32_0 : i32, i32, i32
  }
  func.func @transform_5(%arg0: i32) -> (i32, i32, i32) {
    %c0_i32 = arith.constant 0 : i32
    %c0_i32_0 = arith.constant 0 : i32
    %c0_i32_1 = arith.constant 0 : i32
    return %arg0, %c0_i32, %c0_i32_0 : i32, i32, i32
  }
  func.func @transform_6(%arg0: i32) -> (i32, i32, i32) {
    %c0_i32 = arith.constant 0 : i32
    %c0_i32_0 = arith.constant 0 : i32
    %c0_i32_1 = arith.constant 0 : i32
    return %arg0, %c0_i32, %c0_i32_0 : i32, i32, i32
  }
  func.func @transform_7(%arg0: i32) -> (i32, i32, i32) {
    %c0_i32 = arith.constant 0 : i32
    %c0_i32_0 = arith.constant 0 : i32
    %c0_i32_1 = arith.constant 0 : i32
    return %arg0, %c0_i32, %c0_i32_0 : i32, i32, i32
  }
  func.func @transform_8(%arg0: i32) -> (i32, i32, i32) {
    %c0_i32 = arith.constant 0 : i32
    %c0_i32_0 = arith.constant 0 : i32
    %c0_i32_1 = arith.constant 0 : i32
    return %arg0, %c0_i32, %c0_i32_0 : i32, i32, i32
  }
  func.func @transform_9(%arg0: i32) -> (i32, i32, i32) {
    %c0_i32 = arith.constant 0 : i32
    %c0_i32_0 = arith.constant 0 : i32
    %c0_i32_1 = arith.constant 0 : i32
    return %arg0, %c0_i32, %c0_i32_0 : i32, i32, i32
  }
  func.func @transform_10(%arg0: i32) -> (i32, i32, i32) {
    %c0_i32 = arith.constant 0 : i32
    %c0_i32_0 = arith.constant 0 : i32
    %c0_i32_1 = arith.constant 0 : i32
    return %arg0, %c0_i32, %c0_i32_0 : i32, i32, i32
  }
  func.func @transform_11(%arg0: i32) -> (i32, i32, i32) {
    %c0_i32 = arith.constant 0 : i32
    %c0_i32_0 = arith.constant 0 : i32
    %c0_i32_1 = arith.constant 0 : i32
    return %arg0, %c0_i32, %c0_i32_0 : i32, i32, i32
  }
  func.func @transform_12(%arg0: i32) -> (i32, i32, i32) {
    %c0_i32 = arith.constant 0 : i32
    %c0_i32_0 = arith.constant 0 : i32
    %c0_i32_1 = arith.constant 0 : i32
    return %arg0, %c0_i32, %c0_i32_0 : i32, i32, i32
  }
  func.func @transform_13(%arg0: i32) -> (i32, i32, i32) {
    %c0_i32 = arith.constant 0 : i32
    %c0_i32_0 = arith.constant 0 : i32
    %c0_i32_1 = arith.constant 0 : i32
    return %arg0, %c0_i32, %c0_i32_0 : i32, i32, i32
  }
  func.func @transform_14(%arg0: i32) -> (i32, i32, i32) {
    %c0_i32 = arith.constant 0 : i32
    %c0_i32_0 = arith.constant 0 : i32
    %c0_i32_1 = arith.constant 0 : i32
    return %arg0, %c0_i32, %c0_i32_0 : i32, i32, i32
  }
  func.func @transform_15(%arg0: i32) -> (i32, i32, i32) {
    %c0_i32 = arith.constant 0 : i32
    %c0_i32_0 = arith.constant 0 : i32
    %c0_i32_1 = arith.constant 0 : i32
    return %arg0, %c0_i32, %c0_i32_0 : i32, i32, i32
  }
  func.func @transform_16(%arg0: i32) -> (i32, i32, i32) {
    %c0_i32 = arith.constant 0 : i32
    %c0_i32_0 = arith.constant 0 : i32
    %c0_i32_1 = arith.constant 0 : i32
    return %arg0, %c0_i32, %c0_i32_0 : i32, i32, i32
  }
  func.func @transform_17(%arg0: i32) -> (i32, i32, i32) {
    %c0_i32 = arith.constant 0 : i32
    %c0_i32_0 = arith.constant 0 : i32
    %c0_i32_1 = arith.constant 0 : i32
    return %arg0, %c0_i32, %c0_i32_0 : i32, i32, i32
  }
  func.func @transform_18(%arg0: i32) -> (i32, i32, i32) {
    %c0_i32 = arith.constant 0 : i32
    %c0_i32_0 = arith.constant 0 : i32
    %c0_i32_1 = arith.constant 0 : i32
    return %arg0, %c0_i32, %c0_i32_0 : i32, i32, i32
  }
  func.func @transform_19(%arg0: i32) -> (i32, i32, i32) {
    %c0_i32 = arith.constant 0 : i32
    %c0_i32_0 = arith.constant 0 : i32
    %c0_i32_1 = arith.constant 0 : i32
    return %arg0, %c0_i32, %c0_i32_0 : i32, i32, i32
  }
  func.func @transform_20(%arg0: i32) -> (i32, i32) {
    %c0_i32 = arith.constant 0 : i32
    %c0_i32_0 = arith.constant 0 : i32
    %c0_i32_1 = arith.constant 0 : i32
    return %c0_i32, %c0_i32_0 : i32, i32
  }
  func.func @transform_21(%arg0: i32) -> (i32, i32) {
    %c0_i32 = arith.constant 0 : i32
    %c0_i32_0 = arith.constant 0 : i32
    %c0_i32_1 = arith.constant 0 : i32
    return %c0_i32, %c0_i32_0 : i32, i32
  }
  func.func @transform_22(%arg0: i32) -> (i32, i32) {
    %c0_i32 = arith.constant 0 : i32
    %c0_i32_0 = arith.constant 0 : i32
    %c0_i32_1 = arith.constant 0 : i32
    return %c0_i32, %c0_i32_0 : i32, i32
  }
  func.func @transform_23(%arg0: i32) -> (i32, i32) {
    %c0_i32 = arith.constant 0 : i32
    %c0_i32_0 = arith.constant 0 : i32
    %c0_i32_1 = arith.constant 0 : i32
    return %c0_i32, %c0_i32_0 : i32, i32
  }
  func.func @transform_24(%arg0: i32) -> (i32, i32) {
    %c0_i32 = arith.constant 0 : i32
    %c0_i32_0 = arith.constant 0 : i32
    %c0_i32_1 = arith.constant 0 : i32
    return %c0_i32, %c0_i32_0 : i32, i32
  }
  func.func @transform_25(%arg0: i32) -> (i32, i32) {
    %c0_i32 = arith.constant 0 : i32
    %c0_i32_0 = arith.constant 0 : i32
    %c0_i32_1 = arith.constant 0 : i32
    return %c0_i32, %c0_i32_0 : i32, i32
  }
  func.func @transform_26(%arg0: i32) -> (i32, i32) {
    %c0_i32 = arith.constant 0 : i32
    %c0_i32_0 = arith.constant 0 : i32
    %c0_i32_1 = arith.constant 0 : i32
    return %c0_i32, %c0_i32_0 : i32, i32
  }
}

</mosaic_0001>

<llo_original>
// kernel: tpu_custom_call.1
$region0: #{tpu_custom_call.1}
  #allocation0 [shape = 'u32[]', space=smem, size = 0x4, offset = 0x4, fixed_abs, tag = 'smem constant byte address 0x4 - core index']
  #allocation1 [shape = 'u32[72,128]{1,0:T(1,128)}', space=vmem, size = 0x9000, scoped, tag = 'internal scratch']
  #allocation2 [shape = 'f32[16,64]{1,0:T(8,128)}', space=vmem, size = 0x2000, scoped, tag = 'scratch operand']
  #allocation3 [shape = 'f32[16,64]{1,0:T(8,128)}', space=vmem, size = 0x2000, scoped, tag = 'scratch operand']
  %s0 = inlined_call_operand.vmem [shape: f32[16,4], index: 0, kind: input, shape index: {}]
  %s1 = inlined_call_operand.vmem [shape: f32[16,64], index: 1, kind: input, shape index: {}]
  %s2 = inlined_call_operand.vmem [shape: f32[4,64], index: 2, kind: input, shape index: {}]
  %s3 = inlined_call_operand.vmem [shape: f32[1,64], index: 3, kind: input, shape index: {}]
  %s4 = inlined_call_operand.vmem [shape: f32[4,64,64], index: 4, kind: input, shape index: {}]
  %s5 = inlined_call_operand.vmem [shape: f32[4,1,64], index: 5, kind: input, shape index: {}]
  %s6 = inlined_call_operand.vmem [shape: f32[4,64,64], index: 6, kind: input, shape index: {}]
  %s7 = inlined_call_operand.vmem [shape: f32[4,1,64], index: 7, kind: input, shape index: {}]
  %s8 = inlined_call_operand.vmem [shape: f32[4,64,64], index: 8, kind: input, shape index: {}]
  %s9 = inlined_call_operand.vmem [shape: f32[4,1,64], index: 9, kind: input, shape index: {}]
  %s10 = inlined_call_operand.vmem [shape: f32[4,64,64], index: 10, kind: input, shape index: {}]
  %s11 = inlined_call_operand.vmem [shape: f32[4,1,64], index: 11, kind: input, shape index: {}]
  %s12 = inlined_call_operand.vmem [shape: f32[4,1,64], index: 12, kind: input, shape index: {}]
  %s13 = inlined_call_operand.vmem [shape: f32[4,1,64], index: 13, kind: input, shape index: {}]
  %s14 = inlined_call_operand.vmem [shape: bf16[4,64,2048], index: 14, kind: input, shape index: {}]
  %s15 = inlined_call_operand.vmem [shape: f32[4,1,2048], index: 15, kind: input, shape index: {}]
  %s16 = inlined_call_operand.vmem [shape: bf16[4,2048,64], index: 16, kind: input, shape index: {}]
  %s17 = inlined_call_operand.vmem [shape: f32[4,1,64], index: 17, kind: input, shape index: {}]
  %s18 = inlined_call_operand.vmem [shape: f32[4,1,64], index: 18, kind: input, shape index: {}]
  %s19 = inlined_call_operand.vmem [shape: f32[4,1,64], index: 19, kind: input, shape index: {}]
  %s20 = inlined_call_operand.vmem [shape: f32[64,128], index: 20, kind: input, shape index: {}]
  %s21 = inlined_call_operand.vmem [shape: f32[1,128], index: 21, kind: input, shape index: {}]
  %s22 = inlined_call_operand.vmem [shape: f32[128,64], index: 22, kind: input, shape index: {}]
  %s23 = inlined_call_operand.vmem [shape: f32[1,64], index: 23, kind: input, shape index: {}]
  %s24 = inlined_call_operand.vmem [shape: f32[64,3], index: 24, kind: input, shape index: {}]
  %s25 = inlined_call_operand.vmem [shape: f32[1,3], index: 25, kind: input, shape index: {}]
  %s26 = inlined_call_operand.hbm [shape: f32[2,3], index: 26, kind: output, shape index: {}]
  %s27 = sld [smem:[#allocation0]]
  $region145: #{tpu_custom_call.1} parent=0
    _
  %s29 = ssub.s32 1, %s27
  %s30 = scalar_select 0, %s29, %s27
  $region1: #{tpu_custom_call.1} parent=0
    #allocation4 [shape = 'u8[1024]{0}', space=vmem, size = 0x400, scoped, tag = 'output window, operand 0, single buffered']
    #allocation5 [shape = 's32[2]{0}', space=sflag, size = 0x8, scoped, tag = 'scoped memory for tpu_custom_call.1']
    %31 = vsyncpa [#allocation5], 0
    loop: start=0, step=1, limit=6
    $region2: #{tpu_custom_call.1} parent=1 // loop_pre_header
      _
    $region3: #{tpu_custom_call.1} parent=1 // loop_header
      %s33 = sphi 0, %s37
      %p34 = scmp.ge.s32.totalorder %s33, 6
      %s41 = sphi 0, %s41
      %s43 = sphi 0, %s41
      %s44 = sphi 0, %s43
      %s58 = sphi 0, %s44
      %s62 = sphi 0, %s62
      %s64 = sphi 0, %s62
      %s65 = sphi 0, %s64
      %s79 = sphi 0, %s65
      %s83 = sphi 0, %s83
      %s85 = sphi 0, %s83
      %s86 = sphi 0, %s85
      %s100 = sphi 0, %s86
      %s104 = sphi 0, %s104
      %s106 = sphi 0, %s104
      %s107 = sphi 0, %s106
      %s121 = sphi 0, %s107
      %s127 = sphi 0, %s129
      %s130 = sphi 0, %s127
      %s131 = sphi 0, %s130
      %s147 = sphi 0, %s131
      %s153 = sphi 0, %s155
      %s156 = sphi 0, %s153
      %s157 = sphi 0, %s156
      %s173 = sphi 0, %s157
      %s179 = sphi 0, %s181
      %s182 = sphi 0, %s179
      %s183 = sphi 0, %s182
      %s199 = sphi 0, %s183
      %s205 = sphi 0, %s207
      %s208 = sphi 0, %s205
      %s209 = sphi 0, %s208
      %s225 = sphi 0, %s209
      %s231 = sphi 0, %s233
      %s234 = sphi 0, %s231
      %s235 = sphi 0, %s234
      %s251 = sphi 0, %s235
      %s257 = sphi 0, %s259
      %s260 = sphi 0, %s257
      %s261 = sphi 0, %s260
      %s277 = sphi 0, %s261
      %s283 = sphi 0, %s285
      %s286 = sphi 0, %s283
      %s287 = sphi 0, %s286
      %s303 = sphi 0, %s287
      %s309 = sphi 0, %s311
      %s312 = sphi 0, %s309
      %s313 = sphi 0, %s312
      %s329 = sphi 0, %s313
      %s335 = sphi 0, %s337
      %s338 = sphi 0, %s335
      %s339 = sphi 0, %s338
      %s355 = sphi 0, %s339
      %s361 = sphi 0, %s363
      %s364 = sphi 0, %s361
      %s365 = sphi 0, %s364
      %s381 = sphi 0, %s365
      %s387 = sphi 0, %s389
      %s390 = sphi 0, %s387
      %s391 = sphi 0, %s390
      %s407 = sphi 0, %s391
      %s413 = sphi 0, %s415
      %s416 = sphi 0, %s413
      %s417 = sphi 0, %s416
      %s433 = sphi 0, %s417
      %s439 = sphi 0, %s441
      %s442 = sphi 0, %s439
      %s443 = sphi 0, %s442
      %s459 = sphi 0, %s443
      %s465 = sphi 0, %s467
      %s468 = sphi 0, %s465
      %s469 = sphi 0, %s468
      %s485 = sphi 0, %s469
      %s491 = sphi 0, %s493
      %s494 = sphi 0, %s491
      %s495 = sphi 0, %s494
      %s511 = sphi 0, %s495
      %s517 = sphi 0, %s519
      %s520 = sphi 0, %s517
      %s521 = sphi 0, %s520
      %s537 = sphi 0, %s521
      %s541 = sphi 0, %s541
      %s543 = sphi 0, %s541
      %s544 = sphi 0, %s543
      %s558 = sphi 0, %s544
      %s562 = sphi 0, %s562
      %s564 = sphi 0, %s562
      %s565 = sphi 0, %s564
      %s579 = sphi 0, %s565
      %s583 = sphi 0, %s583
      %s585 = sphi 0, %s583
      %s586 = sphi 0, %s585
      %s600 = sphi 0, %s586
      %s604 = sphi 0, %s604
      %s606 = sphi 0, %s604
      %s607 = sphi 0, %s606
      %s621 = sphi 0, %s607
      %s625 = sphi 0, %s625
      %s627 = sphi 0, %s625
      %s628 = sphi 0, %s627
      %s642 = sphi 0, %s628
      %s646 = sphi 0, %s646
      %s648 = sphi 0, %s646
      %s649 = sphi 0, %s648
      %s663 = sphi 0, %s649
      %s667 = sphi 0, %s667
      %s669 = sphi 0, %s667
      %s670 = sphi 0, %s669
      %s684 = sphi 0, %s670
    $region4: #{tpu_custom_call.1} parent=1 // loop_header_branch
      %36 = sbr.rel (%p34) target = $region8
    $region5: #{tpu_custom_call.1} parent=1 // loop_body
      %s38 = ssub.s32 %s33, 1
      %s39 = ssub.s32 %s33, 2
      %s40 = sadd.s32 %s33, 1
      %s42 = sadd.s32 %s41, 1
      %p45 = scmp.eq.s32.totalorder %s33, 3
      %p46 = scmp.ne.s32.totalorder %s41, %s43
      %p47 = scmp.eq.s32.totalorder %s33, 0
      %p48 = por %p46, %p47
      %p49 = scmp.ne.s32.totalorder %s41, %s43
      %p50 = scmp.eq.s32.totalorder %s38, 3
      %p51 = por %p49, %p50
      %p52 = scmp.ne.s32.totalorder %s43, %s44
      %p53 = scmp.eq.s32.totalorder %s38, 0
      %p54 = por %p52, %p53
      %p55 = scmp.ne.s32.totalorder %s43, %s44
      %p56 = scmp.eq.s32.totalorder %s39, 3
      %p57 = por %p55, %p56
      %p59 = scmp.ne.s32.totalorder %s44, %s58
      %p60 = scmp.eq.s32.totalorder %s39, 0
      %p61 = por %p59, %p60
      %s63 = sadd.s32 %s62, 1
      %p66 = scmp.eq.s32.totalorder %s33, 3
      %p67 = scmp.ne.s32.totalorder %s62, %s64
      %p68 = scmp.eq.s32.totalorder %s33, 0
      %p69 = por %p67, %p68
      %p70 = scmp.ne.s32.totalorder %s62, %s64
      %p71 = scmp.eq.s32.totalorder %s38, 3
      %p72 = por %p70, %p71
      %p73 = scmp.ne.s32.totalorder %s64, %s65
      %p74 = scmp.eq.s32.totalorder %s38, 0
      %p75 = por %p73, %p74
      %p76 = scmp.ne.s32.totalorder %s64, %s65
      %p77 = scmp.eq.s32.totalorder %s39, 3
      %p78 = por %p76, %p77
      %p80 = scmp.ne.s32.totalorder %s65, %s79
      %p81 = scmp.eq.s32.totalorder %s39, 0
      %p82 = por %p80, %p81
      %s84 = sadd.s32 %s83, 1
      %p87 = scmp.eq.s32.totalorder %s33, 3
      %p88 = scmp.ne.s32.totalorder %s83, %s85
      %p89 = scmp.eq.s32.totalorder %s33, 0
      %p90 = por %p88, %p89
      %p91 = scmp.ne.s32.totalorder %s83, %s85
      %p92 = scmp.eq.s32.totalorder %s38, 3
      %p93 = por %p91, %p92
      %p94 = scmp.ne.s32.totalorder %s85, %s86
      %p95 = scmp.eq.s32.totalorder %s38, 0
      %p96 = por %p94, %p95
      %p97 = scmp.ne.s32.totalorder %s85, %s86
      %p98 = scmp.eq.s32.totalorder %s39, 3
      %p99 = por %p97, %p98
      %p101 = scmp.ne.s32.totalorder %s86, %s100
      %p102 = scmp.eq.s32.totalorder %s39, 0
      %p103 = por %p101, %p102
      %s105 = sadd.s32 %s104, 1
      %p108 = scmp.eq.s32.totalorder %s33, 3
      %p109 = scmp.ne.s32.totalorder %s104, %s106
      %p110 = scmp.eq.s32.totalorder %s33, 0
      %p111 = por %p109, %p110
      %p112 = scmp.ne.s32.totalorder %s104, %s106
      %p113 = scmp.eq.s32.totalorder %s38, 3
      %p114 = por %p112, %p113
      %p115 = scmp.ne.s32.totalorder %s106, %s107
      %p116 = scmp.eq.s32.totalorder %s38, 0
      %p117 = por %p115, %p116
      %p118 = scmp.ne.s32.totalorder %s106, %s107
      %p119 = scmp.eq.s32.totalorder %s39, 3
      %p120 = por %p118, %p119
      %p122 = scmp.ne.s32.totalorder %s107, %s121
      %p123 = scmp.eq.s32.totalorder %s39, 0
      %p124 = por %p122, %p123
      %s125 = ssub.s32 %s33, %s40
      %p126 = scmp.eq.s32.totalorder %s125, 0
      %s128 = sadd.s32 %s127, 1
      %s129 = scalar_select %p126, %s127, %s128
      %p132 = pneg %p126
      %p133 = scmp.eq.s32.totalorder %s33, 3
      %p134 = por %p132, %p133
      %p135 = scmp.ne.s32.totalorder %s127, %s130
      %p136 = scmp.eq.s32.totalorder %s33, 0
      %p137 = por %p135, %p136
      %p138 = scmp.ne.s32.totalorder %s127, %s130
      %p139 = scmp.eq.s32.totalorder %s38, 3
      %p140 = por %p138, %p139
      %p141 = scmp.ne.s32.totalorder %s130, %s131
      %p142 = scmp.eq.s32.totalorder %s38, 0
      %p143 = por %p141, %p142
      %p144 = scmp.ne.s32.totalorder %s130, %s131
      %p145 = scmp.eq.s32.totalorder %s39, 3
      %p146 = por %p144, %p145
      %p148 = scmp.ne.s32.totalorder %s131, %s147
      %p149 = scmp.eq.s32.totalorder %s39, 0
      %p150 = por %p148, %p149
      %s151 = ssub.s32 %s33, %s40
      %p152 = scmp.eq.s32.totalorder %s151, 0
      %s154 = sadd.s32 %s153, 1
      %s155 = scalar_select %p152, %s153, %s154
      %p158 = pneg %p152
      %p159 = scmp.eq.s32.totalorder %s33, 3
      %p160 = por %p158, %p159
      %p161 = scmp.ne.s32.totalorder %s153, %s156
      %p162 = scmp.eq.s32.totalorder %s33, 0
      %p163 = por %p161, %p162
      %p164 = scmp.ne.s32.totalorder %s153, %s156
      %p165 = scmp.eq.s32.totalorder %s38, 3
      %p166 = por %p164, %p165
      %p167 = scmp.ne.s32.totalorder %s156, %s157
      %p168 = scmp.eq.s32.totalorder %s38, 0
      %p169 = por %p167, %p168
      %p170 = scmp.ne.s32.totalorder %s156, %s157
      %p171 = scmp.eq.s32.totalorder %s39, 3
      %p172 = por %p170, %p171
      %p174 = scmp.ne.s32.totalorder %s157, %s173
      %p175 = scmp.eq.s32.totalorder %s39, 0
      %p176 = por %p174, %p175
      %s177 = ssub.s32 %s33, %s40
      %p178 = scmp.eq.s32.totalorder %s177, 0
      %s180 = sadd.s32 %s179, 1
      %s181 = scalar_select %p178, %s179, %s180
      %p184 = pneg %p178
      %p185 = scmp.eq.s32.totalorder %s33, 3
      %p186 = por %p184, %p185
      %p187 = scmp.ne.s32.totalorder %s179, %s182
      %p188 = scmp.eq.s32.totalorder %s33, 0
      %p189 = por %p187, %p188
      %p190 = scmp.ne.s32.totalorder %s179, %s182
      %p191 = scmp.eq.s32.totalorder %s38, 3
      %p192 = por %p190, %p191
      %p193 = scmp.ne.s32.totalorder %s182, %s183
      %p194 = scmp.eq.s32.totalorder %s38, 0
      %p195 = por %p193, %p194
      %p196 = scmp.ne.s32.totalorder %s182, %s183
      %p197 = scmp.eq.s32.totalorder %s39, 3
      %p198 = por %p196, %p197
      %p200 = scmp.ne.s32.totalorder %s183, %s199
      %p201 = scmp.eq.s32.totalorder %s39, 0
      %p202 = por %p200, %p201
      %s203 = ssub.s32 %s33, %s40
      %p204 = scmp.eq.s32.totalorder %s203, 0
      %s206 = sadd.s32 %s205, 1
      %s207 = scalar_select %p204, %s205, %s206
      %p210 = pneg %p204
      %p211 = scmp.eq.s32.totalorder %s33, 3
      %p212 = por %p210, %p211
      %p213 = scmp.ne.s32.totalorder %s205, %s208
      %p214 = scmp.eq.s32.totalorder %s33, 0
      %p215 = por %p213, %p214
      %p216 = scmp.ne.s32.totalorder %s205, %s208
      %p217 = scmp.eq.s32.totalorder %s38, 3
      %p218 = por %p216, %p217
      %p219 = scmp.ne.s32.totalorder %s208, %s209
      %p220 = scmp.eq.s32.totalorder %s38, 0
      %p221 = por %p219, %p220
      %p222 = scmp.ne.s32.totalorder %s208, %s209
      %p223 = scmp.eq.s32.totalorder %s39, 3
      %p224 = por %p222, %p223
      %p226 = scmp.ne.s32.totalorder %s209, %s225
      %p227 = scmp.eq.s32.totalorder %s39, 0
      %p228 = por %p226, %p227
      %s229 = ssub.s32 %s33, %s40
      %p230 = scmp.eq.s32.totalorder %s229, 0
      %s232 = sadd.s32 %s231, 1
      %s233 = scalar_select %p230, %s231, %s232
      %p236 = pneg %p230
      %p237 = scmp.eq.s32.totalorder %s33, 3
      %p238 = por %p236, %p237
      %p239 = scmp.ne.s32.totalorder %s231, %s234
      %p240 = scmp.eq.s32.totalorder %s33, 0
      %p241 = por %p239, %p240
      %p242 = scmp.ne.s32.totalorder %s231, %s234
      %p243 = scmp.eq.s32.totalorder %s38, 3
      %p244 = por %p242, %p243
      %p245 = scmp.ne.s32.totalorder %s234, %s235
      %p246 = scmp.eq.s32.totalorder %s38, 0
      %p247 = por %p245, %p246
      %p248 = scmp.ne.s32.totalorder %s234, %s235
      %p249 = scmp.eq.s32.totalorder %s39, 3
      %p250 = por %p248, %p249
      %p252 = scmp.ne.s32.totalorder %s235, %s251
      %p253 = scmp.eq.s32.totalorder %s39, 0
      %p254 = por %p252, %p253
      %s255 = ssub.s32 %s33, %s40
      %p256 = scmp.eq.s32.totalorder %s255, 0
      %s258 = sadd.s32 %s257, 1
      %s259 = scalar_select %p256, %s257, %s258
      %p262 = pneg %p256
      %p263 = scmp.eq.s32.totalorder %s33, 3
      %p264 = por %p262, %p263
      %p265 = scmp.ne.s32.totalorder %s257, %s260
      %p266 = scmp.eq.s32.totalorder %s33, 0
      %p267 = por %p265, %p266
      %p268 = scmp.ne.s32.totalorder %s257, %s260
      %p269 = scmp.eq.s32.totalorder %s38, 3
      %p270 = por %p268, %p269
      %p271 = scmp.ne.s32.totalorder %s260, %s261
      %p272 = scmp.eq.s32.totalorder %s38, 0
      %p273 = por %p271, %p272
      %p274 = scmp.ne.s32.totalorder %s260, %s261
      %p275 = scmp.eq.s32.totalorder %s39, 3
      %p276 = por %p274, %p275
      %p278 = scmp.ne.s32.totalorder %s261, %s277
      %p279 = scmp.eq.s32.totalorder %s39, 0
      %p280 = por %p278, %p279
      %s281 = ssub.s32 %s33, %s40
      %p282 = scmp.eq.s32.totalorder %s281, 0
      %s284 = sadd.s32 %s283, 1
      %s285 = scalar_select %p282, %s283, %s284
      %p288 = pneg %p282
      %p289 = scmp.eq.s32.totalorder %s33, 3
      %p290 = por %p288, %p289
      %p291 = scmp.ne.s32.totalorder %s283, %s286
      %p292 = scmp.eq.s32.totalorder %s33, 0
      %p293 = por %p291, %p292
      %p294 = scmp.ne.s32.totalorder %s283, %s286
      %p295 = scmp.eq.s32.totalorder %s38, 3
      %p296 = por %p294, %p295
      %p297 = scmp.ne.s32.totalorder %s286, %s287
      %p298 = scmp.eq.s32.totalorder %s38, 0
      %p299 = por %p297, %p298
      %p300 = scmp.ne.s32.totalorder %s286, %s287
      %p301 = scmp.eq.s32.totalorder %s39, 3
      %p302 = por %p300, %p301
      %p304 = scmp.ne.s32.totalorder %s287, %s303
      %p305 = scmp.eq.s32.totalorder %s39, 0
      %p306 = por %p304, %p305
      %s307 = ssub.s32 %s33, %s40
      %p308 = scmp.eq.s32.totalorder %s307, 0
      %s310 = sadd.s32 %s309, 1
      %s311 = scalar_select %p308, %s309, %s310
      %p314 = pneg %p308
      %p315 = scmp.eq.s32.totalorder %s33, 3
      %p316 = por %p314, %p315
      %p317 = scmp.ne.s32.totalorder %s309, %s312
      %p318 = scmp.eq.s32.totalorder %s33, 0
      %p319 = por %p317, %p318
      %p320 = scmp.ne.s32.totalorder %s309, %s312
      %p321 = scmp.eq.s32.totalorder %s38, 3
      %p322 = por %p320, %p321
      %p323 = scmp.ne.s32.totalorder %s312, %s313
      %p324 = scmp.eq.s32.totalorder %s38, 0
      %p325 = por %p323, %p324
      %p326 = scmp.ne.s32.totalorder %s312, %s313
      %p327 = scmp.eq.s32.totalorder %s39, 3
      %p328 = por %p326, %p327
      %p330 = scmp.ne.s32.totalorder %s313, %s329
      %p331 = scmp.eq.s32.totalorder %s39, 0
      %p332 = por %p330, %p331
      %s333 = ssub.s32 %s33, %s40
      %p334 = scmp.eq.s32.totalorder %s333, 0
      %s336 = sadd.s32 %s335, 1
      %s337 = scalar_select %p334, %s335, %s336
      %p340 = pneg %p334
      %p341 = scmp.eq.s32.totalorder %s33, 3
      %p342 = por %p340, %p341
      %p343 = scmp.ne.s32.totalorder %s335, %s338
      %p344 = scmp.eq.s32.totalorder %s33, 0
      %p345 = por %p343, %p344
      %p346 = scmp.ne.s32.totalorder %s335, %s338
      %p347 = scmp.eq.s32.totalorder %s38, 3
      %p348 = por %p346, %p347
      %p349 = scmp.ne.s32.totalorder %s338, %s339
      %p350 = scmp.eq.s32.totalorder %s38, 0
      %p351 = por %p349, %p350
      %p352 = scmp.ne.s32.totalorder %s338, %s339
      %p353 = scmp.eq.s32.totalorder %s39, 3
      %p354 = por %p352, %p353
      %p356 = scmp.ne.s32.totalorder %s339, %s355
      %p357 = scmp.eq.s32.totalorder %s39, 0
      %p358 = por %p356, %p357
      %s359 = ssub.s32 %s33, %s40
      %p360 = scmp.eq.s32.totalorder %s359, 0
      %s362 = sadd.s32 %s361, 1
      %s363 = scalar_select %p360, %s361, %s362
      %p366 = pneg %p360
      %p367 = scmp.eq.s32.totalorder %s33, 3
      %p368 = por %p366, %p367
      %p369 = scmp.ne.s32.totalorder %s361, %s364
      %p370 = scmp.eq.s32.totalorder %s33, 0
      %p371 = por %p369, %p370
      %p372 = scmp.ne.s32.totalorder %s361, %s364
      %p373 = scmp.eq.s32.totalorder %s38, 3
      %p374 = por %p372, %p373
      %p375 = scmp.ne.s32.totalorder %s364, %s365
      %p376 = scmp.eq.s32.totalorder %s38, 0
      %p377 = por %p375, %p376
      %p378 = scmp.ne.s32.totalorder %s364, %s365
      %p379 = scmp.eq.s32.totalorder %s39, 3
      %p380 = por %p378, %p379
      %p382 = scmp.ne.s32.totalorder %s365, %s381
      %p383 = scmp.eq.s32.totalorder %s39, 0
      %p384 = por %p382, %p383
      %s385 = ssub.s32 %s33, %s40
      %p386 = scmp.eq.s32.totalorder %s385, 0
      %s388 = sadd.s32 %s387, 1
      %s389 = scalar_select %p386, %s387, %s388
      %p392 = pneg %p386
      %p393 = scmp.eq.s32.totalorder %s33, 3
      %p394 = por %p392, %p393
      %p395 = scmp.ne.s32.totalorder %s387, %s390
      %p396 = scmp.eq.s32.totalorder %s33, 0
      %p397 = por %p395, %p396
      %p398 = scmp.ne.s32.totalorder %s387, %s390
      %p399 = scmp.eq.s32.totalorder %s38, 3
      %p400 = por %p398, %p399
      %p401 = scmp.ne.s32.totalorder %s390, %s391
      %p402 = scmp.eq.s32.totalorder %s38, 0
      %p403 = por %p401, %p402
      %p404 = scmp.ne.s32.totalorder %s390, %s391
      %p405 = scmp.eq.s32.totalorder %s39, 3
      %p406 = por %p404, %p405
      %p408 = scmp.ne.s32.totalorder %s391, %s407
      %p409 = scmp.eq.s32.totalorder %s39, 0
      %p410 = por %p408, %p409
      %s411 = ssub.s32 %s33, %s40
      %p412 = scmp.eq.s32.totalorder %s411, 0
      %s414 = sadd.s32 %s413, 1
      %s415 = scalar_select %p412, %s413, %s414
      %p418 = pneg %p412
      %p419 = scmp.eq.s32.totalorder %s33, 3
      %p420 = por %p418, %p419
      %p421 = scmp.ne.s32.totalorder %s413, %s416
      %p422 = scmp.eq.s32.totalorder %s33, 0
      %p423 = por %p421, %p422
      %p424 = scmp.ne.s32.totalorder %s413, %s416
      %p425 = scmp.eq.s32.totalorder %s38, 3
      %p426 = por %p424, %p425
      %p427 = scmp.ne.s32.totalorder %s416, %s417
      %p428 = scmp.eq.s32.totalorder %s38, 0
      %p429 = por %p427, %p428
      %p430 = scmp.ne.s32.totalorder %s416, %s417
      %p431 = scmp.eq.s32.totalorder %s39, 3
      %p432 = por %p430, %p431
      %p434 = scmp.ne.s32.totalorder %s417, %s433
      %p435 = scmp.eq.s32.totalorder %s39, 0
      %p436 = por %p434, %p435
      %s437 = ssub.s32 %s33, %s40
      %p438 = scmp.eq.s32.totalorder %s437, 0
      %s440 = sadd.s32 %s439, 1
      %s441 = scalar_select %p438, %s439, %s440
      %p444 = pneg %p438
      %p445 = scmp.eq.s32.totalorder %s33, 3
      %p446 = por %p444, %p445
      %p447 = scmp.ne.s32.totalorder %s439, %s442
      %p448 = scmp.eq.s32.totalorder %s33, 0
      %p449 = por %p447, %p448
      %p450 = scmp.ne.s32.totalorder %s439, %s442
      %p451 = scmp.eq.s32.totalorder %s38, 3
      %p452 = por %p450, %p451
      %p453 = scmp.ne.s32.totalorder %s442, %s443
      %p454 = scmp.eq.s32.totalorder %s38, 0
      %p455 = por %p453, %p454
      %p456 = scmp.ne.s32.totalorder %s442, %s443
      %p457 = scmp.eq.s32.totalorder %s39, 3
      %p458 = por %p456, %p457
      %p460 = scmp.ne.s32.totalorder %s443, %s459
      %p461 = scmp.eq.s32.totalorder %s39, 0
      %p462 = por %p460, %p461
      %s463 = ssub.s32 %s33, %s40
      %p464 = scmp.eq.s32.totalorder %s463, 0
      %s466 = sadd.s32 %s465, 1
      %s467 = scalar_select %p464, %s465, %s466
      %p470 = pneg %p464
      %p471 = scmp.eq.s32.totalorder %s33, 3
      %p472 = por %p470, %p471
      %p473 = scmp.ne.s32.totalorder %s465, %s468
      %p474 = scmp.eq.s32.totalorder %s33, 0
      %p475 = por %p473, %p474
      %p476 = scmp.ne.s32.totalorder %s465, %s468
      %p477 = scmp.eq.s32.totalorder %s38, 3
      %p478 = por %p476, %p477
      %p479 = scmp.ne.s32.totalorder %s468, %s469
      %p480 = scmp.eq.s32.totalorder %s38, 0
      %p481 = por %p479, %p480
      %p482 = scmp.ne.s32.totalorder %s468, %s469
      %p483 = scmp.eq.s32.totalorder %s39, 3
      %p484 = por %p482, %p483
      %p486 = scmp.ne.s32.totalorder %s469, %s485
      %p487 = scmp.eq.s32.totalorder %s39, 0
      %p488 = por %p486, %p487
      %s489 = ssub.s32 %s33, %s40
      %p490 = scmp.eq.s32.totalorder %s489, 0
      %s492 = sadd.s32 %s491, 1
      %s493 = scalar_select %p490, %s491, %s492
      %p496 = pneg %p490
      %p497 = scmp.eq.s32.totalorder %s33, 3
      %p498 = por %p496, %p497
      %p499 = scmp.ne.s32.totalorder %s491, %s494
      %p500 = scmp.eq.s32.totalorder %s33, 0
      %p501 = por %p499, %p500
      %p502 = scmp.ne.s32.totalorder %s491, %s494
      %p503 = scmp.eq.s32.totalorder %s38, 3
      %p504 = por %p502, %p503
      %p505 = scmp.ne.s32.totalorder %s494, %s495
      %p506 = scmp.eq.s32.totalorder %s38, 0
      %p507 = por %p505, %p506
      %p508 = scmp.ne.s32.totalorder %s494, %s495
      %p509 = scmp.eq.s32.totalorder %s39, 3
      %p510 = por %p508, %p509
      %p512 = scmp.ne.s32.totalorder %s495, %s511
      %p513 = scmp.eq.s32.totalorder %s39, 0
      %p514 = por %p512, %p513
      %s515 = ssub.s32 %s33, %s40
      %p516 = scmp.eq.s32.totalorder %s515, 0
      %s518 = sadd.s32 %s517, 1
      %s519 = scalar_select %p516, %s517, %s518
      %p522 = pneg %p516
      %p523 = scmp.eq.s32.totalorder %s33, 3
      %p524 = por %p522, %p523
      %p525 = scmp.ne.s32.totalorder %s517, %s520
      %p526 = scmp.eq.s32.totalorder %s33, 0
      %p527 = por %p525, %p526
      %p528 = scmp.ne.s32.totalorder %s517, %s520
      %p529 = scmp.eq.s32.totalorder %s38, 3
      %p530 = por %p528, %p529
      %p531 = scmp.ne.s32.totalorder %s520, %s521
      %p532 = scmp.eq.s32.totalorder %s38, 0
      %p533 = por %p531, %p532
      %p534 = scmp.ne.s32.totalorder %s520, %s521
      %p535 = scmp.eq.s32.totalorder %s39, 3
      %p536 = por %p534, %p535
      %p538 = scmp.ne.s32.totalorder %s521, %s537
      %p539 = scmp.eq.s32.totalorder %s39, 0
      %p540 = por %p538, %p539
      %s542 = sadd.s32 %s541, 1
      %p545 = scmp.eq.s32.totalorder %s33, 3
      %p546 = scmp.ne.s32.totalorder %s541, %s543
      %p547 = scmp.eq.s32.totalorder %s33, 0
      %p548 = por %p546, %p547
      %p549 = scmp.ne.s32.totalorder %s541, %s543
      %p550 = scmp.eq.s32.totalorder %s38, 3
      %p551 = por %p549, %p550
      %p552 = scmp.ne.s32.totalorder %s543, %s544
      %p553 = scmp.eq.s32.totalorder %s38, 0
      %p554 = por %p552, %p553
      %p555 = scmp.ne.s32.totalorder %s543, %s544
      %p556 = scmp.eq.s32.totalorder %s39, 3
      %p557 = por %p555, %p556
      %p559 = scmp.ne.s32.totalorder %s544, %s558
      %p560 = scmp.eq.s32.totalorder %s39, 0
      %p561 = por %p559, %p560
      %s563 = sadd.s32 %s562, 1
      %p566 = scmp.eq.s32.totalorder %s33, 3
      %p567 = scmp.ne.s32.totalorder %s562, %s564
      %p568 = scmp.eq.s32.totalorder %s33, 0
      %p569 = por %p567, %p568
      %p570 = scmp.ne.s32.totalorder %s562, %s564
      %p571 = scmp.eq.s32.totalorder %s38, 3
      %p572 = por %p570, %p571
      %p573 = scmp.ne.s32.totalorder %s564, %s565
      %p574 = scmp.eq.s32.totalorder %s38, 0
      %p575 = por %p573, %p574
      %p576 = scmp.ne.s32.totalorder %s564, %s565
      %p577 = scmp.eq.s32.totalorder %s39, 3
      %p578 = por %p576, %p577
      %p580 = scmp.ne.s32.totalorder %s565, %s579
      %p581 = scmp.eq.s32.totalorder %s39, 0
      %p582 = por %p580, %p581
      %s584 = sadd.s32 %s583, 1
      %p587 = scmp.eq.s32.totalorder %s33, 3
      %p588 = scmp.ne.s32.totalorder %s583, %s585
      %p589 = scmp.eq.s32.totalorder %s33, 0
      %p590 = por %p588, %p589
      %p591 = scmp.ne.s32.totalorder %s583, %s585
      %p592 = scmp.eq.s32.totalorder %s38, 3
      %p593 = por %p591, %p592
      %p594 = scmp.ne.s32.totalorder %s585, %s586
      %p595 = scmp.eq.s32.totalorder %s38, 0
      %p596 = por %p594, %p595
      %p597 = scmp.ne.s32.totalorder %s585, %s586
      %p598 = scmp.eq.s32.totalorder %s39, 3
      %p599 = por %p597, %p598
      %p601 = scmp.ne.s32.totalorder %s586, %s600
      %p602 = scmp.eq.s32.totalorder %s39, 0
      %p603 = por %p601, %p602
      %s605 = sadd.s32 %s604, 1
      %p608 = scmp.eq.s32.totalorder %s33, 3
      %p609 = scmp.ne.s32.totalorder %s604, %s606
      %p610 = scmp.eq.s32.totalorder %s33, 0
      %p611 = por %p609, %p610
      %p612 = scmp.ne.s32.totalorder %s604, %s606
      %p613 = scmp.eq.s32.totalorder %s38, 3
      %p614 = por %p612, %p613
      %p615 = scmp.ne.s32.totalorder %s606, %s607
      %p616 = scmp.eq.s32.totalorder %s38, 0
      %p617 = por %p615, %p616
      %p618 = scmp.ne.s32.totalorder %s606, %s607
      %p619 = scmp.eq.s32.totalorder %s39, 3
      %p620 = por %p618, %p619
      %p622 = scmp.ne.s32.totalorder %s607, %s621
      %p623 = scmp.eq.s32.totalorder %s39, 0
      %p624 = por %p622, %p623
      %s626 = sadd.s32 %s625, 1
      %p629 = scmp.eq.s32.totalorder %s33, 3
      %p630 = scmp.ne.s32.totalorder %s625, %s627
      %p631 = scmp.eq.s32.totalorder %s33, 0
      %p632 = por %p630, %p631
      %p633 = scmp.ne.s32.totalorder %s625, %s627
      %p634 = scmp.eq.s32.totalorder %s38, 3
      %p635 = por %p633, %p634
      %p636 = scmp.ne.s32.totalorder %s627, %s628
      %p637 = scmp.eq.s32.totalorder %s38, 0
      %p638 = por %p636, %p637
      %p639 = scmp.ne.s32.totalorder %s627, %s628
      %p640 = scmp.eq.s32.totalorder %s39, 3
      %p641 = por %p639, %p640
      %p643 = scmp.ne.s32.totalorder %s628, %s642
      %p644 = scmp.eq.s32.totalorder %s39, 0
      %p645 = por %p643, %p644
      %s647 = sadd.s32 %s646, 1
      %p650 = scmp.eq.s32.totalorder %s33, 3
      %p651 = scmp.ne.s32.totalorder %s646, %s648
      %p652 = scmp.eq.s32.totalorder %s33, 0
      %p653 = por %p651, %p652
      %p654 = scmp.ne.s32.totalorder %s646, %s648
      %p655 = scmp.eq.s32.totalorder %s38, 3
      %p656 = por %p654, %p655
      %p657 = scmp.ne.s32.totalorder %s648, %s649
      %p658 = scmp.eq.s32.totalorder %s38, 0
      %p659 = por %p657, %p658
      %p660 = scmp.ne.s32.totalorder %s648, %s649
      %p661 = scmp.eq.s32.totalorder %s39, 3
      %p662 = por %p660, %p661
      %p664 = scmp.ne.s32.totalorder %s649, %s663
      %p665 = scmp.eq.s32.totalorder %s39, 0
      %p666 = por %p664, %p665
      %s668 = sadd.s32 %s667, 1
      %p671 = scmp.eq.s32.totalorder %s33, 3
      %p672 = scmp.ne.s32.totalorder %s667, %s669
      %p673 = scmp.eq.s32.totalorder %s33, 0
      %p674 = por %p672, %p673
      %p675 = scmp.ne.s32.totalorder %s667, %s669
      %p676 = scmp.eq.s32.totalorder %s38, 3
      %p677 = por %p675, %p676
      %p678 = scmp.ne.s32.totalorder %s669, %s670
      %p679 = scmp.eq.s32.totalorder %s38, 0
      %p680 = por %p678, %p679
      %p681 = scmp.ne.s32.totalorder %s669, %s670
      %p682 = scmp.eq.s32.totalorder %s39, 3
      %p683 = por %p681, %p682
      %p685 = scmp.ne.s32.totalorder %s670, %s684
      %p686 = scmp.eq.s32.totalorder %s39, 0
      %p687 = por %p685, %p686
      %p688 = scmp.le.s32.totalorder 1, %s33
      %p689 = scmp.lt.s32.totalorder %s33, 5
      %p690 = pnand %p688, %p689
      %p691 = pneg %p690
      // Predicated region
      $region9: #{tpu_custom_call.1} parent=5 // pred_check
        _
      $region10: #{tpu_custom_call.1} parent=5 // pred_check_branch
        %693 = sbr.rel (%p690) target = $region12
      $region11: #{tpu_custom_call.1} parent=5 // pred_region
        %s694 = ssub.s32 %s33, 1
        // Predicated region
        $region13: #{tpu_custom_call.1} parent=11 // pred_check
          %p695 = pneg %p54
        $region14: #{tpu_custom_call.1} parent=11 // pred_check_branch
          %697 = sbr.rel (%p695) target = $region16
        $region15: #{tpu_custom_call.1} parent=11 // pred_region
          _
        $region16: #{tpu_custom_call.1} parent=11 // pred_fallthru
          _
        // Predicated region
        $region17: #{tpu_custom_call.1} parent=11 // pred_check
          %p698 = pneg %p75
        $region18: #{tpu_custom_call.1} parent=11 // pred_check_branch
          %700 = sbr.rel (%p698) target = $region20
        $region19: #{tpu_custom_call.1} parent=11 // pred_region
          _
        $region20: #{tpu_custom_call.1} parent=11 // pred_fallthru
          _
        // Predicated region
        $region21: #{tpu_custom_call.1} parent=11 // pred_check
          %p701 = pneg %p96
        $region22: #{tpu_custom_call.1} parent=11 // pred_check_branch
          %703 = sbr.rel (%p701) target = $region24
        $region23: #{tpu_custom_call.1} parent=11 // pred_region
          _
        $region24: #{tpu_custom_call.1} parent=11 // pred_fallthru
          _
        // Predicated region
        $region25: #{tpu_custom_call.1} parent=11 // pred_check
          %p704 = pneg %p117
        $region26: #{tpu_custom_call.1} parent=11 // pred_check_branch
          %706 = sbr.rel (%p704) target = $region28
        $region27: #{tpu_custom_call.1} parent=11 // pred_region
          _
        $region28: #{tpu_custom_call.1} parent=11 // pred_fallthru
          _
        // Predicated region
        $region29: #{tpu_custom_call.1} parent=11 // pred_check
          %p707 = pneg %p554
        $region30: #{tpu_custom_call.1} parent=11 // pred_check_branch
          %709 = sbr.rel (%p707) target = $region32
        $region31: #{tpu_custom_call.1} parent=11 // pred_region
          _
        $region32: #{tpu_custom_call.1} parent=11 // pred_fallthru
          _
        // Predicated region
        $region33: #{tpu_custom_call.1} parent=11 // pred_check
          %p710 = pneg %p575
        $region34: #{tpu_custom_call.1} parent=11 // pred_check_branch
          %712 = sbr.rel (%p710) target = $region36
        $region35: #{tpu_custom_call.1} parent=11 // pred_region
          _
        $region36: #{tpu_custom_call.1} parent=11 // pred_fallthru
          _
        // Predicated region
        $region37: #{tpu_custom_call.1} parent=11 // pred_check
          %p713 = pneg %p596
        $region38: #{tpu_custom_call.1} parent=11 // pred_check_branch
          %715 = sbr.rel (%p713) target = $region40
        $region39: #{tpu_custom_call.1} parent=11 // pred_region
          _
        $region40: #{tpu_custom_call.1} parent=11 // pred_fallthru
          _
        // Predicated region
        $region41: #{tpu_custom_call.1} parent=11 // pred_check
          %p716 = pneg %p617
        $region42: #{tpu_custom_call.1} parent=11 // pred_check_branch
          %718 = sbr.rel (%p716) target = $region44
        $region43: #{tpu_custom_call.1} parent=11 // pred_region
          _
        $region44: #{tpu_custom_call.1} parent=11 // pred_fallthru
          _
        // Predicated region
        $region45: #{tpu_custom_call.1} parent=11 // pred_check
          %p719 = pneg %p638
        $region46: #{tpu_custom_call.1} parent=11 // pred_check_branch
          %721 = sbr.rel (%p719) target = $region48
        $region47: #{tpu_custom_call.1} parent=11 // pred_region
          _
        $region48: #{tpu_custom_call.1} parent=11 // pred_fallthru
          _
        // Predicated region
        $region49: #{tpu_custom_call.1} parent=11 // pred_check
          %p722 = pneg %p659
        $region50: #{tpu_custom_call.1} parent=11 // pred_check_branch
          %724 = sbr.rel (%p722) target = $region52
        $region51: #{tpu_custom_call.1} parent=11 // pred_region
          _
        $region52: #{tpu_custom_call.1} parent=11 // pred_fallthru
          _
      $region12: #{tpu_custom_call.1} parent=5 // pred_fallthru
        _
      %p725 = scmp.lt.s32.totalorder %s33, 4
      // Predicated region
      $region53: #{tpu_custom_call.1} parent=5 // pred_check
        %p726 = pneg %p725
      $region54: #{tpu_custom_call.1} parent=5 // pred_check_branch
        %728 = sbr.rel (%p726) target = $region56
      $region55: #{tpu_custom_call.1} parent=5 // pred_region
        // Predicated region
        $region57: #{tpu_custom_call.1} parent=55 // pred_check
          %p729 = pneg %p137
        $region58: #{tpu_custom_call.1} parent=55 // pred_check_branch
          %731 = sbr.rel (%p729) target = $region60
        $region59: #{tpu_custom_call.1} parent=55 // pred_region
          %p732 = scmp.lt.s32.totalorder %s33, 3
          %s733 = scalar_select %p732, %s33, 3
          %s734 = smul.addr %s733, 8
          %s735 = smul.addr %s734, 8
          %s736 = scalar_lea.vmem %s4, %s735
        $region60: #{tpu_custom_call.1} parent=55 // pred_fallthru
          _
        // Predicated region
        $region61: #{tpu_custom_call.1} parent=55 // pred_check
          %p737 = pneg %p163
        $region62: #{tpu_custom_call.1} parent=55 // pred_check_branch
          %739 = sbr.rel (%p737) target = $region64
        $region63: #{tpu_custom_call.1} parent=55 // pred_region
          %p740 = scmp.lt.s32.totalorder %s33, 3
          %s741 = scalar_select %p740, %s33, 3
          %s742 = scalar_lea.vmem %s5, %s741
        $region64: #{tpu_custom_call.1} parent=55 // pred_fallthru
          _
        // Predicated region
        $region65: #{tpu_custom_call.1} parent=55 // pred_check
          %p743 = pneg %p189
        $region66: #{tpu_custom_call.1} parent=55 // pred_check_branch
          %745 = sbr.rel (%p743) target = $region68
        $region67: #{tpu_custom_call.1} parent=55 // pred_region
          %p746 = scmp.lt.s32.totalorder %s33, 3
          %s747 = scalar_select %p746, %s33, 3
          %s748 = smul.addr %s747, 8
          %s749 = smul.addr %s748, 8
          %s750 = scalar_lea.vmem %s6, %s749
        $region68: #{tpu_custom_call.1} parent=55 // pred_fallthru
          _
        // Predicated region
        $region69: #{tpu_custom_call.1} parent=55 // pred_check
          %p751 = pneg %p215
        $region70: #{tpu_custom_call.1} parent=55 // pred_check_branch
          %753 = sbr.rel (%p751) target = $region72
        $region71: #{tpu_custom_call.1} parent=55 // pred_region
          %p754 = scmp.lt.s32.totalorder %s33, 3
          %s755 = scalar_select %p754, %s33, 3
          %s756 = scalar_lea.vmem %s7, %s755
        $region72: #{tpu_custom_call.1} parent=55 // pred_fallthru
          _
        // Predicated region
        $region73: #{tpu_custom_call.1} parent=55 // pred_check
          %p757 = pneg %p241
        $region74: #{tpu_custom_call.1} parent=55 // pred_check_branch
          %759 = sbr.rel (%p757) target = $region76
        $region75: #{tpu_custom_call.1} parent=55 // pred_region
          %p760 = scmp.lt.s32.totalorder %s33, 3
          %s761 = scalar_select %p760, %s33, 3
          %s762 = smul.addr %s761, 8
          %s763 = smul.addr %s762, 8
          %s764 = scalar_lea.vmem %s8, %s763
        $region76: #{tpu_custom_call.1} parent=55 // pred_fallthru
          _
        // Predicated region
        $region77: #{tpu_custom_call.1} parent=55 // pred_check
          %p765 = pneg %p267
        $region78: #{tpu_custom_call.1} parent=55 // pred_check_branch
          %767 = sbr.rel (%p765) target = $region80
        $region79: #{tpu_custom_call.1} parent=55 // pred_region
          %p768 = scmp.lt.s32.totalorder %s33, 3
          %s769 = scalar_select %p768, %s33, 3
          %s770 = scalar_lea.vmem %s9, %s769
        $region80: #{tpu_custom_call.1} parent=55 // pred_fallthru
          _
        // Predicated region
        $region81: #{tpu_custom_call.1} parent=55 // pred_check
          %p771 = pneg %p293
        $region82: #{tpu_custom_call.1} parent=55 // pred_check_branch
          %773 = sbr.rel (%p771) target = $region84
        $region83: #{tpu_custom_call.1} parent=55 // pred_region
          %p774 = scmp.lt.s32.totalorder %s33, 3
          %s775 = scalar_select %p774, %s33, 3
          %s776 = smul.addr %s775, 8
          %s777 = smul.addr %s776, 8
          %s778 = scalar_lea.vmem %s10, %s777
        $region84: #{tpu_custom_call.1} parent=55 // pred_fallthru
          _
        // Predicated region
        $region85: #{tpu_custom_call.1} parent=55 // pred_check
          %p779 = pneg %p319
        $region86: #{tpu_custom_call.1} parent=55 // pred_check_branch
          %781 = sbr.rel (%p779) target = $region88
        $region87: #{tpu_custom_call.1} parent=55 // pred_region
          %p782 = scmp.lt.s32.totalorder %s33, 3
          %s783 = scalar_select %p782, %s33, 3
          %s784 = scalar_lea.vmem %s11, %s783
        $region88: #{tpu_custom_call.1} parent=55 // pred_fallthru
          _
        // Predicated region
        $region89: #{tpu_custom_call.1} parent=55 // pred_check
          %p785 = pneg %p345
        $region90: #{tpu_custom_call.1} parent=55 // pred_check_branch
          %787 = sbr.rel (%p785) target = $region92
        $region91: #{tpu_custom_call.1} parent=55 // pred_region
          %p788 = scmp.lt.s32.totalorder %s33, 3
          %s789 = scalar_select %p788, %s33, 3
          %s790 = scalar_lea.vmem %s12, %s789
        $region92: #{tpu_custom_call.1} parent=55 // pred_fallthru
          _
        // Predicated region
        $region93: #{tpu_custom_call.1} parent=55 // pred_check
          %p791 = pneg %p371
        $region94: #{tpu_custom_call.1} parent=55 // pred_check_branch
          %793 = sbr.rel (%p791) target = $region96
        $region95: #{tpu_custom_call.1} parent=55 // pred_region
          %p794 = scmp.lt.s32.totalorder %s33, 3
          %s795 = scalar_select %p794, %s33, 3
          %s796 = scalar_lea.vmem %s13, %s795
        $region96: #{tpu_custom_call.1} parent=55 // pred_fallthru
          _
        // Predicated region
        $region97: #{tpu_custom_call.1} parent=55 // pred_check
          %p797 = pneg %p397
        $region98: #{tpu_custom_call.1} parent=55 // pred_check_branch
          %799 = sbr.rel (%p797) target = $region100
        $region99: #{tpu_custom_call.1} parent=55 // pred_region
          %p800 = scmp.lt.s32.totalorder %s33, 3
          %s801 = scalar_select %p800, %s33, 3
          %s802 = smul.addr %s801, 128
          %s803 = smul.addr %s802, 4
          %s804 = scalar_lea.vmem %s14, %s803
        $region100: #{tpu_custom_call.1} parent=55 // pred_fallthru
          _
        // Predicated region
        $region101: #{tpu_custom_call.1} parent=55 // pred_check
          %p805 = pneg %p423
        $region102: #{tpu_custom_call.1} parent=55 // pred_check_branch
          %807 = sbr.rel (%p805) target = $region104
        $region103: #{tpu_custom_call.1} parent=55 // pred_region
          %p808 = scmp.lt.s32.totalorder %s33, 3
          %s809 = scalar_select %p808, %s33, 3
          %s810 = smul.addr %s809, 16
          %s811 = scalar_lea.vmem %s15, %s810
        $region104: #{tpu_custom_call.1} parent=55 // pred_fallthru
          _
        // Predicated region
        $region105: #{tpu_custom_call.1} parent=55 // pred_check
          %p812 = pneg %p449
        $region106: #{tpu_custom_call.1} parent=55 // pred_check_branch
          %814 = sbr.rel (%p812) target = $region108
        $region107: #{tpu_custom_call.1} parent=55 // pred_region
          %p815 = scmp.lt.s32.totalorder %s33, 3
          %s816 = scalar_select %p815, %s33, 3
          %s817 = smul.addr %s816, 256
          %s818 = smul.addr %s817, 4
          %s819 = scalar_lea.vmem %s16, %s818
        $region108: #{tpu_custom_call.1} parent=55 // pred_fallthru
          _
        // Predicated region
        $region109: #{tpu_custom_call.1} parent=55 // pred_check
          %p820 = pneg %p475
        $region110: #{tpu_custom_call.1} parent=55 // pred_check_branch
          %822 = sbr.rel (%p820) target = $region112
        $region111: #{tpu_custom_call.1} parent=55 // pred_region
          %p823 = scmp.lt.s32.totalorder %s33, 3
          %s824 = scalar_select %p823, %s33, 3
          %s825 = scalar_lea.vmem %s17, %s824
        $region112: #{tpu_custom_call.1} parent=55 // pred_fallthru
          _
        // Predicated region
        $region113: #{tpu_custom_call.1} parent=55 // pred_check
          %p826 = pneg %p501
        $region114: #{tpu_custom_call.1} parent=55 // pred_check_branch
          %828 = sbr.rel (%p826) target = $region116
        $region115: #{tpu_custom_call.1} parent=55 // pred_region
          %p829 = scmp.lt.s32.totalorder %s33, 3
          %s830 = scalar_select %p829, %s33, 3
          %s831 = scalar_lea.vmem %s18, %s830
        $region116: #{tpu_custom_call.1} parent=55 // pred_fallthru
          _
        // Predicated region
        $region117: #{tpu_custom_call.1} parent=55 // pred_check
          %p832 = pneg %p527
        $region118: #{tpu_custom_call.1} parent=55 // pred_check_branch
          %834 = sbr.rel (%p832) target = $region120
        $region119: #{tpu_custom_call.1} parent=55 // pred_region
          %p835 = scmp.lt.s32.totalorder %s33, 3
          %s836 = scalar_select %p835, %s33, 3
          %s837 = scalar_lea.vmem %s19, %s836
        $region120: #{tpu_custom_call.1} parent=55 // pred_fallthru
          _
      $region56: #{tpu_custom_call.1} parent=5 // pred_fallthru
        _
      %p838 = scmp.le.s32.totalorder 1, %s33
      %p839 = scmp.lt.s32.totalorder %s33, 5
      %p840 = pnand %p838, %p839
      %p841 = pneg %p840
      // Predicated region
      $region121: #{tpu_custom_call.1} parent=5 // pred_check
        _
      $region122: #{tpu_custom_call.1} parent=5 // pred_check_branch
        %843 = sbr.rel (%p840) target = $region124
      $region123: #{tpu_custom_call.1} parent=5 // pred_region
        %s844 = ssub.s32 %s33, 1
        %p845 = pneg %p54
        %p846 = pneg %p51
        %p847 = pneg %p75
        %p848 = pneg %p72
        %p849 = pneg %p96
        %p850 = pneg %p93
        %p851 = pneg %p117
        %p852 = pneg %p114
        %p853 = scmp.lt.s32.totalorder %s38, 3
        %s854 = scalar_select %p853, %s38, 3
        %s855 = smul.addr %s854, 8
        %s856 = smul.addr %s855, 8
        %s857 = scalar_lea.vmem %s4, %s856
        %p858 = pneg %p143
        %p859 = pneg %p140
        %p860 = scmp.lt.s32.totalorder %s38, 3
        %s861 = scalar_select %p860, %s38, 3
        %s862 = scalar_lea.vmem %s5, %s861
        %p863 = pneg %p169
        %p864 = pneg %p166
        %p865 = scmp.lt.s32.totalorder %s38, 3
        %s866 = scalar_select %p865, %s38, 3
        %s867 = smul.addr %s866, 8
        %s868 = smul.addr %s867, 8
        %s869 = scalar_lea.vmem %s6, %s868
        %p870 = pneg %p195
        %p871 = pneg %p192
        %p872 = scmp.lt.s32.totalorder %s38, 3
        %s873 = scalar_select %p872, %s38, 3
        %s874 = scalar_lea.vmem %s7, %s873
        %p875 = pneg %p221
        %p876 = pneg %p218
        %p877 = scmp.lt.s32.totalorder %s38, 3
        %s878 = scalar_select %p877, %s38, 3
        %s879 = smul.addr %s878, 8
        %s880 = smul.addr %s879, 8
        %s881 = scalar_lea.vmem %s8, %s880
        %p882 = pneg %p247
        %p883 = pneg %p244
        %p884 = scmp.lt.s32.totalorder %s38, 3
        %s885 = scalar_select %p884, %s38, 3
        %s886 = scalar_lea.vmem %s9, %s885
        %p887 = pneg %p273
        %p888 = pneg %p270
        %p889 = scmp.lt.s32.totalorder %s38, 3
        %s890 = scalar_select %p889, %s38, 3
        %s891 = smul.addr %s890, 8
        %s892 = smul.addr %s891, 8
        %s893 = scalar_lea.vmem %s10, %s892
        %p894 = pneg %p299
        %p895 = pneg %p296
        %p896 = scmp.lt.s32.totalorder %s38, 3
        %s897 = scalar_select %p896, %s38, 3
        %s898 = scalar_lea.vmem %s11, %s897
        %p899 = pneg %p325
        %p900 = pneg %p322
        %p901 = scmp.lt.s32.totalorder %s38, 3
        %s902 = scalar_select %p901, %s38, 3
        %s903 = scalar_lea.vmem %s12, %s902
        %p904 = pneg %p351
        %p905 = pneg %p348
        %p906 = scmp.lt.s32.totalorder %s38, 3
        %s907 = scalar_select %p906, %s38, 3
        %s908 = scalar_lea.vmem %s13, %s907
        %p909 = pneg %p377
        %p910 = pneg %p374
        %p911 = scmp.lt.s32.totalorder %s38, 3
        %s912 = scalar_select %p911, %s38, 3
        %s913 = smul.addr %s912, 128
        %s914 = smul.addr %s913, 4
        %s915 = scalar_lea.vmem %s14, %s914
        %p916 = pneg %p403
        %p917 = pneg %p400
        %p918 = scmp.lt.s32.totalorder %s38, 3
        %s919 = scalar_select %p918, %s38, 3
        %s920 = smul.addr %s919, 16
        %s921 = scalar_lea.vmem %s15, %s920
        %p922 = pneg %p429
        %p923 = pneg %p426
        %p924 = scmp.lt.s32.totalorder %s38, 3
        %s925 = scalar_select %p924, %s38, 3
        %s926 = smul.addr %s925, 256
        %s927 = smul.addr %s926, 4
        %s928 = scalar_lea.vmem %s16, %s927
        %p929 = pneg %p455
        %p930 = pneg %p452
        %p931 = scmp.lt.s32.totalorder %s38, 3
        %s932 = scalar_select %p931, %s38, 3
        %s933 = scalar_lea.vmem %s17, %s932
        %p934 = pneg %p481
        %p935 = pneg %p478
        %p936 = scmp.lt.s32.totalorder %s38, 3
        %s937 = scalar_select %p936, %s38, 3
        %s938 = scalar_lea.vmem %s18, %s937
        %p939 = pneg %p507
        %p940 = pneg %p504
        %p941 = scmp.lt.s32.totalorder %s38, 3
        %s942 = scalar_select %p941, %s38, 3
        %s943 = scalar_lea.vmem %s19, %s942
        %p944 = pneg %p533
        %p945 = pneg %p530
        %p946 = pneg %p554
        %p947 = pneg %p551
        %p948 = pneg %p575
        %p949 = pneg %p572
        %p950 = pneg %p596
        %p951 = pneg %p593
        %p952 = pneg %p617
        %p953 = pneg %p614
        %p954 = pneg %p638
        %p955 = pneg %p635
        %p956 = pneg %p659
        %p957 = pneg %p656
        %p958 = pneg %p680
        %p959 = pneg %p677
        %p960 = scmp.lt.s32.totalorder %s38, 3
        %s961 = scalar_select %p960, %s38, 3
        %s962 = smul.addr %s961, 8
        %s963 = smul.addr %s962, 8
        %s964 = scalar_lea.vmem %s4, %s963
        %p965 = scmp.lt.s32.totalorder %s38, 3
        %s966 = scalar_select %p965, %s38, 3
        %s967 = scalar_lea.vmem %s5, %s966
        %p968 = scmp.lt.s32.totalorder %s38, 3
        %s969 = scalar_select %p968, %s38, 3
        %s970 = smul.addr %s969, 8
        %s971 = smul.addr %s970, 8
        %s972 = scalar_lea.vmem %s6, %s971
        %p973 = scmp.lt.s32.totalorder %s38, 3
        %s974 = scalar_select %p973, %s38, 3
        %s975 = scalar_lea.vmem %s7, %s974
        %p976 = scmp.lt.s32.totalorder %s38, 3
        %s977 = scalar_select %p976, %s38, 3
        %s978 = smul.addr %s977, 8
        %s979 = smul.addr %s978, 8
        %s980 = scalar_lea.vmem %s8, %s979
        %p981 = scmp.lt.s32.totalorder %s38, 3
        %s982 = scalar_select %p981, %s38, 3
        %s983 = scalar_lea.vmem %s9, %s982
        %p984 = scmp.lt.s32.totalorder %s38, 3
        %s985 = scalar_select %p984, %s38, 3
        %s986 = smul.addr %s985, 8
        %s987 = smul.addr %s986, 8
        %s988 = scalar_lea.vmem %s10, %s987
        %p989 = scmp.lt.s32.totalorder %s38, 3
        %s990 = scalar_select %p989, %s38, 3
        %s991 = scalar_lea.vmem %s11, %s990
        %p992 = scmp.lt.s32.totalorder %s38, 3
        %s993 = scalar_select %p992, %s38, 3
        %s994 = scalar_lea.vmem %s12, %s993
        %p995 = scmp.lt.s32.totalorder %s38, 3
        %s996 = scalar_select %p995, %s38, 3
        %s997 = scalar_lea.vmem %s13, %s996
        %p998 = scmp.lt.s32.totalorder %s38, 3
        %s999 = scalar_select %p998, %s38, 3
        %s1000 = smul.addr %s999, 128
        %s1001 = smul.addr %s1000, 4
        %s1002 = scalar_lea.vmem %s14, %s1001
        %p1003 = scmp.lt.s32.totalorder %s38, 3
        %s1004 = scalar_select %p1003, %s38, 3
        %s1005 = smul.addr %s1004, 16
        %s1006 = scalar_lea.vmem %s15, %s1005
        %p1007 = scmp.lt.s32.totalorder %s38, 3
        %s1008 = scalar_select %p1007, %s38, 3
        %s1009 = smul.addr %s1008, 256
        %s1010 = smul.addr %s1009, 4
        %s1011 = scalar_lea.vmem %s16, %s1010
        %p1012 = scmp.lt.s32.totalorder %s38, 3
        %s1013 = scalar_select %p1012, %s38, 3
        %s1014 = scalar_lea.vmem %s17, %s1013
        %p1015 = scmp.lt.s32.totalorder %s38, 3
        %s1016 = scalar_select %p1015, %s38, 3
        %s1017 = scalar_lea.vmem %s18, %s1016
        %p1018 = scmp.lt.s32.totalorder %s38, 3
        %s1019 = scalar_select %p1018, %s38, 3
        %s1020 = scalar_lea.vmem %s19, %s1019
        %p1021 = scmp.eq.s32.totalorder %s38, 0
        // Predicated region
        $region125: #{tpu_custom_call.1} parent=123 // pred_check
          %p1022 = pneg %p1021
        $region126: #{tpu_custom_call.1} parent=123 // pred_check_branch
          %1024 = sbr.rel (%p1022) target = $region128
        $region127: #{tpu_custom_call.1} parent=123 // pred_region
          %v1025 = vld [vmem:[%s0] sm:$0xff]
          %v1026 = vld [vmem:[%s0 + $0x8] sm:$0xff]
          %v1027 = vld [vmem:[%s2] sm:$0xf]
          %v1028 = vld [vmem:[%s3] sm:$0x1]
          %v1030 = vperm.slane %v1028, 0
          %vm1032 = vcmask 31744
          %v1034 = vsel %vm1032, %v1025, 0
          %v1037 = vsel %vm1032, %v1026, 0
          %vm1039 = vcmask 1043456
          %v1041 = vsel %vm1039, %v1027, 0
          %1043 = vmatpush.msra.mxu0 0.0
          %1044 = vmatpush.msra.mxu0 0.0
          %1045 = vmatpush.msra.mxu0 0.0
          %1046 = vmatpush.msra.mxu0 0.0
          %1047 = vmatpush.msra.mxu0 0.0
          %1048 = vmatpush.msra.mxu0 0.0
          %1049 = vmatpush.msra.mxu0 0.0
          %1050 = vmatpush.msra.mxu0 0.0
          %1051 = vmatpush.msra.mxu0 0.0
          %1052 = vmatpush.msra.mxu0 0.0
          %1053 = vmatpush.msra.mxu0 0.0
          %1054 = vmatpush.msra.mxu0 0.0
          %1055 = vmatpush.msra.mxu0 0.0
          %1056 = vmatpush.msra.mxu0 0.0
          %1057 = vmatpush.msra.mxu0 0.0
          %1058 = vmatpush.msra.mxu0 %v1041
          %1059 = vmatmul.f32.gmra.mxu0 %v1034
          %v1060 = vpop.f32.mrf.mxu0
          %v1061 = vadd.f32 %v1030, %v1060
          %1062 = vmatmul.f32.gmra.mxu0 %v1037
          %v1063 = vpop.f32.mrf.mxu0
          %v1064 = vadd.f32 %v1030, %v1063
          %1065 = vdwg.mxu0
          %v1066 = vld [vmem:[%s1] sm:$0xff]
          %v1067 = vld [vmem:[%s1 + $0x8] sm:$0xff]
          %v1068 = vadd.f32 %v1061, %v1066
          %v1069 = vadd.f32 %v1064, %v1067
          %vm1070 = vcmask 523264
          %1071 = vst.msk [vmem:[#allocation2] sm:$0xff] %vm1070, %v1068
          %1072 = vst.msk [vmem:[#allocation2 + $0x8] sm:$0xff] %vm1070, %v1069
        $region128: #{tpu_custom_call.1} parent=123 // pred_fallthru
          _
        %v1073 = vld [vmem:[#allocation2] sm:$0xff]
        %v1074 = vld [vmem:[#allocation2 + $0x8] sm:$0xff]
        %v1075 = vld [vmem:[%s964] sm:$0xff]
        %v1076 = vld [vmem:[%s964 + $0x8] sm:$0xff]
        %v1077 = vld [vmem:[%s964 + $0x10] sm:$0xff]
        %v1078 = vld [vmem:[%s964 + $0x18] sm:$0xff]
        %v1079 = vld [vmem:[%s964 + $0x20] sm:$0xff]
        %v1080 = vld [vmem:[%s964 + $0x28] sm:$0xff]
        %v1081 = vld [vmem:[%s964 + $0x30] sm:$0xff]
        %v1082 = vld [vmem:[%s964 + $0x38] sm:$0xff]
        %v1083 = vld [vmem:[%s967] sm:$0x1]
        %v1085 = vperm.slane %v1083, 0
        %vm1087 = vcmask 523264
        %v1089 = vsel %vm1087, %v1073, 0
        %v1092 = vsel %vm1087, %v1074, 0
        %1094 = vmatpush.msra.mxu0 0.0
        %1095 = vmatpush.msra.mxu0 0.0
        %1096 = vmatpush.msra.mxu0 0.0
        %1097 = vmatpush.msra.mxu0 0.0
        %1098 = vmatpush.msra.mxu0 0.0
        %1099 = vmatpush.msra.mxu0 0.0
        %1100 = vmatpush.msra.mxu0 0.0
        %1101 = vmatpush.msra.mxu0 0.0
        %1102 = vmatpush.msra.mxu0 %v1082
        %1103 = vmatpush.msra.mxu0 %v1081
        %1104 = vmatpush.msra.mxu0 %v1080
        %1105 = vmatpush.msra.mxu0 %v1079
        %1106 = vmatpush.msra.mxu0 %v1078
        %1107 = vmatpush.msra.mxu0 %v1077
        %1108 = vmatpush.msra.mxu0 %v1076
        %1109 = vmatpush.msra.mxu0 %v1075
        %1110 = vmatmul.f32.gmra.mxu0 %v1089
        %v1111 = vpop.f32.mrf.mxu0
        %v1112 = vadd.f32 %v1085, %v1111
        %1113 = vmatmul.f32.gmra.mxu0 %v1092
        %v1114 = vpop.f32.mrf.mxu0
        %v1115 = vadd.f32 %v1085, %v1114
        %1116 = vdwg.mxu0
        %v1117 = vld [vmem:[%s972] sm:$0xff]
        %v1118 = vld [vmem:[%s972 + $0x8] sm:$0xff]
        %v1119 = vld [vmem:[%s972 + $0x10] sm:$0xff]
        %v1120 = vld [vmem:[%s972 + $0x18] sm:$0xff]
        %v1121 = vld [vmem:[%s972 + $0x20] sm:$0xff]
        %v1122 = vld [vmem:[%s972 + $0x28] sm:$0xff]
        %v1123 = vld [vmem:[%s972 + $0x30] sm:$0xff]
        %v1124 = vld [vmem:[%s972 + $0x38] sm:$0xff]
        %v1125 = vld [vmem:[%s975] sm:$0x1]
        %v1127 = vperm.slane %v1125, 0
        %1129 = vmatpush.msra.mxu0 0.0
        %1130 = vmatpush.msra.mxu0 0.0
        %1131 = vmatpush.msra.mxu0 0.0
        %1132 = vmatpush.msra.mxu0 0.0
        %1133 = vmatpush.msra.mxu0 0.0
        %1134 = vmatpush.msra.mxu0 0.0
        %1135 = vmatpush.msra.mxu0 0.0
        %1136 = vmatpush.msra.mxu0 0.0
        %1137 = vmatpush.msra.mxu0 %v1124
        %1138 = vmatpush.msra.mxu0 %v1123
        %1139 = vmatpush.msra.mxu0 %v1122
        %1140 = vmatpush.msra.mxu0 %v1121
        %1141 = vmatpush.msra.mxu0 %v1120
        %1142 = vmatpush.msra.mxu0 %v1119
        %1143 = vmatpush.msra.mxu0 %v1118
        %1144 = vmatpush.msra.mxu0 %v1117
        %1145 = vmatmul.f32.gmra.mxu0 %v1089
        %v1146 = vpop.f32.mrf.mxu0
        %v1147 = vadd.f32 %v1127, %v1146
        %1148 = vmatmul.f32.gmra.mxu0 %v1092
        %v1149 = vpop.f32.mrf.mxu0
        %v1150 = vadd.f32 %v1127, %v1149
        %1151 = vdwg.mxu0
        %v1152 = vld [vmem:[%s980] sm:$0xff]
        %v1153 = vld [vmem:[%s980 + $0x8] sm:$0xff]
        %v1154 = vld [vmem:[%s980 + $0x10] sm:$0xff]
        %v1155 = vld [vmem:[%s980 + $0x18] sm:$0xff]
        %v1156 = vld [vmem:[%s980 + $0x20] sm:$0xff]
        %v1157 = vld [vmem:[%s980 + $0x28] sm:$0xff]
        %v1158 = vld [vmem:[%s980 + $0x30] sm:$0xff]
        %v1159 = vld [vmem:[%s980 + $0x38] sm:$0xff]
        %v1160 = vld [vmem:[%s983] sm:$0x1]
        %v1162 = vperm.slane %v1160, 0
        %1164 = vmatpush.msra.mxu0 0.0
        %1165 = vmatpush.msra.mxu0 0.0
        %1166 = vmatpush.msra.mxu0 0.0
        %1167 = vmatpush.msra.mxu0 0.0
        %1168 = vmatpush.msra.mxu0 0.0
        %1169 = vmatpush.msra.mxu0 0.0
        %1170 = vmatpush.msra.mxu0 0.0
        %1171 = vmatpush.msra.mxu0 0.0
        %1172 = vmatpush.msra.mxu0 %v1159
        %1173 = vmatpush.msra.mxu0 %v1158
        %1174 = vmatpush.msra.mxu0 %v1157
        %1175 = vmatpush.msra.mxu0 %v1156
        %1176 = vmatpush.msra.mxu0 %v1155
        %1177 = vmatpush.msra.mxu0 %v1154
        %1178 = vmatpush.msra.mxu0 %v1153
        %1179 = vmatpush.msra.mxu0 %v1152
        %1180 = vmatmul.f32.gmra.mxu0 %v1089
        %v1181 = vpop.f32.mrf.mxu0
        %v1182 = vadd.f32 %v1162, %v1181
        %1183 = vmatmul.f32.gmra.mxu0 %v1092
        %v1184 = vpop.f32.mrf.mxu0
        %v1185 = vadd.f32 %v1162, %v1184
        %1186 = vdwg.mxu0
        %vm1187 = vcmask 130048
        %v1189 = vsel %vm1187, %v1112, 0
        %v1192 = vsel %vm1187, %v1147, 0
        %1194 = vmatpush.xpose.msra.mxu0 0.0
        %1195 = vmatpush.xpose.msra.mxu0 0.0
        %1196 = vmatpush.xpose.msra.mxu0 0.0
        %1197 = vmatpush.xpose.msra.mxu0 0.0
        %1198 = vmatpush.xpose.msra.mxu0 0.0
        %1199 = vmatpush.xpose.msra.mxu0 0.0
        %1200 = vmatpush.xpose.msra.mxu0 0.0
        %1201 = vmatpush.xpose.msra.mxu0 0.0
        %1202 = vmatpush.xpose.msra.mxu0 0.0
        %1203 = vmatpush.xpose.msra.mxu0 0.0
        %1204 = vmatpush.xpose.msra.mxu0 0.0
        %1205 = vmatpush.xpose.msra.mxu0 0.0
        %1206 = vmatpush.xpose.msra.mxu0 0.0
        %1207 = vmatpush.xpose.msra.mxu0 0.0
        %1208 = vmatpush.xpose.msra.mxu0 0.0
        %1209 = vmatpush.xpose.msra.mxu0 %v1192
        %1210 = vmatmul.f32.gmra.mxu0 %v1189
        %v1211 = vpop.f32.mrf.mxu0
        %v1212 = vadd.f32 0.0, %v1211
        %1213 = vdwg.mxu0
        %v1214 = vmul.f32 %v1212, 0.25
        %vm1215 = vcmask 64512
        %v1216 = vsel %vm1215, %v1214, -inf
        %1217 = vmax.xlane.f32.xlu0 %v1216
        %v1218 = vpop.xlane.xlu0 %1217
        %v1219 = vsub.f32 %v1214, %v1218
        %v1220 = vmul.f32 %v1219, 1.442695
        %v1221 = vpow.pop %v1220
        %v1222 = vsel %vm1215, %v1221, 0.0
        %1223 = vadd.xlane.f32.xlu0 %v1222
        %v1224 = vpop.xlane.xlu0 %1223
        %v1225 = vrcp.pop %v1224
        %v1226 = vmul.f32 %v1221, %v1225
        %v1228 = vsel %vm1215, %v1226, 0
        %1230 = vmatpush.msra.mxu0 0.0
        %1231 = vmatpush.msra.mxu0 0.0
        %1232 = vmatpush.msra.mxu0 0.0
        %1233 = vmatpush.msra.mxu0 0.0
        %1234 = vmatpush.msra.mxu0 0.0
        %1235 = vmatpush.msra.mxu0 0.0
        %1236 = vmatpush.msra.mxu0 0.0
        %1237 = vmatpush.msra.mxu0 0.0
        %1238 = vmatpush.msra.mxu0 0.0
        %1239 = vmatpush.msra.mxu0 0.0
        %1240 = vmatpush.msra.mxu0 0.0
        %1241 = vmatpush.msra.mxu0 0.0
        %1242 = vmatpush.msra.mxu0 0.0
        %1243 = vmatpush.msra.mxu0 0.0
        %1244 = vmatpush.msra.mxu0 0.0
        %1245 = vmatpush.msra.mxu0 %v1182
        %1246 = vmatmul.f32.gmra.mxu0 %v1228
        %v1247 = vpop.f32.mrf.mxu0
        %v1248 = vadd.f32 0.0, %v1247
        %1249 = vdwg.mxu0
        %1250 = vst.msk [vmem:[#allocation3] sm:$0xff] %vm1187, %v1248
        %1251 = vrot.lane.b32.xlu0 %v1112, 112
        %v1252 = vpop.permute.xlu0 %1251
        %1253 = vrot.lane.b32.xlu0 %v1147, 112
        %v1254 = vpop.permute.xlu0 %1253
        %v1255 = vsel %vm1187, %v1252, 0
        %v1257 = vsel %vm1187, %v1254, 0
        %1259 = vmatpush.xpose.msra.mxu0 0.0
        %1260 = vmatpush.xpose.msra.mxu0 0.0
        %1261 = vmatpush.xpose.msra.mxu0 0.0
        %1262 = vmatpush.xpose.msra.mxu0 0.0
        %1263 = vmatpush.xpose.msra.mxu0 0.0
        %1264 = vmatpush.xpose.msra.mxu0 0.0
        %1265 = vmatpush.xpose.msra.mxu0 0.0
        %1266 = vmatpush.xpose.msra.mxu0 0.0
        %1267 = vmatpush.xpose.msra.mxu0 0.0
        %1268 = vmatpush.xpose.msra.mxu0 0.0
        %1269 = vmatpush.xpose.msra.mxu0 0.0
        %1270 = vmatpush.xpose.msra.mxu0 0.0
        %1271 = vmatpush.xpose.msra.mxu0 0.0
        %1272 = vmatpush.xpose.msra.mxu0 0.0
        %1273 = vmatpush.xpose.msra.mxu0 0.0
        %1274 = vmatpush.xpose.msra.mxu0 %v1257
        %1275 = vmatmul.f32.gmra.mxu0 %v1255
        %v1276 = vpop.f32.mrf.mxu0
        %v1277 = vadd.f32 0.0, %v1276
        %1278 = vdwg.mxu0
        %v1279 = vmul.f32 %v1277, 0.25
        %v1280 = vsel %vm1215, %v1279, -inf
        %1281 = vmax.xlane.f32.xlu0 %v1280
        %v1282 = vpop.xlane.xlu0 %1281
        %v1283 = vsub.f32 %v1279, %v1282
        %v1284 = vmul.f32 %v1283, 1.442695
        %v1285 = vpow.pop %v1284
        %v1286 = vsel %vm1215, %v1285, 0.0
        %1287 = vadd.xlane.f32.xlu0 %v1286
        %v1288 = vpop.xlane.xlu0 %1287
        %v1289 = vrcp.pop %v1288
        %v1290 = vmul.f32 %v1285, %v1289
        %1292 = vrot.lane.b32.xlu0 %v1182, 112
        %v1293 = vpop.permute.xlu0 %1292
        %v1296 = vsel %vm1215, %v1290, 0
        %1298 = vmatpush.msra.mxu0 0.0
        %1299 = vmatpush.msra.mxu0 0.0
        %1300 = vmatpush.msra.mxu0 0.0
        %1301 = vmatpush.msra.mxu0 0.0
        %1302 = vmatpush.msra.mxu0 0.0
        %1303 = vmatpush.msra.mxu0 0.0
        %1304 = vmatpush.msra.mxu0 0.0
        %1305 = vmatpush.msra.mxu0 0.0
        %1306 = vmatpush.msra.mxu0 0.0
        %1307 = vmatpush.msra.mxu0 0.0
        %1308 = vmatpush.msra.mxu0 0.0
        %1309 = vmatpush.msra.mxu0 0.0
        %1310 = vmatpush.msra.mxu0 0.0
        %1311 = vmatpush.msra.mxu0 0.0
        %1312 = vmatpush.msra.mxu0 0.0
        %1313 = vmatpush.msra.mxu0 %v1293
        %1314 = vmatmul.f32.gmra.mxu0 %v1296
        %v1315 = vpop.f32.mrf.mxu0
        %v1316 = vadd.f32 0.0, %v1315
        %1317 = vdwg.mxu0
        %1319 = vrot.lane.b32.xlu0 %v1316, 16
        %v1320 = vpop.permute.xlu0 %1319
        %vm1322 = vcmask 261248
        %1323 = vst.msk [vmem:[#allocation3] sm:$0xff] %vm1322, %v1320
        %1324 = vrot.lane.b32.xlu0 %v1112, 96
        %v1325 = vpop.permute.xlu0 %1324
        %1326 = vrot.lane.b32.xlu0 %v1147, 96
        %v1327 = vpop.permute.xlu0 %1326
        %v1328 = vsel %vm1187, %v1325, 0
        %v1330 = vsel %vm1187, %v1327, 0
        %1332 = vmatpush.xpose.msra.mxu0 0.0
        %1333 = vmatpush.xpose.msra.mxu0 0.0
        %1334 = vmatpush.xpose.msra.mxu0 0.0
        %1335 = vmatpush.xpose.msra.mxu0 0.0
        %1336 = vmatpush.xpose.msra.mxu0 0.0
        %1337 = vmatpush.xpose.msra.mxu0 0.0
        %1338 = vmatpush.xpose.msra.mxu0 0.0
        %1339 = vmatpush.xpose.msra.mxu0 0.0
        %1340 = vmatpush.xpose.msra.mxu0 0.0
        %1341 = vmatpush.xpose.msra.mxu0 0.0
        %1342 = vmatpush.xpose.msra.mxu0 0.0
        %1343 = vmatpush.xpose.msra.mxu0 0.0
        %1344 = vmatpush.xpose.msra.mxu0 0.0
        %1345 = vmatpush.xpose.msra.mxu0 0.0
        %1346 = vmatpush.xpose.msra.mxu0 0.0
        %1347 = vmatpush.xpose.msra.mxu0 %v1330
        %1348 = vmatmul.f32.gmra.mxu0 %v1328
        %v1349 = vpop.f32.mrf.mxu0
        %v1350 = vadd.f32 0.0, %v1349
        %1351 = vdwg.mxu0
        %v1352 = vmul.f32 %v1350, 0.25
        %v1353 = vsel %vm1215, %v1352, -inf
        %1354 = vmax.xlane.f32.xlu0 %v1353
        %v1355 = vpop.xlane.xlu0 %1354
        %v1356 = vsub.f32 %v1352, %v1355
        %v1357 = vmul.f32 %v1356, 1.442695
        %v1358 = vpow.pop %v1357
        %v1359 = vsel %vm1215, %v1358, 0.0
        %1360 = vadd.xlane.f32.xlu0 %v1359
        %v1361 = vpop.xlane.xlu0 %1360
        %v1362 = vrcp.pop %v1361
        %v1363 = vmul.f32 %v1358, %v1362
        %1364 = vrot.lane.b32.xlu0 %v1182, 96
        %v1365 = vpop.permute.xlu0 %1364
        %v1368 = vsel %vm1215, %v1363, 0
        %1370 = vmatpush.msra.mxu0 0.0
        %1371 = vmatpush.msra.mxu0 0.0
        %1372 = vmatpush.msra.mxu0 0.0
        %1373 = vmatpush.msra.mxu0 0.0
        %1374 = vmatpush.msra.mxu0 0.0
        %1375 = vmatpush.msra.mxu0 0.0
        %1376 = vmatpush.msra.mxu0 0.0
        %1377 = vmatpush.msra.mxu0 0.0
        %1378 = vmatpush.msra.mxu0 0.0
        %1379 = vmatpush.msra.mxu0 0.0
        %1380 = vmatpush.msra.mxu0 0.0
        %1381 = vmatpush.msra.mxu0 0.0
        %1382 = vmatpush.msra.mxu0 0.0
        %1383 = vmatpush.msra.mxu0 0.0
        %1384 = vmatpush.msra.mxu0 0.0
        %1385 = vmatpush.msra.mxu0 %v1365
        %1386 = vmatmul.f32.gmra.mxu0 %v1368
        %v1387 = vpop.f32.mrf.mxu0
        %v1388 = vadd.f32 0.0, %v1387
        %1389 = vdwg.mxu0
        %1391 = vrot.lane.b32.xlu0 %v1388, 32
        %v1392 = vpop.permute.xlu0 %1391
        %vm1394 = vcmask 392448
        %1395 = vst.msk [vmem:[#allocation3] sm:$0xff] %vm1394, %v1392
        %1396 = vrot.lane.b32.xlu0 %v1112, 80
        %v1397 = vpop.permute.xlu0 %1396
        %1398 = vrot.lane.b32.xlu0 %v1147, 80
        %v1399 = vpop.permute.xlu0 %1398
        %v1400 = vsel %vm1187, %v1397, 0
        %v1402 = vsel %vm1187, %v1399, 0
        %1404 = vmatpush.xpose.msra.mxu0 0.0
        %1405 = vmatpush.xpose.msra.mxu0 0.0
        %1406 = vmatpush.xpose.msra.mxu0 0.0
        %1407 = vmatpush.xpose.msra.mxu0 0.0
        %1408 = vmatpush.xpose.msra.mxu0 0.0
        %1409 = vmatpush.xpose.msra.mxu0 0.0
        %1410 = vmatpush.xpose.msra.mxu0 0.0
        %1411 = vmatpush.xpose.msra.mxu0 0.0
        %1412 = vmatpush.xpose.msra.mxu0 0.0
        %1413 = vmatpush.xpose.msra.mxu0 0.0
        %1414 = vmatpush.xpose.msra.mxu0 0.0
        %1415 = vmatpush.xpose.msra.mxu0 0.0
        %1416 = vmatpush.xpose.msra.mxu0 0.0
        %1417 = vmatpush.xpose.msra.mxu0 0.0
        %1418 = vmatpush.xpose.msra.mxu0 0.0
        %1419 = vmatpush.xpose.msra.mxu0 %v1402
        %1420 = vmatmul.f32.gmra.mxu0 %v1400
        %v1421 = vpop.f32.mrf.mxu0
        %v1422 = vadd.f32 0.0, %v1421
        %1423 = vdwg.mxu0
        %v1424 = vmul.f32 %v1422, 0.25
        %v1425 = vsel %vm1215, %v1424, -inf
        %1426 = vmax.xlane.f32.xlu0 %v1425
        %v1427 = vpop.xlane.xlu0 %1426
        %v1428 = vsub.f32 %v1424, %v1427
        %v1429 = vmul.f32 %v1428, 1.442695
        %v1430 = vpow.pop %v1429
        %v1431 = vsel %vm1215, %v1430, 0.0
        %1432 = vadd.xlane.f32.xlu0 %v1431
        %v1433 = vpop.xlane.xlu0 %1432
        %v1434 = vrcp.pop %v1433
        %v1435 = vmul.f32 %v1430, %v1434
        %1436 = vrot.lane.b32.xlu0 %v1182, 80
        %v1437 = vpop.permute.xlu0 %1436
        %v1440 = vsel %vm1215, %v1435, 0
        %1442 = vmatpush.msra.mxu0 0.0
        %1443 = vmatpush.msra.mxu0 0.0
        %1444 = vmatpush.msra.mxu0 0.0
        %1445 = vmatpush.msra.mxu0 0.0
        %1446 = vmatpush.msra.mxu0 0.0
        %1447 = vmatpush.msra.mxu0 0.0
        %1448 = vmatpush.msra.mxu0 0.0
        %1449 = vmatpush.msra.mxu0 0.0
        %1450 = vmatpush.msra.mxu0 0.0
        %1451 = vmatpush.msra.mxu0 0.0
        %1452 = vmatpush.msra.mxu0 0.0
        %1453 = vmatpush.msra.mxu0 0.0
        %1454 = vmatpush.msra.mxu0 0.0
        %1455 = vmatpush.msra.mxu0 0.0
        %1456 = vmatpush.msra.mxu0 0.0
        %1457 = vmatpush.msra.mxu0 %v1437
        %1458 = vmatmul.f32.gmra.mxu0 %v1440
        %v1459 = vpop.f32.mrf.mxu0
        %v1460 = vadd.f32 0.0, %v1459
        %1461 = vdwg.mxu0
        %1463 = vrot.lane.b32.xlu0 %v1460, 48
        %v1464 = vpop.permute.xlu0 %1463
        %vm1466 = vcmask 523648
        %1467 = vst.msk [vmem:[#allocation3] sm:$0xff] %vm1466, %v1464
        %v1469 = vsel %vm1187, %v1115, 0
        %v1472 = vsel %vm1187, %v1150, 0
        %1474 = vmatpush.xpose.msra.mxu0 0.0
        %1475 = vmatpush.xpose.msra.mxu0 0.0
        %1476 = vmatpush.xpose.msra.mxu0 0.0
        %1477 = vmatpush.xpose.msra.mxu0 0.0
        %1478 = vmatpush.xpose.msra.mxu0 0.0
        %1479 = vmatpush.xpose.msra.mxu0 0.0
        %1480 = vmatpush.xpose.msra.mxu0 0.0
        %1481 = vmatpush.xpose.msra.mxu0 0.0
        %1482 = vmatpush.xpose.msra.mxu0 0.0
        %1483 = vmatpush.xpose.msra.mxu0 0.0
        %1484 = vmatpush.xpose.msra.mxu0 0.0
        %1485 = vmatpush.xpose.msra.mxu0 0.0
        %1486 = vmatpush.xpose.msra.mxu0 0.0
        %1487 = vmatpush.xpose.msra.mxu0 0.0
        %1488 = vmatpush.xpose.msra.mxu0 0.0
        %1489 = vmatpush.xpose.msra.mxu0 %v1472
        %1490 = vmatmul.f32.gmra.mxu0 %v1469
        %v1491 = vpop.f32.mrf.mxu0
        %v1492 = vadd.f32 0.0, %v1491
        %1493 = vdwg.mxu0
        %v1494 = vmul.f32 %v1492, 0.25
        %v1495 = vsel %vm1215, %v1494, -inf
        %1496 = vmax.xlane.f32.xlu0 %v1495
        %v1497 = vpop.xlane.xlu0 %1496
        %v1498 = vsub.f32 %v1494, %v1497
        %v1499 = vmul.f32 %v1498, 1.442695
        %v1500 = vpow.pop %v1499
        %v1501 = vsel %vm1215, %v1500, 0.0
        %1502 = vadd.xlane.f32.xlu0 %v1501
        %v1503 = vpop.xlane.xlu0 %1502
        %v1504 = vrcp.pop %v1503
        %v1505 = vmul.f32 %v1500, %v1504
        %v1507 = vsel %vm1215, %v1505, 0
        %1509 = vmatpush.msra.mxu0 0.0
        %1510 = vmatpush.msra.mxu0 0.0
        %1511 = vmatpush.msra.mxu0 0.0
        %1512 = vmatpush.msra.mxu0 0.0
        %1513 = vmatpush.msra.mxu0 0.0
        %1514 = vmatpush.msra.mxu0 0.0
        %1515 = vmatpush.msra.mxu0 0.0
        %1516 = vmatpush.msra.mxu0 0.0
        %1517 = vmatpush.msra.mxu0 0.0
        %1518 = vmatpush.msra.mxu0 0.0
        %1519 = vmatpush.msra.mxu0 0.0
        %1520 = vmatpush.msra.mxu0 0.0
        %1521 = vmatpush.msra.mxu0 0.0
        %1522 = vmatpush.msra.mxu0 0.0
        %1523 = vmatpush.msra.mxu0 0.0
        %1524 = vmatpush.msra.mxu0 %v1185
        %1525 = vmatmul.f32.gmra.mxu0 %v1507
        %v1526 = vpop.f32.mrf.mxu0
        %v1527 = vadd.f32 0.0, %v1526
        %1528 = vdwg.mxu0
        %1529 = vst.msk [vmem:[#allocation3 + $0x8] sm:$0xff] %vm1187, %v1527
        %1530 = vrot.lane.b32.xlu0 %v1115, 112
        %v1531 = vpop.permute.xlu0 %1530
        %1532 = vrot.lane.b32.xlu0 %v1150, 112
        %v1533 = vpop.permute.xlu0 %1532
        %v1534 = vsel %vm1187, %v1531, 0
        %v1536 = vsel %vm1187, %v1533, 0
        %1538 = vmatpush.xpose.msra.mxu0 0.0
        %1539 = vmatpush.xpose.msra.mxu0 0.0
        %1540 = vmatpush.xpose.msra.mxu0 0.0
        %1541 = vmatpush.xpose.msra.mxu0 0.0
        %1542 = vmatpush.xpose.msra.mxu0 0.0
        %1543 = vmatpush.xpose.msra.mxu0 0.0
        %1544 = vmatpush.xpose.msra.mxu0 0.0
        %1545 = vmatpush.xpose.msra.mxu0 0.0
        %1546 = vmatpush.xpose.msra.mxu0 0.0
        %1547 = vmatpush.xpose.msra.mxu0 0.0
        %1548 = vmatpush.xpose.msra.mxu0 0.0
        %1549 = vmatpush.xpose.msra.mxu0 0.0
        %1550 = vmatpush.xpose.msra.mxu0 0.0
        %1551 = vmatpush.xpose.msra.mxu0 0.0
        %1552 = vmatpush.xpose.msra.mxu0 0.0
        %1553 = vmatpush.xpose.msra.mxu0 %v1536
        %1554 = vmatmul.f32.gmra.mxu0 %v1534
        %v1555 = vpop.f32.mrf.mxu0
        %v1556 = vadd.f32 0.0, %v1555
        %1557 = vdwg.mxu0
        %v1558 = vmul.f32 %v1556, 0.25
        %v1559 = vsel %vm1215, %v1558, -inf
        %1560 = vmax.xlane.f32.xlu0 %v1559
        %v1561 = vpop.xlane.xlu0 %1560
        %v1562 = vsub.f32 %v1558, %v1561
        %v1563 = vmul.f32 %v1562, 1.442695
        %v1564 = vpow.pop %v1563
        %v1565 = vsel %vm1215, %v1564, 0.0
        %1566 = vadd.xlane.f32.xlu0 %v1565
        %v1567 = vpop.xlane.xlu0 %1566
        %v1568 = vrcp.pop %v1567
        %v1569 = vmul.f32 %v1564, %v1568
        %1571 = vrot.lane.b32.xlu0 %v1185, 112
        %v1572 = vpop.permute.xlu0 %1571
        %v1575 = vsel %vm1215, %v1569, 0
        %1577 = vmatpush.msra.mxu0 0.0
        %1578 = vmatpush.msra.mxu0 0.0
        %1579 = vmatpush.msra.mxu0 0.0
        %1580 = vmatpush.msra.mxu0 0.0
        %1581 = vmatpush.msra.mxu0 0.0
        %1582 = vmatpush.msra.mxu0 0.0
        %1583 = vmatpush.msra.mxu0 0.0
        %1584 = vmatpush.msra.mxu0 0.0
        %1585 = vmatpush.msra.mxu0 0.0
        %1586 = vmatpush.msra.mxu0 0.0
        %1587 = vmatpush.msra.mxu0 0.0
        %1588 = vmatpush.msra.mxu0 0.0
        %1589 = vmatpush.msra.mxu0 0.0
        %1590 = vmatpush.msra.mxu0 0.0
        %1591 = vmatpush.msra.mxu0 0.0
        %1592 = vmatpush.msra.mxu0 %v1572
        %1593 = vmatmul.f32.gmra.mxu0 %v1575
        %v1594 = vpop.f32.mrf.mxu0
        %v1595 = vadd.f32 0.0, %v1594
        %1596 = vdwg.mxu0
        %1598 = vrot.lane.b32.xlu0 %v1595, 16
        %v1599 = vpop.permute.xlu0 %1598
        %1601 = vst.msk [vmem:[#allocation3 + $0x8] sm:$0xff] %vm1322, %v1599
        %1602 = vrot.lane.b32.xlu0 %v1115, 96
        %v1603 = vpop.permute.xlu0 %1602
        %1604 = vrot.lane.b32.xlu0 %v1150, 96
        %v1605 = vpop.permute.xlu0 %1604
        %v1606 = vsel %vm1187, %v1603, 0
        %v1608 = vsel %vm1187, %v1605, 0
        %1610 = vmatpush.xpose.msra.mxu0 0.0
        %1611 = vmatpush.xpose.msra.mxu0 0.0
        %1612 = vmatpush.xpose.msra.mxu0 0.0
        %1613 = vmatpush.xpose.msra.mxu0 0.0
        %1614 = vmatpush.xpose.msra.mxu0 0.0
        %1615 = vmatpush.xpose.msra.mxu0 0.0
        %1616 = vmatpush.xpose.msra.mxu0 0.0
        %1617 = vmatpush.xpose.msra.mxu0 0.0
        %1618 = vmatpush.xpose.msra.mxu0 0.0
        %1619 = vmatpush.xpose.msra.mxu0 0.0
        %1620 = vmatpush.xpose.msra.mxu0 0.0
        %1621 = vmatpush.xpose.msra.mxu0 0.0
        %1622 = vmatpush.xpose.msra.mxu0 0.0
        %1623 = vmatpush.xpose.msra.mxu0 0.0
        %1624 = vmatpush.xpose.msra.mxu0 0.0
        %1625 = vmatpush.xpose.msra.mxu0 %v1608
        %1626 = vmatmul.f32.gmra.mxu0 %v1606
        %v1627 = vpop.f32.mrf.mxu0
        %v1628 = vadd.f32 0.0, %v1627
        %1629 = vdwg.mxu0
        %v1630 = vmul.f32 %v1628, 0.25
        %v1631 = vsel %vm1215, %v1630, -inf
        %1632 = vmax.xlane.f32.xlu0 %v1631
        %v1633 = vpop.xlane.xlu0 %1632
        %v1634 = vsub.f32 %v1630, %v1633
        %v1635 = vmul.f32 %v1634, 1.442695
        %v1636 = vpow.pop %v1635
        %v1637 = vsel %vm1215, %v1636, 0.0
        %1638 = vadd.xlane.f32.xlu0 %v1637
        %v1639 = vpop.xlane.xlu0 %1638
        %v1640 = vrcp.pop %v1639
        %v1641 = vmul.f32 %v1636, %v1640
        %1642 = vrot.lane.b32.xlu0 %v1185, 96
        %v1643 = vpop.permute.xlu0 %1642
        %v1646 = vsel %vm1215, %v1641, 0
        %1648 = vmatpush.msra.mxu0 0.0
        %1649 = vmatpush.msra.mxu0 0.0
        %1650 = vmatpush.msra.mxu0 0.0
        %1651 = vmatpush.msra.mxu0 0.0
        %1652 = vmatpush.msra.mxu0 0.0
        %1653 = vmatpush.msra.mxu0 0.0
        %1654 = vmatpush.msra.mxu0 0.0
        %1655 = vmatpush.msra.mxu0 0.0
        %1656 = vmatpush.msra.mxu0 0.0
        %1657 = vmatpush.msra.mxu0 0.0
        %1658 = vmatpush.msra.mxu0 0.0
        %1659 = vmatpush.msra.mxu0 0.0
        %1660 = vmatpush.msra.mxu0 0.0
        %1661 = vmatpush.msra.mxu0 0.0
        %1662 = vmatpush.msra.mxu0 0.0
        %1663 = vmatpush.msra.mxu0 %v1643
        %1664 = vmatmul.f32.gmra.mxu0 %v1646
        %v1665 = vpop.f32.mrf.mxu0
        %v1666 = vadd.f32 0.0, %v1665
        %1667 = vdwg.mxu0
        %1669 = vrot.lane.b32.xlu0 %v1666, 32
        %v1670 = vpop.permute.xlu0 %1669
        %1672 = vst.msk [vmem:[#allocation3 + $0x8] sm:$0xff] %vm1394, %v1670
        %1673 = vrot.lane.b32.xlu0 %v1115, 80
        %v1674 = vpop.permute.xlu0 %1673
        %1675 = vrot.lane.b32.xlu0 %v1150, 80
        %v1676 = vpop.permute.xlu0 %1675
        %v1677 = vsel %vm1187, %v1674, 0
        %v1679 = vsel %vm1187, %v1676, 0
        %1681 = vmatpush.xpose.msra.mxu0 0.0
        %1682 = vmatpush.xpose.msra.mxu0 0.0
        %1683 = vmatpush.xpose.msra.mxu0 0.0
        %1684 = vmatpush.xpose.msra.mxu0 0.0
        %1685 = vmatpush.xpose.msra.mxu0 0.0
        %1686 = vmatpush.xpose.msra.mxu0 0.0
        %1687 = vmatpush.xpose.msra.mxu0 0.0
        %1688 = vmatpush.xpose.msra.mxu0 0.0
        %1689 = vmatpush.xpose.msra.mxu0 0.0
        %1690 = vmatpush.xpose.msra.mxu0 0.0
        %1691 = vmatpush.xpose.msra.mxu0 0.0
        %1692 = vmatpush.xpose.msra.mxu0 0.0
        %1693 = vmatpush.xpose.msra.mxu0 0.0
        %1694 = vmatpush.xpose.msra.mxu0 0.0
        %1695 = vmatpush.xpose.msra.mxu0 0.0
        %1696 = vmatpush.xpose.msra.mxu0 %v1679
        %1697 = vmatmul.f32.gmra.mxu0 %v1677
        %v1698 = vpop.f32.mrf.mxu0
        %v1699 = vadd.f32 0.0, %v1698
        %1700 = vdwg.mxu0
        %v1701 = vmul.f32 %v1699, 0.25
        %v1702 = vsel %vm1215, %v1701, -inf
        %1703 = vmax.xlane.f32.xlu0 %v1702
        %v1704 = vpop.xlane.xlu0 %1703
        %v1705 = vsub.f32 %v1701, %v1704
        %v1706 = vmul.f32 %v1705, 1.442695
        %v1707 = vpow.pop %v1706
        %v1708 = vsel %vm1215, %v1707, 0.0
        %1709 = vadd.xlane.f32.xlu0 %v1708
        %v1710 = vpop.xlane.xlu0 %1709
        %v1711 = vrcp.pop %v1710
        %v1712 = vmul.f32 %v1707, %v1711
        %1713 = vrot.lane.b32.xlu0 %v1185, 80
        %v1714 = vpop.permute.xlu0 %1713
        %v1717 = vsel %vm1215, %v1712, 0
        %1719 = vmatpush.msra.mxu0 0.0
        %1720 = vmatpush.msra.mxu0 0.0
        %1721 = vmatpush.msra.mxu0 0.0
        %1722 = vmatpush.msra.mxu0 0.0
        %1723 = vmatpush.msra.mxu0 0.0
        %1724 = vmatpush.msra.mxu0 0.0
        %1725 = vmatpush.msra.mxu0 0.0
        %1726 = vmatpush.msra.mxu0 0.0
        %1727 = vmatpush.msra.mxu0 0.0
        %1728 = vmatpush.msra.mxu0 0.0
        %1729 = vmatpush.msra.mxu0 0.0
        %1730 = vmatpush.msra.mxu0 0.0
        %1731 = vmatpush.msra.mxu0 0.0
        %1732 = vmatpush.msra.mxu0 0.0
        %1733 = vmatpush.msra.mxu0 0.0
        %1734 = vmatpush.msra.mxu0 %v1714
        %1735 = vmatmul.f32.gmra.mxu0 %v1717
        %v1736 = vpop.f32.mrf.mxu0
        %v1737 = vadd.f32 0.0, %v1736
        %1738 = vdwg.mxu0
        %1740 = vrot.lane.b32.xlu0 %v1737, 48
        %v1741 = vpop.permute.xlu0 %1740
        %1743 = vst.msk [vmem:[#allocation3 + $0x8] sm:$0xff] %vm1466, %v1741
        %v1744 = vld [vmem:[#allocation3] sm:$0xff]
        %v1745 = vld [vmem:[#allocation3 + $0x8] sm:$0xff]
        %v1746 = vld [vmem:[%s988] sm:$0xff]
        %v1747 = vld [vmem:[%s988 + $0x8] sm:$0xff]
        %v1748 = vld [vmem:[%s988 + $0x10] sm:$0xff]
        %v1749 = vld [vmem:[%s988 + $0x18] sm:$0xff]
        %v1750 = vld [vmem:[%s988 + $0x20] sm:$0xff]
        %v1751 = vld [vmem:[%s988 + $0x28] sm:$0xff]
        %v1752 = vld [vmem:[%s988 + $0x30] sm:$0xff]
        %v1753 = vld [vmem:[%s988 + $0x38] sm:$0xff]
        %v1754 = vld [vmem:[%s991] sm:$0x1]
        %v1756 = vperm.slane %v1754, 0
        %v1759 = vsel %vm1087, %v1744, 0
        %v1762 = vsel %vm1087, %v1745, 0
        %1764 = vmatpush.msra.mxu0 0.0
        %1765 = vmatpush.msra.mxu0 0.0
        %1766 = vmatpush.msra.mxu0 0.0
        %1767 = vmatpush.msra.mxu0 0.0
        %1768 = vmatpush.msra.mxu0 0.0
        %1769 = vmatpush.msra.mxu0 0.0
        %1770 = vmatpush.msra.mxu0 0.0
        %1771 = vmatpush.msra.mxu0 0.0
        %1772 = vmatpush.msra.mxu0 %v1753
        %1773 = vmatpush.msra.mxu0 %v1752
        %1774 = vmatpush.msra.mxu0 %v1751
        %1775 = vmatpush.msra.mxu0 %v1750
        %1776 = vmatpush.msra.mxu0 %v1749
        %1777 = vmatpush.msra.mxu0 %v1748
        %1778 = vmatpush.msra.mxu0 %v1747
        %1779 = vmatpush.msra.mxu0 %v1746
        %1780 = vmatmul.f32.gmra.mxu0 %v1759
        %v1781 = vpop.f32.mrf.mxu0
        %v1782 = vadd.f32 %v1756, %v1781
        %1783 = vmatmul.f32.gmra.mxu0 %v1762
        %v1784 = vpop.f32.mrf.mxu0
        %v1785 = vadd.f32 %v1756, %v1784
        %1786 = vdwg.mxu0
        %v1787 = vadd.f32 %v1073, %v1782
        %v1788 = vadd.f32 %v1074, %v1785
        %v1789 = vld [vmem:[%s994] sm:$0x1]
        %v1790 = vld [vmem:[%s997] sm:$0x1]
        %v1791 = vsel %vm1087, %v1787, 0.0
        %1792 = vadd.xlane.f32.xlu0 %v1791
        %v1793 = vpop.xlane.xlu0 %1792
        %v1794 = vsel %vm1087, %v1788, 0.0
        %1795 = vadd.xlane.f32.xlu0 %v1794
        %v1796 = vpop.xlane.xlu0 %1795
        %v1797 = vrcp.pop 64.0
        %v1798 = vmul.f32 64.0, %v1797
        %v1799 = vsub.f32 1.0, %v1798
        %v1800 = vmul.f32 %v1797, %v1799
        %v1801 = vadd.f32 %v1797, %v1800
        %vm1802 = vweird.f32 %v1797
        %v1803 = vsel %vm1802, %v1797, %v1801
        %v1804 = vmul.f32 %v1793, %v1803
        %v1805 = vmul.f32 %v1796, %v1803
        %v1806 = vsub.f32 %v1787, %v1804
        %v1807 = vsub.f32 %v1788, %v1805
        %v1808 = vmul.f32 %v1806, %v1806
        %v1809 = vmul.f32 %v1807, %v1807
        %v1810 = vsel %vm1087, %v1808, 0.0
        %1811 = vadd.xlane.f32.xlu0 %v1810
        %v1812 = vpop.xlane.xlu0 %1811
        %v1813 = vsel %vm1087, %v1809, 0.0
        %1814 = vadd.xlane.f32.xlu0 %v1813
        %v1815 = vpop.xlane.xlu0 %1814
        %v1816 = vmul.f32 %v1812, %v1803
        %v1817 = vmul.f32 %v1815, %v1803
        %v1818 = vadd.f32 %v1816, 1e-05
        %v1819 = vadd.f32 %v1817, 1e-05
        %v1820 = vrsqrt.pop %v1818
        %v1821 = vmul.f32 %v1820, %v1818
        %v1822 = vmul.f32 %v1821, %v1820
        %v1823 = vmul.f32 0.5, %v1822
        %v1824 = vsub.f32 1.5, %v1823
        %v1825 = vmul.f32 %v1820, %v1824
        %vm1826 = vweird.f32 %v1818
        %vm1827 = vweird.f32 %v1820
        %vm1828 = vmor %vm1826, %vm1827
        %v1829 = vsel %vm1828, %v1820, %v1825
        %v1830 = vrsqrt.pop %v1819
        %v1831 = vmul.f32 %v1830, %v1819
        %v1832 = vmul.f32 %v1831, %v1830
        %v1833 = vmul.f32 0.5, %v1832
        %v1834 = vsub.f32 1.5, %v1833
        %v1835 = vmul.f32 %v1830, %v1834
        %vm1836 = vweird.f32 %v1819
        %vm1837 = vweird.f32 %v1830
        %vm1838 = vmor %vm1836, %vm1837
        %v1839 = vsel %vm1838, %v1830, %v1835
        %v1840 = vmul.f32 %v1806, %v1829
        %v1841 = vmul.f32 %v1807, %v1839
        %v1843 = vperm.slane %v1789, 0
        %v1845 = vmul.f32 %v1840, %v1843
        %v1846 = vmul.f32 %v1841, %v1843
        %v1848 = vperm.slane %v1790, 0
        %v1850 = vadd.f32 %v1845, %v1848
        %v1851 = vadd.f32 %v1846, %v1848
        %v1852 = vld [vmem:[%s1002] sm:$0xff]
        %v1853 = vld [vmem:[%s1002 + $0x8] sm:$0xff]
        %v1854 = vld [vmem:[%s1002 + $0x10] sm:$0xff]
        %v1855 = vld [vmem:[%s1002 + $0x18] sm:$0xff]
        %v1856 = vld [vmem:[%s1002 + $0x20] sm:$0xff]
        %v1857 = vld [vmem:[%s1002 + $0x28] sm:$0xff]
        %v1858 = vld [vmem:[%s1002 + $0x30] sm:$0xff]
        %v1859 = vld [vmem:[%s1002 + $0x38] sm:$0xff]
        %v1860 = vld [vmem:[%s1002 + $0x40] sm:$0xff]
        %v1861 = vld [vmem:[%s1002 + $0x48] sm:$0xff]
        %v1862 = vld [vmem:[%s1002 + $0x50] sm:$0xff]
        %v1863 = vld [vmem:[%s1002 + $0x58] sm:$0xff]
        %v1864 = vld [vmem:[%s1002 + $0x60] sm:$0xff]
        %v1865 = vld [vmem:[%s1002 + $0x68] sm:$0xff]
        %v1866 = vld [vmem:[%s1002 + $0x70] sm:$0xff]
        %v1867 = vld [vmem:[%s1002 + $0x78] sm:$0xff]
        %v1868 = vld [vmem:[%s1002 + $0x80] sm:$0xff]
        %v1869 = vld [vmem:[%s1002 + $0x88] sm:$0xff]
        %v1870 = vld [vmem:[%s1002 + $0x90] sm:$0xff]
        %v1871 = vld [vmem:[%s1002 + $0x98] sm:$0xff]
        %v1872 = vld [vmem:[%s1002 + $0xa0] sm:$0xff]
        %v1873 = vld [vmem:[%s1002 + $0xa8] sm:$0xff]
        %v1874 = vld [vmem:[%s1002 + $0xb0] sm:$0xff]
        %v1875 = vld [vmem:[%s1002 + $0xb8] sm:$0xff]
        %v1876 = vld [vmem:[%s1002 + $0xc0] sm:$0xff]
        %v1877 = vld [vmem:[%s1002 + $0xc8] sm:$0xff]
        %v1878 = vld [vmem:[%s1002 + $0xd0] sm:$0xff]
        %v1879 = vld [vmem:[%s1002 + $0xd8] sm:$0xff]
        %v1880 = vld [vmem:[%s1002 + $0xe0] sm:$0xff]
        %v1881 = vld [vmem:[%s1002 + $0xe8] sm:$0xff]
        %v1882 = vld [vmem:[%s1002 + $0xf0] sm:$0xff]
        %v1883 = vld [vmem:[%s1002 + $0xf8] sm:$0xff]
        %v1884 = vld [vmem:[%s1002 + $0x100] sm:$0xff]
        %v1885 = vld [vmem:[%s1002 + $0x108] sm:$0xff]
        %v1886 = vld [vmem:[%s1002 + $0x110] sm:$0xff]
        %v1887 = vld [vmem:[%s1002 + $0x118] sm:$0xff]
        %v1888 = vld [vmem:[%s1002 + $0x120] sm:$0xff]
        %v1889 = vld [vmem:[%s1002 + $0x128] sm:$0xff]
        %v1890 = vld [vmem:[%s1002 + $0x130] sm:$0xff]
        %v1891 = vld [vmem:[%s1002 + $0x138] sm:$0xff]
        %v1892 = vld [vmem:[%s1002 + $0x140] sm:$0xff]
        %v1893 = vld [vmem:[%s1002 + $0x148] sm:$0xff]
        %v1894 = vld [vmem:[%s1002 + $0x150] sm:$0xff]
        %v1895 = vld [vmem:[%s1002 + $0x158] sm:$0xff]
        %v1896 = vld [vmem:[%s1002 + $0x160] sm:$0xff]
        %v1897 = vld [vmem:[%s1002 + $0x168] sm:$0xff]
        %v1898 = vld [vmem:[%s1002 + $0x170] sm:$0xff]
        %v1899 = vld [vmem:[%s1002 + $0x178] sm:$0xff]
        %v1900 = vld [vmem:[%s1002 + $0x180] sm:$0xff]
        %v1901 = vld [vmem:[%s1002 + $0x188] sm:$0xff]
        %v1902 = vld [vmem:[%s1002 + $0x190] sm:$0xff]
        %v1903 = vld [vmem:[%s1002 + $0x198] sm:$0xff]
        %v1904 = vld [vmem:[%s1002 + $0x1a0] sm:$0xff]
        %v1905 = vld [vmem:[%s1002 + $0x1a8] sm:$0xff]
        %v1906 = vld [vmem:[%s1002 + $0x1b0] sm:$0xff]
        %v1907 = vld [vmem:[%s1002 + $0x1b8] sm:$0xff]
        %v1908 = vld [vmem:[%s1002 + $0x1c0] sm:$0xff]
        %v1909 = vld [vmem:[%s1002 + $0x1c8] sm:$0xff]
        %v1910 = vld [vmem:[%s1002 + $0x1d0] sm:$0xff]
        %v1911 = vld [vmem:[%s1002 + $0x1d8] sm:$0xff]
        %v1912 = vld [vmem:[%s1002 + $0x1e0] sm:$0xff]
        %v1913 = vld [vmem:[%s1002 + $0x1e8] sm:$0xff]
        %v1914 = vld [vmem:[%s1002 + $0x1f0] sm:$0xff]
        %v1915 = vld [vmem:[%s1002 + $0x1f8] sm:$0xff]
        %v1916 = vunpack.c.l.bf16 %v1852
        %v1917 = vunpack.c.h.bf16 %v1852
        %v1918 = vunpack.c.l.bf16 %v1853
        %v1919 = vunpack.c.h.bf16 %v1853
        %v1920 = vunpack.c.l.bf16 %v1854
        %v1921 = vunpack.c.h.bf16 %v1854
        %v1922 = vunpack.c.l.bf16 %v1855
        %v1923 = vunpack.c.h.bf16 %v1855
        %v1924 = vunpack.c.l.bf16 %v1856
        %v1925 = vunpack.c.h.bf16 %v1856
        %v1926 = vunpack.c.l.bf16 %v1857
        %v1927 = vunpack.c.h.bf16 %v1857
        %v1928 = vunpack.c.l.bf16 %v1858
        %v1929 = vunpack.c.h.bf16 %v1858
        %v1930 = vunpack.c.l.bf16 %v1859
        %v1931 = vunpack.c.h.bf16 %v1859
        %v1932 = vunpack.c.l.bf16 %v1860
        %v1933 = vunpack.c.h.bf16 %v1860
        %v1934 = vunpack.c.l.bf16 %v1861
        %v1935 = vunpack.c.h.bf16 %v1861
        %v1936 = vunpack.c.l.bf16 %v1862
        %v1937 = vunpack.c.h.bf16 %v1862
        %v1938 = vunpack.c.l.bf16 %v1863
        %v1939 = vunpack.c.h.bf16 %v1863
        %v1940 = vunpack.c.l.bf16 %v1864
        %v1941 = vunpack.c.h.bf16 %v1864
        %v1942 = vunpack.c.l.bf16 %v1865
        %v1943 = vunpack.c.h.bf16 %v1865
        %v1944 = vunpack.c.l.bf16 %v1866
        %v1945 = vunpack.c.h.bf16 %v1866
        %v1946 = vunpack.c.l.bf16 %v1867
        %v1947 = vunpack.c.h.bf16 %v1867
        %v1948 = vunpack.c.l.bf16 %v1868
        %v1949 = vunpack.c.h.bf16 %v1868
        %v1950 = vunpack.c.l.bf16 %v1869
        %v1951 = vunpack.c.h.bf16 %v1869
        %v1952 = vunpack.c.l.bf16 %v1870
        %v1953 = vunpack.c.h.bf16 %v1870
        %v1954 = vunpack.c.l.bf16 %v1871
        %v1955 = vunpack.c.h.bf16 %v1871
        %v1956 = vunpack.c.l.bf16 %v1872
        %v1957 = vunpack.c.h.bf16 %v1872
        %v1958 = vunpack.c.l.bf16 %v1873
        %v1959 = vunpack.c.h.bf16 %v1873
        %v1960 = vunpack.c.l.bf16 %v1874
        %v1961 = vunpack.c.h.bf16 %v1874
        %v1962 = vunpack.c.l.bf16 %v1875
        %v1963 = vunpack.c.h.bf16 %v1875
        %v1964 = vunpack.c.l.bf16 %v1876
        %v1965 = vunpack.c.h.bf16 %v1876
        %v1966 = vunpack.c.l.bf16 %v1877
        %v1967 = vunpack.c.h.bf16 %v1877
        %v1968 = vunpack.c.l.bf16 %v1878
        %v1969 = vunpack.c.h.bf16 %v1878
        %v1970 = vunpack.c.l.bf16 %v1879
        %v1971 = vunpack.c.h.bf16 %v1879
        %v1972 = vunpack.c.l.bf16 %v1880
        %v1973 = vunpack.c.h.bf16 %v1880
        %v1974 = vunpack.c.l.bf16 %v1881
        %v1975 = vunpack.c.h.bf16 %v1881
        %v1976 = vunpack.c.l.bf16 %v1882
        %v1977 = vunpack.c.h.bf16 %v1882
        %v1978 = vunpack.c.l.bf16 %v1883
        %v1979 = vunpack.c.h.bf16 %v1883
        %v1980 = vunpack.c.l.bf16 %v1884
        %v1981 = vunpack.c.h.bf16 %v1884
        %v1982 = vunpack.c.l.bf16 %v1885
        %v1983 = vunpack.c.h.bf16 %v1885
        %v1984 = vunpack.c.l.bf16 %v1886
        %v1985 = vunpack.c.h.bf16 %v1886
        %v1986 = vunpack.c.l.bf16 %v1887
        %v1987 = vunpack.c.h.bf16 %v1887
        %v1988 = vunpack.c.l.bf16 %v1888
        %v1989 = vunpack.c.h.bf16 %v1888
        %v1990 = vunpack.c.l.bf16 %v1889
        %v1991 = vunpack.c.h.bf16 %v1889
        %v1992 = vunpack.c.l.bf16 %v1890
        %v1993 = vunpack.c.h.bf16 %v1890
        %v1994 = vunpack.c.l.bf16 %v1891
        %v1995 = vunpack.c.h.bf16 %v1891
        %v1996 = vunpack.c.l.bf16 %v1892
        %v1997 = vunpack.c.h.bf16 %v1892
        %v1998 = vunpack.c.l.bf16 %v1893
        %v1999 = vunpack.c.h.bf16 %v1893
        %v2000 = vunpack.c.l.bf16 %v1894
        %v2001 = vunpack.c.h.bf16 %v1894
        %v2002 = vunpack.c.l.bf16 %v1895
        %v2003 = vunpack.c.h.bf16 %v1895
        %v2004 = vunpack.c.l.bf16 %v1896
        %v2005 = vunpack.c.h.bf16 %v1896
        %v2006 = vunpack.c.l.bf16 %v1897
        %v2007 = vunpack.c.h.bf16 %v1897
        %v2008 = vunpack.c.l.bf16 %v1898
        %v2009 = vunpack.c.h.bf16 %v1898
        %v2010 = vunpack.c.l.bf16 %v1899
        %v2011 = vunpack.c.h.bf16 %v1899
        %v2012 = vunpack.c.l.bf16 %v1900
        %v2013 = vunpack.c.h.bf16 %v1900
        %v2014 = vunpack.c.l.bf16 %v1901
        %v2015 = vunpack.c.h.bf16 %v1901
        %v2016 = vunpack.c.l.bf16 %v1902
        %v2017 = vunpack.c.h.bf16 %v1902
        %v2018 = vunpack.c.l.bf16 %v1903
        %v2019 = vunpack.c.h.bf16 %v1903
        %v2020 = vunpack.c.l.bf16 %v1904
        %v2021 = vunpack.c.h.bf16 %v1904
        %v2022 = vunpack.c.l.bf16 %v1905
        %v2023 = vunpack.c.h.bf16 %v1905
        %v2024 = vunpack.c.l.bf16 %v1906
        %v2025 = vunpack.c.h.bf16 %v1906
        %v2026 = vunpack.c.l.bf16 %v1907
        %v2027 = vunpack.c.h.bf16 %v1907
        %v2028 = vunpack.c.l.bf16 %v1908
        %v2029 = vunpack.c.h.bf16 %v1908
        %v2030 = vunpack.c.l.bf16 %v1909
        %v2031 = vunpack.c.h.bf16 %v1909
        %v2032 = vunpack.c.l.bf16 %v1910
        %v2033 = vunpack.c.h.bf16 %v1910
        %v2034 = vunpack.c.l.bf16 %v1911
        %v2035 = vunpack.c.h.bf16 %v1911
        %v2036 = vunpack.c.l.bf16 %v1912
        %v2037 = vunpack.c.h.bf16 %v1912
        %v2038 = vunpack.c.l.bf16 %v1913
        %v2039 = vunpack.c.h.bf16 %v1913
        %v2040 = vunpack.c.l.bf16 %v1914
        %v2041 = vunpack.c.h.bf16 %v1914
        %v2042 = vunpack.c.l.bf16 %v1915
        %v2043 = vunpack.c.h.bf16 %v1915
        %v2044 = vld [vmem:[%s1006] sm:$0xff]
        %v2045 = vld [vmem:[%s1006 + $0x8] sm:$0xff]
        %v2048 = vperm.slane %v2044, 0
        %v2049 = vperm.slane %v2044, 1
        %v2050 = vperm.slane %v2044, 2
        %v2051 = vperm.slane %v2044, 3
        %v2052 = vperm.slane %v2044, 4
        %v2053 = vperm.slane %v2044, 5
        %v2054 = vperm.slane %v2044, 6
        %v2055 = vperm.slane %v2044, 7
        %v2056 = vperm.slane %v2045, 0
        %v2057 = vperm.slane %v2045, 1
        %v2058 = vperm.slane %v2045, 2
        %v2059 = vperm.slane %v2045, 3
        %v2060 = vperm.slane %v2045, 4
        %v2061 = vperm.slane %v2045, 5
        %v2062 = vperm.slane %v2045, 6
        %v2063 = vperm.slane %v2045, 7
        %v2081 = vsel %vm1087, %v1850, 0
        %v2084 = vsel %vm1087, %v1851, 0
        %2086 = vmatpush.msra.mxu0 0.0
        %2087 = vmatpush.msra.mxu0 0.0
        %2088 = vmatpush.msra.mxu0 0.0
        %2089 = vmatpush.msra.mxu0 0.0
        %2090 = vmatpush.msra.mxu0 0.0
        %2091 = vmatpush.msra.mxu0 0.0
        %2092 = vmatpush.msra.mxu0 0.0
        %2093 = vmatpush.msra.mxu0 0.0
        %2094 = vmatpush.msra.mxu0 %v2028
        %2095 = vmatpush.msra.mxu0 %v2012
        %2096 = vmatpush.msra.mxu0 %v1996
        %2097 = vmatpush.msra.mxu0 %v1980
        %2098 = vmatpush.msra.mxu0 %v1964
        %2099 = vmatpush.msra.mxu0 %v1948
        %2100 = vmatpush.msra.mxu0 %v1932
        %2101 = vmatpush.msra.mxu0 %v1916
        %2102 = vmatmul.f32.gmra.mxu0 %v2081
        %v2103 = vpop.f32.mrf.mxu0
        %v2104 = vadd.f32 %v2048, %v2103
        %2105 = vmatmul.f32.gmra.mxu0 %v2084
        %v2106 = vpop.f32.mrf.mxu0
        %v2107 = vadd.f32 %v2048, %v2106
        %2108 = vdwg.mxu0
        %2109 = vmatpush.msra.mxu0 0.0
        %2110 = vmatpush.msra.mxu0 0.0
        %2111 = vmatpush.msra.mxu0 0.0
        %2112 = vmatpush.msra.mxu0 0.0
        %2113 = vmatpush.msra.mxu0 0.0
        %2114 = vmatpush.msra.mxu0 0.0
        %2115 = vmatpush.msra.mxu0 0.0
        %2116 = vmatpush.msra.mxu0 0.0
        %2117 = vmatpush.msra.mxu0 %v2029
        %2118 = vmatpush.msra.mxu0 %v2013
        %2119 = vmatpush.msra.mxu0 %v1997
        %2120 = vmatpush.msra.mxu0 %v1981
        %2121 = vmatpush.msra.mxu0 %v1965
        %2122 = vmatpush.msra.mxu0 %v1949
        %2123 = vmatpush.msra.mxu0 %v1933
        %2124 = vmatpush.msra.mxu0 %v1917
        %2125 = vmatmul.f32.gmra.mxu0 %v2081
        %v2126 = vpop.f32.mrf.mxu0
        %v2127 = vadd.f32 %v2049, %v2126
        %2128 = vmatmul.f32.gmra.mxu0 %v2084
        %v2129 = vpop.f32.mrf.mxu0
        %v2130 = vadd.f32 %v2049, %v2129
        %2131 = vdwg.mxu0
        %2132 = vmatpush.msra.mxu0 0.0
        %2133 = vmatpush.msra.mxu0 0.0
        %2134 = vmatpush.msra.mxu0 0.0
        %2135 = vmatpush.msra.mxu0 0.0
        %2136 = vmatpush.msra.mxu0 0.0
        %2137 = vmatpush.msra.mxu0 0.0
        %2138 = vmatpush.msra.mxu0 0.0
        %2139 = vmatpush.msra.mxu0 0.0
        %2140 = vmatpush.msra.mxu0 %v2030
        %2141 = vmatpush.msra.mxu0 %v2014
        %2142 = vmatpush.msra.mxu0 %v1998
        %2143 = vmatpush.msra.mxu0 %v1982
        %2144 = vmatpush.msra.mxu0 %v1966
        %2145 = vmatpush.msra.mxu0 %v1950
        %2146 = vmatpush.msra.mxu0 %v1934
        %2147 = vmatpush.msra.mxu0 %v1918
        %2148 = vmatmul.f32.gmra.mxu0 %v2081
        %v2149 = vpop.f32.mrf.mxu0
        %v2150 = vadd.f32 %v2050, %v2149
        %2151 = vmatmul.f32.gmra.mxu0 %v2084
        %v2152 = vpop.f32.mrf.mxu0
        %v2153 = vadd.f32 %v2050, %v2152
        %2154 = vdwg.mxu0
        %2155 = vmatpush.msra.mxu0 0.0
        %2156 = vmatpush.msra.mxu0 0.0
        %2157 = vmatpush.msra.mxu0 0.0
        %2158 = vmatpush.msra.mxu0 0.0
        %2159 = vmatpush.msra.mxu0 0.0
        %2160 = vmatpush.msra.mxu0 0.0
        %2161 = vmatpush.msra.mxu0 0.0
        %2162 = vmatpush.msra.mxu0 0.0
        %2163 = vmatpush.msra.mxu0 %v2031
        %2164 = vmatpush.msra.mxu0 %v2015
        %2165 = vmatpush.msra.mxu0 %v1999
        %2166 = vmatpush.msra.mxu0 %v1983
        %2167 = vmatpush.msra.mxu0 %v1967
        %2168 = vmatpush.msra.mxu0 %v1951
        %2169 = vmatpush.msra.mxu0 %v1935
        %2170 = vmatpush.msra.mxu0 %v1919
        %2171 = vmatmul.f32.gmra.mxu0 %v2081
        %v2172 = vpop.f32.mrf.mxu0
        %v2173 = vadd.f32 %v2051, %v2172
        %2174 = vmatmul.f32.gmra.mxu0 %v2084
        %v2175 = vpop.f32.mrf.mxu0
        %v2176 = vadd.f32 %v2051, %v2175
        %2177 = vdwg.mxu0
        %2178 = vmatpush.msra.mxu0 0.0
        %2179 = vmatpush.msra.mxu0 0.0
        %2180 = vmatpush.msra.mxu0 0.0
        %2181 = vmatpush.msra.mxu0 0.0
        %2182 = vmatpush.msra.mxu0 0.0
        %2183 = vmatpush.msra.mxu0 0.0
        %2184 = vmatpush.msra.mxu0 0.0
        %2185 = vmatpush.msra.mxu0 0.0
        %2186 = vmatpush.msra.mxu0 %v2032
        %2187 = vmatpush.msra.mxu0 %v2016
        %2188 = vmatpush.msra.mxu0 %v2000
        %2189 = vmatpush.msra.mxu0 %v1984
        %2190 = vmatpush.msra.mxu0 %v1968
        %2191 = vmatpush.msra.mxu0 %v1952
        %2192 = vmatpush.msra.mxu0 %v1936
        %2193 = vmatpush.msra.mxu0 %v1920
        %2194 = vmatmul.f32.gmra.mxu0 %v2081
        %v2195 = vpop.f32.mrf.mxu0
        %v2196 = vadd.f32 %v2052, %v2195
        %2197 = vmatmul.f32.gmra.mxu0 %v2084
        %v2198 = vpop.f32.mrf.mxu0
        %v2199 = vadd.f32 %v2052, %v2198
        %2200 = vdwg.mxu0
        %2201 = vmatpush.msra.mxu0 0.0
        %2202 = vmatpush.msra.mxu0 0.0
        %2203 = vmatpush.msra.mxu0 0.0
        %2204 = vmatpush.msra.mxu0 0.0
        %2205 = vmatpush.msra.mxu0 0.0
        %2206 = vmatpush.msra.mxu0 0.0
        %2207 = vmatpush.msra.mxu0 0.0
        %2208 = vmatpush.msra.mxu0 0.0
        %2209 = vmatpush.msra.mxu0 %v2033
        %2210 = vmatpush.msra.mxu0 %v2017
        %2211 = vmatpush.msra.mxu0 %v2001
        %2212 = vmatpush.msra.mxu0 %v1985
        %2213 = vmatpush.msra.mxu0 %v1969
        %2214 = vmatpush.msra.mxu0 %v1953
        %2215 = vmatpush.msra.mxu0 %v1937
        %2216 = vmatpush.msra.mxu0 %v1921
        %2217 = vmatmul.f32.gmra.mxu0 %v2081
        %v2218 = vpop.f32.mrf.mxu0
        %v2219 = vadd.f32 %v2053, %v2218
        %2220 = vmatmul.f32.gmra.mxu0 %v2084
        %v2221 = vpop.f32.mrf.mxu0
        %v2222 = vadd.f32 %v2053, %v2221
        %2223 = vdwg.mxu0
        %2224 = vmatpush.msra.mxu0 0.0
        %2225 = vmatpush.msra.mxu0 0.0
        %2226 = vmatpush.msra.mxu0 0.0
        %2227 = vmatpush.msra.mxu0 0.0
        %2228 = vmatpush.msra.mxu0 0.0
        %2229 = vmatpush.msra.mxu0 0.0
        %2230 = vmatpush.msra.mxu0 0.0
        %2231 = vmatpush.msra.mxu0 0.0
        %2232 = vmatpush.msra.mxu0 %v2034
        %2233 = vmatpush.msra.mxu0 %v2018
        %2234 = vmatpush.msra.mxu0 %v2002
        %2235 = vmatpush.msra.mxu0 %v1986
        %2236 = vmatpush.msra.mxu0 %v1970
        %2237 = vmatpush.msra.mxu0 %v1954
        %2238 = vmatpush.msra.mxu0 %v1938
        %2239 = vmatpush.msra.mxu0 %v1922
        %2240 = vmatmul.f32.gmra.mxu0 %v2081
        %v2241 = vpop.f32.mrf.mxu0
        %v2242 = vadd.f32 %v2054, %v2241
        %2243 = vmatmul.f32.gmra.mxu0 %v2084
        %v2244 = vpop.f32.mrf.mxu0
        %v2245 = vadd.f32 %v2054, %v2244
        %2246 = vdwg.mxu0
        %2247 = vmatpush.msra.mxu0 0.0
        %2248 = vmatpush.msra.mxu0 0.0
        %2249 = vmatpush.msra.mxu0 0.0
        %2250 = vmatpush.msra.mxu0 0.0
        %2251 = vmatpush.msra.mxu0 0.0
        %2252 = vmatpush.msra.mxu0 0.0
        %2253 = vmatpush.msra.mxu0 0.0
        %2254 = vmatpush.msra.mxu0 0.0
        %2255 = vmatpush.msra.mxu0 %v2035
        %2256 = vmatpush.msra.mxu0 %v2019
        %2257 = vmatpush.msra.mxu0 %v2003
        %2258 = vmatpush.msra.mxu0 %v1987
        %2259 = vmatpush.msra.mxu0 %v1971
        %2260 = vmatpush.msra.mxu0 %v1955
        %2261 = vmatpush.msra.mxu0 %v1939
        %2262 = vmatpush.msra.mxu0 %v1923
        %2263 = vmatmul.f32.gmra.mxu0 %v2081
        %v2264 = vpop.f32.mrf.mxu0
        %v2265 = vadd.f32 %v2055, %v2264
        %2266 = vmatmul.f32.gmra.mxu0 %v2084
        %v2267 = vpop.f32.mrf.mxu0
        %v2268 = vadd.f32 %v2055, %v2267
        %2269 = vdwg.mxu0
        %2270 = vmatpush.msra.mxu0 0.0
        %2271 = vmatpush.msra.mxu0 0.0
        %2272 = vmatpush.msra.mxu0 0.0
        %2273 = vmatpush.msra.mxu0 0.0
        %2274 = vmatpush.msra.mxu0 0.0
        %2275 = vmatpush.msra.mxu0 0.0
        %2276 = vmatpush.msra.mxu0 0.0
        %2277 = vmatpush.msra.mxu0 0.0
        %2278 = vmatpush.msra.mxu0 %v2036
        %2279 = vmatpush.msra.mxu0 %v2020
        %2280 = vmatpush.msra.mxu0 %v2004
        %2281 = vmatpush.msra.mxu0 %v1988
        %2282 = vmatpush.msra.mxu0 %v1972
        %2283 = vmatpush.msra.mxu0 %v1956
        %2284 = vmatpush.msra.mxu0 %v1940
        %2285 = vmatpush.msra.mxu0 %v1924
        %2286 = vmatmul.f32.gmra.mxu0 %v2081
        %v2287 = vpop.f32.mrf.mxu0
        %v2288 = vadd.f32 %v2056, %v2287
        %2289 = vmatmul.f32.gmra.mxu0 %v2084
        %v2290 = vpop.f32.mrf.mxu0
        %v2291 = vadd.f32 %v2056, %v2290
        %2292 = vdwg.mxu0
        %2293 = vmatpush.msra.mxu0 0.0
        %2294 = vmatpush.msra.mxu0 0.0
        %2295 = vmatpush.msra.mxu0 0.0
        %2296 = vmatpush.msra.mxu0 0.0
        %2297 = vmatpush.msra.mxu0 0.0
        %2298 = vmatpush.msra.mxu0 0.0
        %2299 = vmatpush.msra.mxu0 0.0
        %2300 = vmatpush.msra.mxu0 0.0
        %2301 = vmatpush.msra.mxu0 %v2037
        %2302 = vmatpush.msra.mxu0 %v2021
        %2303 = vmatpush.msra.mxu0 %v2005
        %2304 = vmatpush.msra.mxu0 %v1989
        %2305 = vmatpush.msra.mxu0 %v1973
        %2306 = vmatpush.msra.mxu0 %v1957
        %2307 = vmatpush.msra.mxu0 %v1941
        %2308 = vmatpush.msra.mxu0 %v1925
        %2309 = vmatmul.f32.gmra.mxu0 %v2081
        %v2310 = vpop.f32.mrf.mxu0
        %v2311 = vadd.f32 %v2057, %v2310
        %2312 = vmatmul.f32.gmra.mxu0 %v2084
        %v2313 = vpop.f32.mrf.mxu0
        %v2314 = vadd.f32 %v2057, %v2313
        %2315 = vdwg.mxu0
        %2316 = vmatpush.msra.mxu0 0.0
        %2317 = vmatpush.msra.mxu0 0.0
        %2318 = vmatpush.msra.mxu0 0.0
        %2319 = vmatpush.msra.mxu0 0.0
        %2320 = vmatpush.msra.mxu0 0.0
        %2321 = vmatpush.msra.mxu0 0.0
        %2322 = vmatpush.msra.mxu0 0.0
        %2323 = vmatpush.msra.mxu0 0.0
        %2324 = vmatpush.msra.mxu0 %v2038
        %2325 = vmatpush.msra.mxu0 %v2022
        %2326 = vmatpush.msra.mxu0 %v2006
        %2327 = vmatpush.msra.mxu0 %v1990
        %2328 = vmatpush.msra.mxu0 %v1974
        %2329 = vmatpush.msra.mxu0 %v1958
        %2330 = vmatpush.msra.mxu0 %v1942
        %2331 = vmatpush.msra.mxu0 %v1926
        %2332 = vmatmul.f32.gmra.mxu0 %v2081
        %v2333 = vpop.f32.mrf.mxu0
        %v2334 = vadd.f32 %v2058, %v2333
        %2335 = vmatmul.f32.gmra.mxu0 %v2084
        %v2336 = vpop.f32.mrf.mxu0
        %v2337 = vadd.f32 %v2058, %v2336
        %2338 = vdwg.mxu0
        %2339 = vmatpush.msra.mxu0 0.0
        %2340 = vmatpush.msra.mxu0 0.0
        %2341 = vmatpush.msra.mxu0 0.0
        %2342 = vmatpush.msra.mxu0 0.0
        %2343 = vmatpush.msra.mxu0 0.0
        %2344 = vmatpush.msra.mxu0 0.0
        %2345 = vmatpush.msra.mxu0 0.0
        %2346 = vmatpush.msra.mxu0 0.0
        %2347 = vmatpush.msra.mxu0 %v2039
        %2348 = vmatpush.msra.mxu0 %v2023
        %2349 = vmatpush.msra.mxu0 %v2007
        %2350 = vmatpush.msra.mxu0 %v1991
        %2351 = vmatpush.msra.mxu0 %v1975
        %2352 = vmatpush.msra.mxu0 %v1959
        %2353 = vmatpush.msra.mxu0 %v1943
        %2354 = vmatpush.msra.mxu0 %v1927
        %2355 = vmatmul.f32.gmra.mxu0 %v2081
        %v2356 = vpop.f32.mrf.mxu0
        %v2357 = vadd.f32 %v2059, %v2356
        %2358 = vmatmul.f32.gmra.mxu0 %v2084
        %v2359 = vpop.f32.mrf.mxu0
        %v2360 = vadd.f32 %v2059, %v2359
        %2361 = vdwg.mxu0
        %2362 = vmatpush.msra.mxu0 0.0
        %2363 = vmatpush.msra.mxu0 0.0
        %2364 = vmatpush.msra.mxu0 0.0
        %2365 = vmatpush.msra.mxu0 0.0
        %2366 = vmatpush.msra.mxu0 0.0
        %2367 = vmatpush.msra.mxu0 0.0
        %2368 = vmatpush.msra.mxu0 0.0
        %2369 = vmatpush.msra.mxu0 0.0
        %2370 = vmatpush.msra.mxu0 %v2040
        %2371 = vmatpush.msra.mxu0 %v2024
        %2372 = vmatpush.msra.mxu0 %v2008
        %2373 = vmatpush.msra.mxu0 %v1992
        %2374 = vmatpush.msra.mxu0 %v1976
        %2375 = vmatpush.msra.mxu0 %v1960
        %2376 = vmatpush.msra.mxu0 %v1944
        %2377 = vmatpush.msra.mxu0 %v1928
        %2378 = vmatmul.f32.gmra.mxu0 %v2081
        %v2379 = vpop.f32.mrf.mxu0
        %v2380 = vadd.f32 %v2060, %v2379
        %2381 = vmatmul.f32.gmra.mxu0 %v2084
        %v2382 = vpop.f32.mrf.mxu0
        %v2383 = vadd.f32 %v2060, %v2382
        %2384 = vdwg.mxu0
        %2385 = vmatpush.msra.mxu0 0.0
        %2386 = vmatpush.msra.mxu0 0.0
        %2387 = vmatpush.msra.mxu0 0.0
        %2388 = vmatpush.msra.mxu0 0.0
        %2389 = vmatpush.msra.mxu0 0.0
        %2390 = vmatpush.msra.mxu0 0.0
        %2391 = vmatpush.msra.mxu0 0.0
        %2392 = vmatpush.msra.mxu0 0.0
        %2393 = vmatpush.msra.mxu0 %v2041
        %2394 = vmatpush.msra.mxu0 %v2025
        %2395 = vmatpush.msra.mxu0 %v2009
        %2396 = vmatpush.msra.mxu0 %v1993
        %2397 = vmatpush.msra.mxu0 %v1977
        %2398 = vmatpush.msra.mxu0 %v1961
        %2399 = vmatpush.msra.mxu0 %v1945
        %2400 = vmatpush.msra.mxu0 %v1929
        %2401 = vmatmul.f32.gmra.mxu0 %v2081
        %v2402 = vpop.f32.mrf.mxu0
        %v2403 = vadd.f32 %v2061, %v2402
        %2404 = vmatmul.f32.gmra.mxu0 %v2084
        %v2405 = vpop.f32.mrf.mxu0
        %v2406 = vadd.f32 %v2061, %v2405
        %2407 = vdwg.mxu0
        %2408 = vmatpush.msra.mxu0 0.0
        %2409 = vmatpush.msra.mxu0 0.0
        %2410 = vmatpush.msra.mxu0 0.0
        %2411 = vmatpush.msra.mxu0 0.0
        %2412 = vmatpush.msra.mxu0 0.0
        %2413 = vmatpush.msra.mxu0 0.0
        %2414 = vmatpush.msra.mxu0 0.0
        %2415 = vmatpush.msra.mxu0 0.0
        %2416 = vmatpush.msra.mxu0 %v2042
        %2417 = vmatpush.msra.mxu0 %v2026
        %2418 = vmatpush.msra.mxu0 %v2010
        %2419 = vmatpush.msra.mxu0 %v1994
        %2420 = vmatpush.msra.mxu0 %v1978
        %2421 = vmatpush.msra.mxu0 %v1962
        %2422 = vmatpush.msra.mxu0 %v1946
        %2423 = vmatpush.msra.mxu0 %v1930
        %2424 = vmatmul.f32.gmra.mxu0 %v2081
        %v2425 = vpop.f32.mrf.mxu0
        %v2426 = vadd.f32 %v2062, %v2425
        %2427 = vmatmul.f32.gmra.mxu0 %v2084
        %v2428 = vpop.f32.mrf.mxu0
        %v2429 = vadd.f32 %v2062, %v2428
        %2430 = vdwg.mxu0
        %2431 = vmatpush.msra.mxu0 0.0
        %2432 = vmatpush.msra.mxu0 0.0
        %2433 = vmatpush.msra.mxu0 0.0
        %2434 = vmatpush.msra.mxu0 0.0
        %2435 = vmatpush.msra.mxu0 0.0
        %2436 = vmatpush.msra.mxu0 0.0
        %2437 = vmatpush.msra.mxu0 0.0
        %2438 = vmatpush.msra.mxu0 0.0
        %2439 = vmatpush.msra.mxu0 %v2043
        %2440 = vmatpush.msra.mxu0 %v2027
        %2441 = vmatpush.msra.mxu0 %v2011
        %2442 = vmatpush.msra.mxu0 %v1995
        %2443 = vmatpush.msra.mxu0 %v1979
        %2444 = vmatpush.msra.mxu0 %v1963
        %2445 = vmatpush.msra.mxu0 %v1947
        %2446 = vmatpush.msra.mxu0 %v1931
        %2447 = vmatmul.f32.gmra.mxu0 %v2081
        %v2448 = vpop.f32.mrf.mxu0
        %v2449 = vadd.f32 %v2063, %v2448
        %2450 = vmatmul.f32.gmra.mxu0 %v2084
        %v2451 = vpop.f32.mrf.mxu0
        %v2452 = vadd.f32 %v2063, %v2451
        %2453 = vdwg.mxu0
        %v2454 = vmax.f32 %v2104, 0.0
        %v2455 = vmax.f32 %v2127, 0.0
        %v2456 = vmax.f32 %v2150, 0.0
        %v2457 = vmax.f32 %v2173, 0.0
        %v2458 = vmax.f32 %v2196, 0.0
        %v2459 = vmax.f32 %v2219, 0.0
        %v2460 = vmax.f32 %v2242, 0.0
        %v2461 = vmax.f32 %v2265, 0.0
        %v2462 = vmax.f32 %v2288, 0.0
        %v2463 = vmax.f32 %v2311, 0.0
        %v2464 = vmax.f32 %v2334, 0.0
        %v2465 = vmax.f32 %v2357, 0.0
        %v2466 = vmax.f32 %v2380, 0.0
        %v2467 = vmax.f32 %v2403, 0.0
        %v2468 = vmax.f32 %v2426, 0.0
        %v2469 = vmax.f32 %v2449, 0.0
        %v2470 = vmax.f32 %v2107, 0.0
        %v2471 = vmax.f32 %v2130, 0.0
        %v2472 = vmax.f32 %v2153, 0.0
        %v2473 = vmax.f32 %v2176, 0.0
        %v2474 = vmax.f32 %v2199, 0.0
        %v2475 = vmax.f32 %v2222, 0.0
        %v2476 = vmax.f32 %v2245, 0.0
        %v2477 = vmax.f32 %v2268, 0.0
        %v2478 = vmax.f32 %v2291, 0.0
        %v2479 = vmax.f32 %v2314, 0.0
        %v2480 = vmax.f32 %v2337, 0.0
        %v2481 = vmax.f32 %v2360, 0.0
        %v2482 = vmax.f32 %v2383, 0.0
        %v2483 = vmax.f32 %v2406, 0.0
        %v2484 = vmax.f32 %v2429, 0.0
        %v2485 = vmax.f32 %v2452, 0.0
        %v2486 = vld [vmem:[%s1011] sm:$0xf]
        %v2487 = vld [vmem:[%s1011 + $0x4] sm:$0xf]
        %v2488 = vld [vmem:[%s1011 + $0x8] sm:$0xf]
        %v2489 = vld [vmem:[%s1011 + $0xc] sm:$0xf]
        %v2490 = vld [vmem:[%s1011 + $0x10] sm:$0xf]
        %v2491 = vld [vmem:[%s1011 + $0x14] sm:$0xf]
        %v2492 = vld [vmem:[%s1011 + $0x18] sm:$0xf]
        %v2493 = vld [vmem:[%s1011 + $0x1c] sm:$0xf]
        %v2494 = vld [vmem:[%s1011 + $0x20] sm:$0xf]
        %v2495 = vld [vmem:[%s1011 + $0x24] sm:$0xf]
        %v2496 = vld [vmem:[%s1011 + $0x28] sm:$0xf]
        %v2497 = vld [vmem:[%s1011 + $0x2c] sm:$0xf]
        %v2498 = vld [vmem:[%s1011 + $0x30] sm:$0xf]
        %v2499 = vld [vmem:[%s1011 + $0x34] sm:$0xf]
        %v2500 = vld [vmem:[%s1011 + $0x38] sm:$0xf]
        %v2501 = vld [vmem:[%s1011 + $0x3c] sm:$0xf]
        %v2502 = vld [vmem:[%s1011 + $0x40] sm:$0xf]
        %v2503 = vld [vmem:[%s1011 + $0x44] sm:$0xf]
        %v2504 = vld [vmem:[%s1011 + $0x48] sm:$0xf]
        %v2505 = vld [vmem:[%s1011 + $0x4c] sm:$0xf]
        %v2506 = vld [vmem:[%s1011 + $0x50] sm:$0xf]
        %v2507 = vld [vmem:[%s1011 + $0x54] sm:$0xf]
        %v2508 = vld [vmem:[%s1011 + $0x58] sm:$0xf]
        %v2509 = vld [vmem:[%s1011 + $0x5c] sm:$0xf]
        %v2510 = vld [vmem:[%s1011 + $0x60] sm:$0xf]
        %v2511 = vld [vmem:[%s1011 + $0x64] sm:$0xf]
        %v2512 = vld [vmem:[%s1011 + $0x68] sm:$0xf]
        %v2513 = vld [vmem:[%s1011 + $0x6c] sm:$0xf]
        %v2514 = vld [vmem:[%s1011 + $0x70] sm:$0xf]
        %v2515 = vld [vmem:[%s1011 + $0x74] sm:$0xf]
        %v2516 = vld [vmem:[%s1011 + $0x78] sm:$0xf]
        %v2517 = vld [vmem:[%s1011 + $0x7c] sm:$0xf]
        %v2518 = vld [vmem:[%s1011 + $0x80] sm:$0xf]
        %v2519 = vld [vmem:[%s1011 + $0x84] sm:$0xf]
        %v2520 = vld [vmem:[%s1011 + $0x88] sm:$0xf]
        %v2521 = vld [vmem:[%s1011 + $0x8c] sm:$0xf]
        %v2522 = vld [vmem:[%s1011 + $0x90] sm:$0xf]
        %v2523 = vld [vmem:[%s1011 + $0x94] sm:$0xf]
        %v2524 = vld [vmem:[%s1011 + $0x98] sm:$0xf]
        %v2525 = vld [vmem:[%s1011 + $0x9c] sm:$0xf]
        %v2526 = vld [vmem:[%s1011 + $0xa0] sm:$0xf]
        %v2527 = vld [vmem:[%s1011 + $0xa4] sm:$0xf]
        %v2528 = vld [vmem:[%s1011 + $0xa8] sm:$0xf]
        %v2529 = vld [vmem:[%s1011 + $0xac] sm:$0xf]
        %v2530 = vld [vmem:[%s1011 + $0xb0] sm:$0xf]
        %v2531 = vld [vmem:[%s1011 + $0xb4] sm:$0xf]
        %v2532 = vld [vmem:[%s1011 + $0xb8] sm:$0xf]
        %v2533 = vld [vmem:[%s1011 + $0xbc] sm:$0xf]
        %v2534 = vld [vmem:[%s1011 + $0xc0] sm:$0xf]
        %v2535 = vld [vmem:[%s1011 + $0xc4] sm:$0xf]
        %v2536 = vld [vmem:[%s1011 + $0xc8] sm:$0xf]
        %v2537 = vld [vmem:[%s1011 + $0xcc] sm:$0xf]
        %v2538 = vld [vmem:[%s1011 + $0xd0] sm:$0xf]
        %v2539 = vld [vmem:[%s1011 + $0xd4] sm:$0xf]
        %v2540 = vld [vmem:[%s1011 + $0xd8] sm:$0xf]
        %v2541 = vld [vmem:[%s1011 + $0xdc] sm:$0xf]
        %v2542 = vld [vmem:[%s1011 + $0xe0] sm:$0xf]
        %v2543 = vld [vmem:[%s1011 + $0xe4] sm:$0xf]
        %v2544 = vld [vmem:[%s1011 + $0xe8] sm:$0xf]
        %v2545 = vld [vmem:[%s1011 + $0xec] sm:$0xf]
        %v2546 = vld [vmem:[%s1011 + $0xf0] sm:$0xf]
        %v2547 = vld [vmem:[%s1011 + $0xf4] sm:$0xf]
        %v2548 = vld [vmem:[%s1011 + $0xf8] sm:$0xf]
        %v2549 = vld [vmem:[%s1011 + $0xfc] sm:$0xf]
        %v2550 = vld [vmem:[%s1011 + $0x100] sm:$0xf]
        %v2551 = vld [vmem:[%s1011 + $0x104] sm:$0xf]
        %v2552 = vld [vmem:[%s1011 + $0x108] sm:$0xf]
        %v2553 = vld [vmem:[%s1011 + $0x10c] sm:$0xf]
        %v2554 = vld [vmem:[%s1011 + $0x110] sm:$0xf]
        %v2555 = vld [vmem:[%s1011 + $0x114] sm:$0xf]
        %v2556 = vld [vmem:[%s1011 + $0x118] sm:$0xf]
        %v2557 = vld [vmem:[%s1011 + $0x11c] sm:$0xf]
        %v2558 = vld [vmem:[%s1011 + $0x120] sm:$0xf]
        %v2559 = vld [vmem:[%s1011 + $0x124] sm:$0xf]
        %v2560 = vld [vmem:[%s1011 + $0x128] sm:$0xf]
        %v2561 = vld [vmem:[%s1011 + $0x12c] sm:$0xf]
        %v2562 = vld [vmem:[%s1011 + $0x130] sm:$0xf]
        %v2563 = vld [vmem:[%s1011 + $0x134] sm:$0xf]
        %v2564 = vld [vmem:[%s1011 + $0x138] sm:$0xf]
        %v2565 = vld [vmem:[%s1011 + $0x13c] sm:$0xf]
        %v2566 = vld [vmem:[%s1011 + $0x140] sm:$0xf]
        %v2567 = vld [vmem:[%s1011 + $0x144] sm:$0xf]
        %v2568 = vld [vmem:[%s1011 + $0x148] sm:$0xf]
        %v2569 = vld [vmem:[%s1011 + $0x14c] sm:$0xf]
        %v2570 = vld [vmem:[%s1011 + $0x150] sm:$0xf]
        %v2571 = vld [vmem:[%s1011 + $0x154] sm:$0xf]
        %v2572 = vld [vmem:[%s1011 + $0x158] sm:$0xf]
        %v2573 = vld [vmem:[%s1011 + $0x15c] sm:$0xf]
        %v2574 = vld [vmem:[%s1011 + $0x160] sm:$0xf]
        %v2575 = vld [vmem:[%s1011 + $0x164] sm:$0xf]
        %v2576 = vld [vmem:[%s1011 + $0x168] sm:$0xf]
        %v2577 = vld [vmem:[%s1011 + $0x16c] sm:$0xf]
        %v2578 = vld [vmem:[%s1011 + $0x170] sm:$0xf]
        %v2579 = vld [vmem:[%s1011 + $0x174] sm:$0xf]
        %v2580 = vld [vmem:[%s1011 + $0x178] sm:$0xf]
        %v2581 = vld [vmem:[%s1011 + $0x17c] sm:$0xf]
        %v2582 = vld [vmem:[%s1011 + $0x180] sm:$0xf]
        %v2583 = vld [vmem:[%s1011 + $0x184] sm:$0xf]
        %v2584 = vld [vmem:[%s1011 + $0x188] sm:$0xf]
        %v2585 = vld [vmem:[%s1011 + $0x18c] sm:$0xf]
        %v2586 = vld [vmem:[%s1011 + $0x190] sm:$0xf]
        %v2587 = vld [vmem:[%s1011 + $0x194] sm:$0xf]
        %v2588 = vld [vmem:[%s1011 + $0x198] sm:$0xf]
        %v2589 = vld [vmem:[%s1011 + $0x19c] sm:$0xf]
        %v2590 = vld [vmem:[%s1011 + $0x1a0] sm:$0xf]
        %v2591 = vld [vmem:[%s1011 + $0x1a4] sm:$0xf]
        %v2592 = vld [vmem:[%s1011 + $0x1a8] sm:$0xf]
        %v2593 = vld [vmem:[%s1011 + $0x1ac] sm:$0xf]
        %v2594 = vld [vmem:[%s1011 + $0x1b0] sm:$0xf]
        %v2595 = vld [vmem:[%s1011 + $0x1b4] sm:$0xf]
        %v2596 = vld [vmem:[%s1011 + $0x1b8] sm:$0xf]
        %v2597 = vld [vmem:[%s1011 + $0x1bc] sm:$0xf]
        %v2598 = vld [vmem:[%s1011 + $0x1c0] sm:$0xf]
        %v2599 = vld [vmem:[%s1011 + $0x1c4] sm:$0xf]
        %v2600 = vld [vmem:[%s1011 + $0x1c8] sm:$0xf]
        %v2601 = vld [vmem:[%s1011 + $0x1cc] sm:$0xf]
        %v2602 = vld [vmem:[%s1011 + $0x1d0] sm:$0xf]
        %v2603 = vld [vmem:[%s1011 + $0x1d4] sm:$0xf]
        %v2604 = vld [vmem:[%s1011 + $0x1d8] sm:$0xf]
        %v2605 = vld [vmem:[%s1011 + $0x1dc] sm:$0xf]
        %v2606 = vld [vmem:[%s1011 + $0x1e0] sm:$0xf]
        %v2607 = vld [vmem:[%s1011 + $0x1e4] sm:$0xf]
        %v2608 = vld [vmem:[%s1011 + $0x1e8] sm:$0xf]
        %v2609 = vld [vmem:[%s1011 + $0x1ec] sm:$0xf]
        %v2610 = vld [vmem:[%s1011 + $0x1f0] sm:$0xf]
        %v2611 = vld [vmem:[%s1011 + $0x1f4] sm:$0xf]
        %v2612 = vld [vmem:[%s1011 + $0x1f8] sm:$0xf]
        %v2613 = vld [vmem:[%s1011 + $0x1fc] sm:$0xf]
        %v2614 = vld [vmem:[%s1011 + $0x200] sm:$0xf]
        %v2615 = vld [vmem:[%s1011 + $0x204] sm:$0xf]
        %v2616 = vld [vmem:[%s1011 + $0x208] sm:$0xf]
        %v2617 = vld [vmem:[%s1011 + $0x20c] sm:$0xf]
        %v2618 = vld [vmem:[%s1011 + $0x210] sm:$0xf]
        %v2619 = vld [vmem:[%s1011 + $0x214] sm:$0xf]
        %v2620 = vld [vmem:[%s1011 + $0x218] sm:$0xf]
        %v2621 = vld [vmem:[%s1011 + $0x21c] sm:$0xf]
        %v2622 = vld [vmem:[%s1011 + $0x220] sm:$0xf]
        %v2623 = vld [vmem:[%s1011 + $0x224] sm:$0xf]
        %v2624 = vld [vmem:[%s1011 + $0x228] sm:$0xf]
        %v2625 = vld [vmem:[%s1011 + $0x22c] sm:$0xf]
        %v2626 = vld [vmem:[%s1011 + $0x230] sm:$0xf]
        %v2627 = vld [vmem:[%s1011 + $0x234] sm:$0xf]
        %v2628 = vld [vmem:[%s1011 + $0x238] sm:$0xf]
        %v2629 = vld [vmem:[%s1011 + $0x23c] sm:$0xf]
        %v2630 = vld [vmem:[%s1011 + $0x240] sm:$0xf]
        %v2631 = vld [vmem:[%s1011 + $0x244] sm:$0xf]
        %v2632 = vld [vmem:[%s1011 + $0x248] sm:$0xf]
        %v2633 = vld [vmem:[%s1011 + $0x24c] sm:$0xf]
        %v2634 = vld [vmem:[%s1011 + $0x250] sm:$0xf]
        %v2635 = vld [vmem:[%s1011 + $0x254] sm:$0xf]
        %v2636 = vld [vmem:[%s1011 + $0x258] sm:$0xf]
        %v2637 = vld [vmem:[%s1011 + $0x25c] sm:$0xf]
        %v2638 = vld [vmem:[%s1011 + $0x260] sm:$0xf]
        %v2639 = vld [vmem:[%s1011 + $0x264] sm:$0xf]
        %v2640 = vld [vmem:[%s1011 + $0x268] sm:$0xf]
        %v2641 = vld [vmem:[%s1011 + $0x26c] sm:$0xf]
        %v2642 = vld [vmem:[%s1011 + $0x270] sm:$0xf]
        %v2643 = vld [vmem:[%s1011 + $0x274] sm:$0xf]
        %v2644 = vld [vmem:[%s1011 + $0x278] sm:$0xf]
        %v2645 = vld [vmem:[%s1011 + $0x27c] sm:$0xf]
        %v2646 = vld [vmem:[%s1011 + $0x280] sm:$0xf]
        %v2647 = vld [vmem:[%s1011 + $0x284] sm:$0xf]
        %v2648 = vld [vmem:[%s1011 + $0x288] sm:$0xf]
        %v2649 = vld [vmem:[%s1011 + $0x28c] sm:$0xf]
        %v2650 = vld [vmem:[%s1011 + $0x290] sm:$0xf]
        %v2651 = vld [vmem:[%s1011 + $0x294] sm:$0xf]
        %v2652 = vld [vmem:[%s1011 + $0x298] sm:$0xf]
        %v2653 = vld [vmem:[%s1011 + $0x29c] sm:$0xf]
        %v2654 = vld [vmem:[%s1011 + $0x2a0] sm:$0xf]
        %v2655 = vld [vmem:[%s1011 + $0x2a4] sm:$0xf]
        %v2656 = vld [vmem:[%s1011 + $0x2a8] sm:$0xf]
        %v2657 = vld [vmem:[%s1011 + $0x2ac] sm:$0xf]
        %v2658 = vld [vmem:[%s1011 + $0x2b0] sm:$0xf]
        %v2659 = vld [vmem:[%s1011 + $0x2b4] sm:$0xf]
        %v2660 = vld [vmem:[%s1011 + $0x2b8] sm:$0xf]
        %v2661 = vld [vmem:[%s1011 + $0x2bc] sm:$0xf]
        %v2662 = vld [vmem:[%s1011 + $0x2c0] sm:$0xf]
        %v2663 = vld [vmem:[%s1011 + $0x2c4] sm:$0xf]
        %v2664 = vld [vmem:[%s1011 + $0x2c8] sm:$0xf]
        %v2665 = vld [vmem:[%s1011 + $0x2cc] sm:$0xf]
        %v2666 = vld [vmem:[%s1011 + $0x2d0] sm:$0xf]
        %v2667 = vld [vmem:[%s1011 + $0x2d4] sm:$0xf]
        %v2668 = vld [vmem:[%s1011 + $0x2d8] sm:$0xf]
        %v2669 = vld [vmem:[%s1011 + $0x2dc] sm:$0xf]
        %v2670 = vld [vmem:[%s1011 + $0x2e0] sm:$0xf]
        %v2671 = vld [vmem:[%s1011 + $0x2e4] sm:$0xf]
        %v2672 = vld [vmem:[%s1011 + $0x2e8] sm:$0xf]
        %v2673 = vld [vmem:[%s1011 + $0x2ec] sm:$0xf]
        %v2674 = vld [vmem:[%s1011 + $0x2f0] sm:$0xf]
        %v2675 = vld [vmem:[%s1011 + $0x2f4] sm:$0xf]
        %v2676 = vld [vmem:[%s1011 + $0x2f8] sm:$0xf]
        %v2677 = vld [vmem:[%s1011 + $0x2fc] sm:$0xf]
        %v2678 = vld [vmem:[%s1011 + $0x300] sm:$0xf]
        %v2679 = vld [vmem:[%s1011 + $0x304] sm:$0xf]
        %v2680 = vld [vmem:[%s1011 + $0x308] sm:$0xf]
        %v2681 = vld [vmem:[%s1011 + $0x30c] sm:$0xf]
        %v2682 = vld [vmem:[%s1011 + $0x310] sm:$0xf]
        %v2683 = vld [vmem:[%s1011 + $0x314] sm:$0xf]
        %v2684 = vld [vmem:[%s1011 + $0x318] sm:$0xf]
        %v2685 = vld [vmem:[%s1011 + $0x31c] sm:$0xf]
        %v2686 = vld [vmem:[%s1011 + $0x320] sm:$0xf]
        %v2687 = vld [vmem:[%s1011 + $0x324] sm:$0xf]
        %v2688 = vld [vmem:[%s1011 + $0x328] sm:$0xf]
        %v2689 = vld [vmem:[%s1011 + $0x32c] sm:$0xf]
        %v2690 = vld [vmem:[%s1011 + $0x330] sm:$0xf]
        %v2691 = vld [vmem:[%s1011 + $0x334] sm:$0xf]
        %v2692 = vld [vmem:[%s1011 + $0x338] sm:$0xf]
        %v2693 = vld [vmem:[%s1011 + $0x33c] sm:$0xf]
        %v2694 = vld [vmem:[%s1011 + $0x340] sm:$0xf]
        %v2695 = vld [vmem:[%s1011 + $0x344] sm:$0xf]
        %v2696 = vld [vmem:[%s1011 + $0x348] sm:$0xf]
        %v2697 = vld [vmem:[%s1011 + $0x34c] sm:$0xf]
        %v2698 = vld [vmem:[%s1011 + $0x350] sm:$0xf]
        %v2699 = vld [vmem:[%s1011 + $0x354] sm:$0xf]
        %v2700 = vld [vmem:[%s1011 + $0x358] sm:$0xf]
        %v2701 = vld [vmem:[%s1011 + $0x35c] sm:$0xf]
        %v2702 = vld [vmem:[%s1011 + $0x360] sm:$0xf]
        %v2703 = vld [vmem:[%s1011 + $0x364] sm:$0xf]
        %v2704 = vld [vmem:[%s1011 + $0x368] sm:$0xf]
        %v2705 = vld [vmem:[%s1011 + $0x36c] sm:$0xf]
        %v2706 = vld [vmem:[%s1011 + $0x370] sm:$0xf]
        %v2707 = vld [vmem:[%s1011 + $0x374] sm:$0xf]
        %v2708 = vld [vmem:[%s1011 + $0x378] sm:$0xf]
        %v2709 = vld [vmem:[%s1011 + $0x37c] sm:$0xf]
        %v2710 = vld [vmem:[%s1011 + $0x380] sm:$0xf]
        %v2711 = vld [vmem:[%s1011 + $0x384] sm:$0xf]
        %v2712 = vld [vmem:[%s1011 + $0x388] sm:$0xf]
        %v2713 = vld [vmem:[%s1011 + $0x38c] sm:$0xf]
        %v2714 = vld [vmem:[%s1011 + $0x390] sm:$0xf]
        %v2715 = vld [vmem:[%s1011 + $0x394] sm:$0xf]
        %v2716 = vld [vmem:[%s1011 + $0x398] sm:$0xf]
        %v2717 = vld [vmem:[%s1011 + $0x39c] sm:$0xf]
        %v2718 = vld [vmem:[%s1011 + $0x3a0] sm:$0xf]
        %v2719 = vld [vmem:[%s1011 + $0x3a4] sm:$0xf]
        %v2720 = vld [vmem:[%s1011 + $0x3a8] sm:$0xf]
        %v2721 = vld [vmem:[%s1011 + $0x3ac] sm:$0xf]
        %v2722 = vld [vmem:[%s1011 + $0x3b0] sm:$0xf]
        %v2723 = vld [vmem:[%s1011 + $0x3b4] sm:$0xf]
        %v2724 = vld [vmem:[%s1011 + $0x3b8] sm:$0xf]
        %v2725 = vld [vmem:[%s1011 + $0x3bc] sm:$0xf]
        %v2726 = vld [vmem:[%s1011 + $0x3c0] sm:$0xf]
        %v2727 = vld [vmem:[%s1011 + $0x3c4] sm:$0xf]
        %v2728 = vld [vmem:[%s1011 + $0x3c8] sm:$0xf]
        %v2729 = vld [vmem:[%s1011 + $0x3cc] sm:$0xf]
        %v2730 = vld [vmem:[%s1011 + $0x3d0] sm:$0xf]
        %v2731 = vld [vmem:[%s1011 + $0x3d4] sm:$0xf]
        %v2732 = vld [vmem:[%s1011 + $0x3d8] sm:$0xf]
        %v2733 = vld [vmem:[%s1011 + $0x3dc] sm:$0xf]
        %v2734 = vld [vmem:[%s1011 + $0x3e0] sm:$0xf]
        %v2735 = vld [vmem:[%s1011 + $0x3e4] sm:$0xf]
        %v2736 = vld [vmem:[%s1011 + $0x3e8] sm:$0xf]
        %v2737 = vld [vmem:[%s1011 + $0x3ec] sm:$0xf]
        %v2738 = vld [vmem:[%s1011 + $0x3f0] sm:$0xf]
        %v2739 = vld [vmem:[%s1011 + $0x3f4] sm:$0xf]
        %v2740 = vld [vmem:[%s1011 + $0x3f8] sm:$0xf]
        %v2741 = vld [vmem:[%s1011 + $0x3fc] sm:$0xf]
        %v2742 = vunpack.c.l.bf16 %v2486
        %v2743 = vunpack.c.l.bf16 %v2487
        %v2744 = vunpack.c.l.bf16 %v2488
        %v2745 = vunpack.c.l.bf16 %v2489
        %v2746 = vunpack.c.l.bf16 %v2490
        %v2747 = vunpack.c.l.bf16 %v2491
        %v2748 = vunpack.c.l.bf16 %v2492
        %v2749 = vunpack.c.l.bf16 %v2493
        %v2750 = vunpack.c.l.bf16 %v2494
        %v2751 = vunpack.c.l.bf16 %v2495
        %v2752 = vunpack.c.l.bf16 %v2496
        %v2753 = vunpack.c.l.bf16 %v2497
        %v2754 = vunpack.c.l.bf16 %v2498
        %v2755 = vunpack.c.l.bf16 %v2499
        %v2756 = vunpack.c.l.bf16 %v2500
        %v2757 = vunpack.c.l.bf16 %v2501
        %v2758 = vunpack.c.l.bf16 %v2502
        %v2759 = vunpack.c.l.bf16 %v2503
        %v2760 = vunpack.c.l.bf16 %v2504
        %v2761 = vunpack.c.l.bf16 %v2505
        %v2762 = vunpack.c.l.bf16 %v2506
        %v2763 = vunpack.c.l.bf16 %v2507
        %v2764 = vunpack.c.l.bf16 %v2508
        %v2765 = vunpack.c.l.bf16 %v2509
        %v2766 = vunpack.c.l.bf16 %v2510
        %v2767 = vunpack.c.l.bf16 %v2511
        %v2768 = vunpack.c.l.bf16 %v2512
        %v2769 = vunpack.c.l.bf16 %v2513
        %v2770 = vunpack.c.l.bf16 %v2514
        %v2771 = vunpack.c.l.bf16 %v2515
        %v2772 = vunpack.c.l.bf16 %v2516
        %v2773 = vunpack.c.l.bf16 %v2517
        %v2774 = vunpack.c.l.bf16 %v2518
        %v2775 = vunpack.c.l.bf16 %v2519
        %v2776 = vunpack.c.l.bf16 %v2520
        %v2777 = vunpack.c.l.bf16 %v2521
        %v2778 = vunpack.c.l.bf16 %v2522
        %v2779 = vunpack.c.l.bf16 %v2523
        %v2780 = vunpack.c.l.bf16 %v2524
        %v2781 = vunpack.c.l.bf16 %v2525
        %v2782 = vunpack.c.l.bf16 %v2526
        %v2783 = vunpack.c.l.bf16 %v2527
        %v2784 = vunpack.c.l.bf16 %v2528
        %v2785 = vunpack.c.l.bf16 %v2529
        %v2786 = vunpack.c.l.bf16 %v2530
        %v2787 = vunpack.c.l.bf16 %v2531
        %v2788 = vunpack.c.l.bf16 %v2532
        %v2789 = vunpack.c.l.bf16 %v2533
        %v2790 = vunpack.c.l.bf16 %v2534
        %v2791 = vunpack.c.l.bf16 %v2535
        %v2792 = vunpack.c.l.bf16 %v2536
        %v2793 = vunpack.c.l.bf16 %v2537
        %v2794 = vunpack.c.l.bf16 %v2538
        %v2795 = vunpack.c.l.bf16 %v2539
        %v2796 = vunpack.c.l.bf16 %v2540
        %v2797 = vunpack.c.l.bf16 %v2541
        %v2798 = vunpack.c.l.bf16 %v2542
        %v2799 = vunpack.c.l.bf16 %v2543
        %v2800 = vunpack.c.l.bf16 %v2544
        %v2801 = vunpack.c.l.bf16 %v2545
        %v2802 = vunpack.c.l.bf16 %v2546
        %v2803 = vunpack.c.l.bf16 %v2547
        %v2804 = vunpack.c.l.bf16 %v2548
        %v2805 = vunpack.c.l.bf16 %v2549
        %v2806 = vunpack.c.l.bf16 %v2550
        %v2807 = vunpack.c.l.bf16 %v2551
        %v2808 = vunpack.c.l.bf16 %v2552
        %v2809 = vunpack.c.l.bf16 %v2553
        %v2810 = vunpack.c.l.bf16 %v2554
        %v2811 = vunpack.c.l.bf16 %v2555
        %v2812 = vunpack.c.l.bf16 %v2556
        %v2813 = vunpack.c.l.bf16 %v2557
        %v2814 = vunpack.c.l.bf16 %v2558
        %v2815 = vunpack.c.l.bf16 %v2559
        %v2816 = vunpack.c.l.bf16 %v2560
        %v2817 = vunpack.c.l.bf16 %v2561
        %v2818 = vunpack.c.l.bf16 %v2562
        %v2819 = vunpack.c.l.bf16 %v2563
        %v2820 = vunpack.c.l.bf16 %v2564
        %v2821 = vunpack.c.l.bf16 %v2565
        %v2822 = vunpack.c.l.bf16 %v2566
        %v2823 = vunpack.c.l.bf16 %v2567
        %v2824 = vunpack.c.l.bf16 %v2568
        %v2825 = vunpack.c.l.bf16 %v2569
        %v2826 = vunpack.c.l.bf16 %v2570
        %v2827 = vunpack.c.l.bf16 %v2571
        %v2828 = vunpack.c.l.bf16 %v2572
        %v2829 = vunpack.c.l.bf16 %v2573
        %v2830 = vunpack.c.l.bf16 %v2574
        %v2831 = vunpack.c.l.bf16 %v2575
        %v2832 = vunpack.c.l.bf16 %v2576
        %v2833 = vunpack.c.l.bf16 %v2577
        %v2834 = vunpack.c.l.bf16 %v2578
        %v2835 = vunpack.c.l.bf16 %v2579
        %v2836 = vunpack.c.l.bf16 %v2580
        %v2837 = vunpack.c.l.bf16 %v2581
        %v2838 = vunpack.c.l.bf16 %v2582
        %v2839 = vunpack.c.l.bf16 %v2583
        %v2840 = vunpack.c.l.bf16 %v2584
        %v2841 = vunpack.c.l.bf16 %v2585
        %v2842 = vunpack.c.l.bf16 %v2586
        %v2843 = vunpack.c.l.bf16 %v2587
        %v2844 = vunpack.c.l.bf16 %v2588
        %v2845 = vunpack.c.l.bf16 %v2589
        %v2846 = vunpack.c.l.bf16 %v2590
        %v2847 = vunpack.c.l.bf16 %v2591
        %v2848 = vunpack.c.l.bf16 %v2592
        %v2849 = vunpack.c.l.bf16 %v2593
        %v2850 = vunpack.c.l.bf16 %v2594
        %v2851 = vunpack.c.l.bf16 %v2595
        %v2852 = vunpack.c.l.bf16 %v2596
        %v2853 = vunpack.c.l.bf16 %v2597
        %v2854 = vunpack.c.l.bf16 %v2598
        %v2855 = vunpack.c.l.bf16 %v2599
        %v2856 = vunpack.c.l.bf16 %v2600
        %v2857 = vunpack.c.l.bf16 %v2601
        %v2858 = vunpack.c.l.bf16 %v2602
        %v2859 = vunpack.c.l.bf16 %v2603
        %v2860 = vunpack.c.l.bf16 %v2604
        %v2861 = vunpack.c.l.bf16 %v2605
        %v2862 = vunpack.c.l.bf16 %v2606
        %v2863 = vunpack.c.l.bf16 %v2607
        %v2864 = vunpack.c.l.bf16 %v2608
        %v2865 = vunpack.c.l.bf16 %v2609
        %v2866 = vunpack.c.l.bf16 %v2610
        %v2867 = vunpack.c.l.bf16 %v2611
        %v2868 = vunpack.c.l.bf16 %v2612
        %v2869 = vunpack.c.l.bf16 %v2613
        %v2870 = vunpack.c.l.bf16 %v2614
        %v2871 = vunpack.c.l.bf16 %v2615
        %v2872 = vunpack.c.l.bf16 %v2616
        %v2873 = vunpack.c.l.bf16 %v2617
        %v2874 = vunpack.c.l.bf16 %v2618
        %v2875 = vunpack.c.l.bf16 %v2619
        %v2876 = vunpack.c.l.bf16 %v2620
        %v2877 = vunpack.c.l.bf16 %v2621
        %v2878 = vunpack.c.l.bf16 %v2622
        %v2879 = vunpack.c.l.bf16 %v2623
        %v2880 = vunpack.c.l.bf16 %v2624
        %v2881 = vunpack.c.l.bf16 %v2625
        %v2882 = vunpack.c.l.bf16 %v2626
        %v2883 = vunpack.c.l.bf16 %v2627
        %v2884 = vunpack.c.l.bf16 %v2628
        %v2885 = vunpack.c.l.bf16 %v2629
        %v2886 = vunpack.c.l.bf16 %v2630
        %v2887 = vunpack.c.l.bf16 %v2631
        %v2888 = vunpack.c.l.bf16 %v2632
        %v2889 = vunpack.c.l.bf16 %v2633
        %v2890 = vunpack.c.l.bf16 %v2634
        %v2891 = vunpack.c.l.bf16 %v2635
        %v2892 = vunpack.c.l.bf16 %v2636
        %v2893 = vunpack.c.l.bf16 %v2637
        %v2894 = vunpack.c.l.bf16 %v2638
        %v2895 = vunpack.c.l.bf16 %v2639
        %v2896 = vunpack.c.l.bf16 %v2640
        %v2897 = vunpack.c.l.bf16 %v2641
        %v2898 = vunpack.c.l.bf16 %v2642
        %v2899 = vunpack.c.l.bf16 %v2643
        %v2900 = vunpack.c.l.bf16 %v2644
        %v2901 = vunpack.c.l.bf16 %v2645
        %v2902 = vunpack.c.l.bf16 %v2646
        %v2903 = vunpack.c.l.bf16 %v2647
        %v2904 = vunpack.c.l.bf16 %v2648
        %v2905 = vunpack.c.l.bf16 %v2649
        %v2906 = vunpack.c.l.bf16 %v2650
        %v2907 = vunpack.c.l.bf16 %v2651
        %v2908 = vunpack.c.l.bf16 %v2652
        %v2909 = vunpack.c.l.bf16 %v2653
        %v2910 = vunpack.c.l.bf16 %v2654
        %v2911 = vunpack.c.l.bf16 %v2655
        %v2912 = vunpack.c.l.bf16 %v2656
        %v2913 = vunpack.c.l.bf16 %v2657
        %v2914 = vunpack.c.l.bf16 %v2658
        %v2915 = vunpack.c.l.bf16 %v2659
        %v2916 = vunpack.c.l.bf16 %v2660
        %v2917 = vunpack.c.l.bf16 %v2661
        %v2918 = vunpack.c.l.bf16 %v2662
        %v2919 = vunpack.c.l.bf16 %v2663
        %v2920 = vunpack.c.l.bf16 %v2664
        %v2921 = vunpack.c.l.bf16 %v2665
        %v2922 = vunpack.c.l.bf16 %v2666
        %v2923 = vunpack.c.l.bf16 %v2667
        %v2924 = vunpack.c.l.bf16 %v2668
        %v2925 = vunpack.c.l.bf16 %v2669
        %v2926 = vunpack.c.l.bf16 %v2670
        %v2927 = vunpack.c.l.bf16 %v2671
        %v2928 = vunpack.c.l.bf16 %v2672
        %v2929 = vunpack.c.l.bf16 %v2673
        %v2930 = vunpack.c.l.bf16 %v2674
        %v2931 = vunpack.c.l.bf16 %v2675
        %v2932 = vunpack.c.l.bf16 %v2676
        %v2933 = vunpack.c.l.bf16 %v2677
        %v2934 = vunpack.c.l.bf16 %v2678
        %v2935 = vunpack.c.l.bf16 %v2679
        %v2936 = vunpack.c.l.bf16 %v2680
        %v2937 = vunpack.c.l.bf16 %v2681
        %v2938 = vunpack.c.l.bf16 %v2682
        %v2939 = vunpack.c.l.bf16 %v2683
        %v2940 = vunpack.c.l.bf16 %v2684
        %v2941 = vunpack.c.l.bf16 %v2685
        %v2942 = vunpack.c.l.bf16 %v2686
        %v2943 = vunpack.c.l.bf16 %v2687
        %v2944 = vunpack.c.l.bf16 %v2688
        %v2945 = vunpack.c.l.bf16 %v2689
        %v2946 = vunpack.c.l.bf16 %v2690
        %v2947 = vunpack.c.l.bf16 %v2691
        %v2948 = vunpack.c.l.bf16 %v2692
        %v2949 = vunpack.c.l.bf16 %v2693
        %v2950 = vunpack.c.l.bf16 %v2694
        %v2951 = vunpack.c.l.bf16 %v2695
        %v2952 = vunpack.c.l.bf16 %v2696
        %v2953 = vunpack.c.l.bf16 %v2697
        %v2954 = vunpack.c.l.bf16 %v2698
        %v2955 = vunpack.c.l.bf16 %v2699
        %v2956 = vunpack.c.l.bf16 %v2700
        %v2957 = vunpack.c.l.bf16 %v2701
        %v2958 = vunpack.c.l.bf16 %v2702
        %v2959 = vunpack.c.l.bf16 %v2703
        %v2960 = vunpack.c.l.bf16 %v2704
        %v2961 = vunpack.c.l.bf16 %v2705
        %v2962 = vunpack.c.l.bf16 %v2706
        %v2963 = vunpack.c.l.bf16 %v2707
        %v2964 = vunpack.c.l.bf16 %v2708
        %v2965 = vunpack.c.l.bf16 %v2709
        %v2966 = vunpack.c.l.bf16 %v2710
        %v2967 = vunpack.c.l.bf16 %v2711
        %v2968 = vunpack.c.l.bf16 %v2712
        %v2969 = vunpack.c.l.bf16 %v2713
        %v2970 = vunpack.c.l.bf16 %v2714
        %v2971 = vunpack.c.l.bf16 %v2715
        %v2972 = vunpack.c.l.bf16 %v2716
        %v2973 = vunpack.c.l.bf16 %v2717
        %v2974 = vunpack.c.l.bf16 %v2718
        %v2975 = vunpack.c.l.bf16 %v2719
        %v2976 = vunpack.c.l.bf16 %v2720
        %v2977 = vunpack.c.l.bf16 %v2721
        %v2978 = vunpack.c.l.bf16 %v2722
        %v2979 = vunpack.c.l.bf16 %v2723
        %v2980 = vunpack.c.l.bf16 %v2724
        %v2981 = vunpack.c.l.bf16 %v2725
        %v2982 = vunpack.c.l.bf16 %v2726
        %v2983 = vunpack.c.l.bf16 %v2727
        %v2984 = vunpack.c.l.bf16 %v2728
        %v2985 = vunpack.c.l.bf16 %v2729
        %v2986 = vunpack.c.l.bf16 %v2730
        %v2987 = vunpack.c.l.bf16 %v2731
        %v2988 = vunpack.c.l.bf16 %v2732
        %v2989 = vunpack.c.l.bf16 %v2733
        %v2990 = vunpack.c.l.bf16 %v2734
        %v2991 = vunpack.c.l.bf16 %v2735
        %v2992 = vunpack.c.l.bf16 %v2736
        %v2993 = vunpack.c.l.bf16 %v2737
        %v2994 = vunpack.c.l.bf16 %v2738
        %v2995 = vunpack.c.l.bf16 %v2739
        %v2996 = vunpack.c.l.bf16 %v2740
        %v2997 = vunpack.c.l.bf16 %v2741
        %v2998 = vld [vmem:[%s1014] sm:$0x1]
        %v3000 = vperm.slane %v2998, 0
        %3002 = vmatpush.msra.mxu0 %v2757
        %3003 = vmatpush.msra.mxu0 %v2756
        %3004 = vmatpush.msra.mxu0 %v2755
        %3005 = vmatpush.msra.mxu0 %v2754
        %3006 = vmatpush.msra.mxu0 %v2753
        %3007 = vmatpush.msra.mxu0 %v2752
        %3008 = vmatpush.msra.mxu0 %v2751
        %3009 = vmatpush.msra.mxu0 %v2750
        %3010 = vmatpush.msra.mxu0 %v2749
        %3011 = vmatpush.msra.mxu0 %v2748
        %3012 = vmatpush.msra.mxu0 %v2747
        %3013 = vmatpush.msra.mxu0 %v2746
        %3014 = vmatpush.msra.mxu0 %v2745
        %3015 = vmatpush.msra.mxu0 %v2744
        %3016 = vmatpush.msra.mxu0 %v2743
        %3017 = vmatpush.msra.mxu0 %v2742
        %3018 = vmatmul.f32.gmra.mxu0 %v2454
        %v3019 = vpop.f32.mrf.mxu0
        %v3020 = vadd.f32 %v3000, %v3019
        %3021 = vmatmul.f32.gmra.mxu0 %v2470
        %v3022 = vpop.f32.mrf.mxu0
        %v3023 = vadd.f32 %v3000, %v3022
        %3024 = vdwg.mxu0
        %3025 = vmatpush.msra.mxu0 %v2773
        %3026 = vmatpush.msra.mxu0 %v2772
        %3027 = vmatpush.msra.mxu0 %v2771
        %3028 = vmatpush.msra.mxu0 %v2770
        %3029 = vmatpush.msra.mxu0 %v2769
        %3030 = vmatpush.msra.mxu0 %v2768
        %3031 = vmatpush.msra.mxu0 %v2767
        %3032 = vmatpush.msra.mxu0 %v2766
        %3033 = vmatpush.msra.mxu0 %v2765
        %3034 = vmatpush.msra.mxu0 %v2764
        %3035 = vmatpush.msra.mxu0 %v2763
        %3036 = vmatpush.msra.mxu0 %v2762
        %3037 = vmatpush.msra.mxu0 %v2761
        %3038 = vmatpush.msra.mxu0 %v2760
        %3039 = vmatpush.msra.mxu0 %v2759
        %3040 = vmatpush.msra.mxu0 %v2758
        %3041 = vmatmul.f32.gmra.mxu0 %v2455
        %v3042 = vpop.f32.mrf.mxu0
        %v3043 = vadd.f32 %v3020, %v3042
        %3044 = vmatmul.f32.gmra.mxu0 %v2471
        %v3045 = vpop.f32.mrf.mxu0
        %v3046 = vadd.f32 %v3023, %v3045
        %3047 = vdwg.mxu0
        %3048 = vmatpush.msra.mxu0 %v2789
        %3049 = vmatpush.msra.mxu0 %v2788
        %3050 = vmatpush.msra.mxu0 %v2787
        %3051 = vmatpush.msra.mxu0 %v2786
        %3052 = vmatpush.msra.mxu0 %v2785
        %3053 = vmatpush.msra.mxu0 %v2784
        %3054 = vmatpush.msra.mxu0 %v2783
        %3055 = vmatpush.msra.mxu0 %v2782
        %3056 = vmatpush.msra.mxu0 %v2781
        %3057 = vmatpush.msra.mxu0 %v2780
        %3058 = vmatpush.msra.mxu0 %v2779
        %3059 = vmatpush.msra.mxu0 %v2778
        %3060 = vmatpush.msra.mxu0 %v2777
        %3061 = vmatpush.msra.mxu0 %v2776
        %3062 = vmatpush.msra.mxu0 %v2775
        %3063 = vmatpush.msra.mxu0 %v2774
        %3064 = vmatmul.f32.gmra.mxu0 %v2456
        %v3065 = vpop.f32.mrf.mxu0
        %v3066 = vadd.f32 %v3043, %v3065
        %3067 = vmatmul.f32.gmra.mxu0 %v2472
        %v3068 = vpop.f32.mrf.mxu0
        %v3069 = vadd.f32 %v3046, %v3068
        %3070 = vdwg.mxu0
        %3071 = vmatpush.msra.mxu0 %v2805
        %3072 = vmatpush.msra.mxu0 %v2804
        %3073 = vmatpush.msra.mxu0 %v2803
        %3074 = vmatpush.msra.mxu0 %v2802
        %3075 = vmatpush.msra.mxu0 %v2801
        %3076 = vmatpush.msra.mxu0 %v2800
        %3077 = vmatpush.msra.mxu0 %v2799
        %3078 = vmatpush.msra.mxu0 %v2798
        %3079 = vmatpush.msra.mxu0 %v2797
        %3080 = vmatpush.msra.mxu0 %v2796
        %3081 = vmatpush.msra.mxu0 %v2795
        %3082 = vmatpush.msra.mxu0 %v2794
        %3083 = vmatpush.msra.mxu0 %v2793
        %3084 = vmatpush.msra.mxu0 %v2792
        %3085 = vmatpush.msra.mxu0 %v2791
        %3086 = vmatpush.msra.mxu0 %v2790
        %3087 = vmatmul.f32.gmra.mxu0 %v2457
        %v3088 = vpop.f32.mrf.mxu0
        %v3089 = vadd.f32 %v3066, %v3088
        %3090 = vmatmul.f32.gmra.mxu0 %v2473
        %v3091 = vpop.f32.mrf.mxu0
        %v3092 = vadd.f32 %v3069, %v3091
        %3093 = vdwg.mxu0
        %3094 = vmatpush.msra.mxu0 %v2821
        %3095 = vmatpush.msra.mxu0 %v2820
        %3096 = vmatpush.msra.mxu0 %v2819
        %3097 = vmatpush.msra.mxu0 %v2818
        %3098 = vmatpush.msra.mxu0 %v2817
        %3099 = vmatpush.msra.mxu0 %v2816
        %3100 = vmatpush.msra.mxu0 %v2815
        %3101 = vmatpush.msra.mxu0 %v2814
        %3102 = vmatpush.msra.mxu0 %v2813
        %3103 = vmatpush.msra.mxu0 %v2812
        %3104 = vmatpush.msra.mxu0 %v2811
        %3105 = vmatpush.msra.mxu0 %v2810
        %3106 = vmatpush.msra.mxu0 %v2809
        %3107 = vmatpush.msra.mxu0 %v2808
        %3108 = vmatpush.msra.mxu0 %v2807
        %3109 = vmatpush.msra.mxu0 %v2806
        %3110 = vmatmul.f32.gmra.mxu0 %v2458
        %v3111 = vpop.f32.mrf.mxu0
        %v3112 = vadd.f32 %v3089, %v3111
        %3113 = vmatmul.f32.gmra.mxu0 %v2474
        %v3114 = vpop.f32.mrf.mxu0
        %v3115 = vadd.f32 %v3092, %v3114
        %3116 = vdwg.mxu0
        %3117 = vmatpush.msra.mxu0 %v2837
        %3118 = vmatpush.msra.mxu0 %v2836
        %3119 = vmatpush.msra.mxu0 %v2835
        %3120 = vmatpush.msra.mxu0 %v2834
        %3121 = vmatpush.msra.mxu0 %v2833
        %3122 = vmatpush.msra.mxu0 %v2832
        %3123 = vmatpush.msra.mxu0 %v2831
        %3124 = vmatpush.msra.mxu0 %v2830
        %3125 = vmatpush.msra.mxu0 %v2829
        %3126 = vmatpush.msra.mxu0 %v2828
        %3127 = vmatpush.msra.mxu0 %v2827
        %3128 = vmatpush.msra.mxu0 %v2826
        %3129 = vmatpush.msra.mxu0 %v2825
        %3130 = vmatpush.msra.mxu0 %v2824
        %3131 = vmatpush.msra.mxu0 %v2823
        %3132 = vmatpush.msra.mxu0 %v2822
        %3133 = vmatmul.f32.gmra.mxu0 %v2459
        %v3134 = vpop.f32.mrf.mxu0
        %v3135 = vadd.f32 %v3112, %v3134
        %3136 = vmatmul.f32.gmra.mxu0 %v2475
        %v3137 = vpop.f32.mrf.mxu0
        %v3138 = vadd.f32 %v3115, %v3137
        %3139 = vdwg.mxu0
        %3140 = vmatpush.msra.mxu0 %v2853
        %3141 = vmatpush.msra.mxu0 %v2852
        %3142 = vmatpush.msra.mxu0 %v2851
        %3143 = vmatpush.msra.mxu0 %v2850
        %3144 = vmatpush.msra.mxu0 %v2849
        %3145 = vmatpush.msra.mxu0 %v2848
        %3146 = vmatpush.msra.mxu0 %v2847
        %3147 = vmatpush.msra.mxu0 %v2846
        %3148 = vmatpush.msra.mxu0 %v2845
        %3149 = vmatpush.msra.mxu0 %v2844
        %3150 = vmatpush.msra.mxu0 %v2843
        %3151 = vmatpush.msra.mxu0 %v2842
        %3152 = vmatpush.msra.mxu0 %v2841
        %3153 = vmatpush.msra.mxu0 %v2840
        %3154 = vmatpush.msra.mxu0 %v2839
        %3155 = vmatpush.msra.mxu0 %v2838
        %3156 = vmatmul.f32.gmra.mxu0 %v2460
        %v3157 = vpop.f32.mrf.mxu0
        %v3158 = vadd.f32 %v3135, %v3157
        %3159 = vmatmul.f32.gmra.mxu0 %v2476
        %v3160 = vpop.f32.mrf.mxu0
        %v3161 = vadd.f32 %v3138, %v3160
        %3162 = vdwg.mxu0
        %3163 = vmatpush.msra.mxu0 %v2869
        %3164 = vmatpush.msra.mxu0 %v2868
        %3165 = vmatpush.msra.mxu0 %v2867
        %3166 = vmatpush.msra.mxu0 %v2866
        %3167 = vmatpush.msra.mxu0 %v2865
        %3168 = vmatpush.msra.mxu0 %v2864
        %3169 = vmatpush.msra.mxu0 %v2863
        %3170 = vmatpush.msra.mxu0 %v2862
        %3171 = vmatpush.msra.mxu0 %v2861
        %3172 = vmatpush.msra.mxu0 %v2860
        %3173 = vmatpush.msra.mxu0 %v2859
        %3174 = vmatpush.msra.mxu0 %v2858
        %3175 = vmatpush.msra.mxu0 %v2857
        %3176 = vmatpush.msra.mxu0 %v2856
        %3177 = vmatpush.msra.mxu0 %v2855
        %3178 = vmatpush.msra.mxu0 %v2854
        %3179 = vmatmul.f32.gmra.mxu0 %v2461
        %v3180 = vpop.f32.mrf.mxu0
        %v3181 = vadd.f32 %v3158, %v3180
        %3182 = vmatmul.f32.gmra.mxu0 %v2477
        %v3183 = vpop.f32.mrf.mxu0
        %v3184 = vadd.f32 %v3161, %v3183
        %3185 = vdwg.mxu0
        %3186 = vmatpush.msra.mxu0 %v2885
        %3187 = vmatpush.msra.mxu0 %v2884
        %3188 = vmatpush.msra.mxu0 %v2883
        %3189 = vmatpush.msra.mxu0 %v2882
        %3190 = vmatpush.msra.mxu0 %v2881
        %3191 = vmatpush.msra.mxu0 %v2880
        %3192 = vmatpush.msra.mxu0 %v2879
        %3193 = vmatpush.msra.mxu0 %v2878
        %3194 = vmatpush.msra.mxu0 %v2877
        %3195 = vmatpush.msra.mxu0 %v2876
        %3196 = vmatpush.msra.mxu0 %v2875
        %3197 = vmatpush.msra.mxu0 %v2874
        %3198 = vmatpush.msra.mxu0 %v2873
        %3199 = vmatpush.msra.mxu0 %v2872
        %3200 = vmatpush.msra.mxu0 %v2871
        %3201 = vmatpush.msra.mxu0 %v2870
        %3202 = vmatmul.f32.gmra.mxu0 %v2462
        %v3203 = vpop.f32.mrf.mxu0
        %v3204 = vadd.f32 %v3181, %v3203
        %3205 = vmatmul.f32.gmra.mxu0 %v2478
        %v3206 = vpop.f32.mrf.mxu0
        %v3207 = vadd.f32 %v3184, %v3206
        %3208 = vdwg.mxu0
        %3209 = vmatpush.msra.mxu0 %v2901
        %3210 = vmatpush.msra.mxu0 %v2900
        %3211 = vmatpush.msra.mxu0 %v2899
        %3212 = vmatpush.msra.mxu0 %v2898
        %3213 = vmatpush.msra.mxu0 %v2897
        %3214 = vmatpush.msra.mxu0 %v2896
        %3215 = vmatpush.msra.mxu0 %v2895
        %3216 = vmatpush.msra.mxu0 %v2894
        %3217 = vmatpush.msra.mxu0 %v2893
        %3218 = vmatpush.msra.mxu0 %v2892
        %3219 = vmatpush.msra.mxu0 %v2891
        %3220 = vmatpush.msra.mxu0 %v2890
        %3221 = vmatpush.msra.mxu0 %v2889
        %3222 = vmatpush.msra.mxu0 %v2888
        %3223 = vmatpush.msra.mxu0 %v2887
        %3224 = vmatpush.msra.mxu0 %v2886
        %3225 = vmatmul.f32.gmra.mxu0 %v2463
        %v3226 = vpop.f32.mrf.mxu0
        %v3227 = vadd.f32 %v3204, %v3226
        %3228 = vmatmul.f32.gmra.mxu0 %v2479
        %v3229 = vpop.f32.mrf.mxu0
        %v3230 = vadd.f32 %v3207, %v3229
        %3231 = vdwg.mxu0
        %3232 = vmatpush.msra.mxu0 %v2917
        %3233 = vmatpush.msra.mxu0 %v2916
        %3234 = vmatpush.msra.mxu0 %v2915
        %3235 = vmatpush.msra.mxu0 %v2914
        %3236 = vmatpush.msra.mxu0 %v2913
        %3237 = vmatpush.msra.mxu0 %v2912
        %3238 = vmatpush.msra.mxu0 %v2911
        %3239 = vmatpush.msra.mxu0 %v2910
        %3240 = vmatpush.msra.mxu0 %v2909
        %3241 = vmatpush.msra.mxu0 %v2908
        %3242 = vmatpush.msra.mxu0 %v2907
        %3243 = vmatpush.msra.mxu0 %v2906
        %3244 = vmatpush.msra.mxu0 %v2905
        %3245 = vmatpush.msra.mxu0 %v2904
        %3246 = vmatpush.msra.mxu0 %v2903
        %3247 = vmatpush.msra.mxu0 %v2902
        %3248 = vmatmul.f32.gmra.mxu0 %v2464
        %v3249 = vpop.f32.mrf.mxu0
        %v3250 = vadd.f32 %v3227, %v3249
        %3251 = vmatmul.f32.gmra.mxu0 %v2480
        %v3252 = vpop.f32.mrf.mxu0
        %v3253 = vadd.f32 %v3230, %v3252
        %3254 = vdwg.mxu0
        %3255 = vmatpush.msra.mxu0 %v2933
        %3256 = vmatpush.msra.mxu0 %v2932
        %3257 = vmatpush.msra.mxu0 %v2931
        %3258 = vmatpush.msra.mxu0 %v2930
        %3259 = vmatpush.msra.mxu0 %v2929
        %3260 = vmatpush.msra.mxu0 %v2928
        %3261 = vmatpush.msra.mxu0 %v2927
        %3262 = vmatpush.msra.mxu0 %v2926
        %3263 = vmatpush.msra.mxu0 %v2925
        %3264 = vmatpush.msra.mxu0 %v2924
        %3265 = vmatpush.msra.mxu0 %v2923
        %3266 = vmatpush.msra.mxu0 %v2922
        %3267 = vmatpush.msra.mxu0 %v2921
        %3268 = vmatpush.msra.mxu0 %v2920
        %3269 = vmatpush.msra.mxu0 %v2919
        %3270 = vmatpush.msra.mxu0 %v2918
        %3271 = vmatmul.f32.gmra.mxu0 %v2465
        %v3272 = vpop.f32.mrf.mxu0
        %v3273 = vadd.f32 %v3250, %v3272
        %3274 = vmatmul.f32.gmra.mxu0 %v2481
        %v3275 = vpop.f32.mrf.mxu0
        %v3276 = vadd.f32 %v3253, %v3275
        %3277 = vdwg.mxu0
        %3278 = vmatpush.msra.mxu0 %v2949
        %3279 = vmatpush.msra.mxu0 %v2948
        %3280 = vmatpush.msra.mxu0 %v2947
        %3281 = vmatpush.msra.mxu0 %v2946
        %3282 = vmatpush.msra.mxu0 %v2945
        %3283 = vmatpush.msra.mxu0 %v2944
        %3284 = vmatpush.msra.mxu0 %v2943
        %3285 = vmatpush.msra.mxu0 %v2942
        %3286 = vmatpush.msra.mxu0 %v2941
        %3287 = vmatpush.msra.mxu0 %v2940
        %3288 = vmatpush.msra.mxu0 %v2939
        %3289 = vmatpush.msra.mxu0 %v2938
        %3290 = vmatpush.msra.mxu0 %v2937
        %3291 = vmatpush.msra.mxu0 %v2936
        %3292 = vmatpush.msra.mxu0 %v2935
        %3293 = vmatpush.msra.mxu0 %v2934
        %3294 = vmatmul.f32.gmra.mxu0 %v2466
        %v3295 = vpop.f32.mrf.mxu0
        %v3296 = vadd.f32 %v3273, %v3295
        %3297 = vmatmul.f32.gmra.mxu0 %v2482
        %v3298 = vpop.f32.mrf.mxu0
        %v3299 = vadd.f32 %v3276, %v3298
        %3300 = vdwg.mxu0
        %3301 = vmatpush.msra.mxu0 %v2965
        %3302 = vmatpush.msra.mxu0 %v2964
        %3303 = vmatpush.msra.mxu0 %v2963
        %3304 = vmatpush.msra.mxu0 %v2962
        %3305 = vmatpush.msra.mxu0 %v2961
        %3306 = vmatpush.msra.mxu0 %v2960
        %3307 = vmatpush.msra.mxu0 %v2959
        %3308 = vmatpush.msra.mxu0 %v2958
        %3309 = vmatpush.msra.mxu0 %v2957
        %3310 = vmatpush.msra.mxu0 %v2956
        %3311 = vmatpush.msra.mxu0 %v2955
        %3312 = vmatpush.msra.mxu0 %v2954
        %3313 = vmatpush.msra.mxu0 %v2953
        %3314 = vmatpush.msra.mxu0 %v2952
        %3315 = vmatpush.msra.mxu0 %v2951
        %3316 = vmatpush.msra.mxu0 %v2950
        %3317 = vmatmul.f32.gmra.mxu0 %v2467
        %v3318 = vpop.f32.mrf.mxu0
        %v3319 = vadd.f32 %v3296, %v3318
        %3320 = vmatmul.f32.gmra.mxu0 %v2483
        %v3321 = vpop.f32.mrf.mxu0
        %v3322 = vadd.f32 %v3299, %v3321
        %3323 = vdwg.mxu0
        %3324 = vmatpush.msra.mxu0 %v2981
        %3325 = vmatpush.msra.mxu0 %v2980
        %3326 = vmatpush.msra.mxu0 %v2979
        %3327 = vmatpush.msra.mxu0 %v2978
        %3328 = vmatpush.msra.mxu0 %v2977
        %3329 = vmatpush.msra.mxu0 %v2976
        %3330 = vmatpush.msra.mxu0 %v2975
        %3331 = vmatpush.msra.mxu0 %v2974
        %3332 = vmatpush.msra.mxu0 %v2973
        %3333 = vmatpush.msra.mxu0 %v2972
        %3334 = vmatpush.msra.mxu0 %v2971
        %3335 = vmatpush.msra.mxu0 %v2970
        %3336 = vmatpush.msra.mxu0 %v2969
        %3337 = vmatpush.msra.mxu0 %v2968
        %3338 = vmatpush.msra.mxu0 %v2967
        %3339 = vmatpush.msra.mxu0 %v2966
        %3340 = vmatmul.f32.gmra.mxu0 %v2468
        %v3341 = vpop.f32.mrf.mxu0
        %v3342 = vadd.f32 %v3319, %v3341
        %3343 = vmatmul.f32.gmra.mxu0 %v2484
        %v3344 = vpop.f32.mrf.mxu0
        %v3345 = vadd.f32 %v3322, %v3344
        %3346 = vdwg.mxu0
        %3347 = vmatpush.msra.mxu0 %v2997
        %3348 = vmatpush.msra.mxu0 %v2996
        %3349 = vmatpush.msra.mxu0 %v2995
        %3350 = vmatpush.msra.mxu0 %v2994
        %3351 = vmatpush.msra.mxu0 %v2993
        %3352 = vmatpush.msra.mxu0 %v2992
        %3353 = vmatpush.msra.mxu0 %v2991
        %3354 = vmatpush.msra.mxu0 %v2990
        %3355 = vmatpush.msra.mxu0 %v2989
        %3356 = vmatpush.msra.mxu0 %v2988
        %3357 = vmatpush.msra.mxu0 %v2987
        %3358 = vmatpush.msra.mxu0 %v2986
        %3359 = vmatpush.msra.mxu0 %v2985
        %3360 = vmatpush.msra.mxu0 %v2984
        %3361 = vmatpush.msra.mxu0 %v2983
        %3362 = vmatpush.msra.mxu0 %v2982
        %3363 = vmatmul.f32.gmra.mxu0 %v2469
        %v3364 = vpop.f32.mrf.mxu0
        %v3365 = vadd.f32 %v3342, %v3364
        %3366 = vmatmul.f32.gmra.mxu0 %v2485
        %v3367 = vpop.f32.mrf.mxu0
        %v3368 = vadd.f32 %v3345, %v3367
        %3369 = vdwg.mxu0
        %v3370 = vadd.f32 %v1850, %v3365
        %v3371 = vadd.f32 %v1851, %v3368
        %v3372 = vld [vmem:[%s1017] sm:$0x1]
        %v3373 = vld [vmem:[%s1020] sm:$0x1]
        %v3374 = vsel %vm1087, %v3370, 0.0
        %3375 = vadd.xlane.f32.xlu0 %v3374
        %v3376 = vpop.xlane.xlu0 %3375
        %v3377 = vsel %vm1087, %v3371, 0.0
        %3378 = vadd.xlane.f32.xlu0 %v3377
        %v3379 = vpop.xlane.xlu0 %3378
        %v3380 = vmul.f32 %v3376, %v1803
        %v3381 = vmul.f32 %v3379, %v1803
        %v3382 = vsub.f32 %v3370, %v3380
        %v3383 = vsub.f32 %v3371, %v3381
        %v3384 = vmul.f32 %v3382, %v3382
        %v3385 = vmul.f32 %v3383, %v3383
        %v3386 = vsel %vm1087, %v3384, 0.0
        %3387 = vadd.xlane.f32.xlu0 %v3386
        %v3388 = vpop.xlane.xlu0 %3387
        %v3389 = vsel %vm1087, %v3385, 0.0
        %3390 = vadd.xlane.f32.xlu0 %v3389
        %v3391 = vpop.xlane.xlu0 %3390
        %v3392 = vmul.f32 %v3388, %v1803
        %v3393 = vmul.f32 %v3391, %v1803
        %v3394 = vadd.f32 %v3392, 1e-05
        %v3395 = vadd.f32 %v3393, 1e-05
        %v3396 = vrsqrt.pop %v3394
        %v3397 = vmul.f32 %v3396, %v3394
        %v3398 = vmul.f32 %v3397, %v3396
        %v3399 = vmul.f32 0.5, %v3398
        %v3400 = vsub.f32 1.5, %v3399
        %v3401 = vmul.f32 %v3396, %v3400
        %vm3402 = vweird.f32 %v3394
        %vm3403 = vweird.f32 %v3396
        %vm3404 = vmor %vm3402, %vm3403
        %v3405 = vsel %vm3404, %v3396, %v3401
        %v3406 = vrsqrt.pop %v3395
        %v3407 = vmul.f32 %v3406, %v3395
        %v3408 = vmul.f32 %v3407, %v3406
        %v3409 = vmul.f32 0.5, %v3408
        %v3410 = vsub.f32 1.5, %v3409
        %v3411 = vmul.f32 %v3406, %v3410
        %vm3412 = vweird.f32 %v3395
        %vm3413 = vweird.f32 %v3406
        %vm3414 = vmor %vm3412, %vm3413
        %v3415 = vsel %vm3414, %v3406, %v3411
        %v3416 = vmul.f32 %v3382, %v3405
        %v3417 = vmul.f32 %v3383, %v3415
        %v3419 = vperm.slane %v3372, 0
        %v3421 = vmul.f32 %v3416, %v3419
        %v3422 = vmul.f32 %v3417, %v3419
        %v3424 = vperm.slane %v3373, 0
        %v3426 = vadd.f32 %v3421, %v3424
        %v3427 = vadd.f32 %v3422, %v3424
        %3428 = vst.msk [vmem:[#allocation2] sm:$0xff] %vm1087, %v3426
        %3429 = vst.msk [vmem:[#allocation2 + $0x8] sm:$0xff] %vm1087, %v3427
        %p3430 = scmp.eq.s32.totalorder %s38, 3
        // Predicated region
        $region129: #{tpu_custom_call.1} parent=123 // pred_check
          %p3431 = pneg %p3430
        $region130: #{tpu_custom_call.1} parent=123 // pred_check_branch
          %3433 = sbr.rel (%p3431) target = $region132
        $region131: #{tpu_custom_call.1} parent=123 // pred_region
          %v3435 = vrot.slane %v3426, 7
          %v3438 = vrot.slane %v3427, 6
          %vm3440 = vcmask 1040384
          %v3441 = vsel %vm3440, %v3435, %v3438
          %v3442 = vld [vmem:[%s20] sm:$0xff]
          %v3443 = vld [vmem:[%s20 + $0x8] sm:$0xff]
          %v3444 = vld [vmem:[%s20 + $0x10] sm:$0xff]
          %v3445 = vld [vmem:[%s20 + $0x18] sm:$0xff]
          %v3446 = vld [vmem:[%s20 + $0x20] sm:$0xff]
          %v3447 = vld [vmem:[%s20 + $0x28] sm:$0xff]
          %v3448 = vld [vmem:[%s20 + $0x30] sm:$0xff]
          %v3449 = vld [vmem:[%s20 + $0x38] sm:$0xff]
          %v3450 = vld [vmem:[%s21] sm:$0x1]
          %v3452 = vperm.slane %v3450, 0
          %v3455 = vsel %vm1087, %v3441, 0
          %3457 = vmatpush.msra.mxu0 0.0
          %3458 = vmatpush.msra.mxu0 0.0
          %3459 = vmatpush.msra.mxu0 0.0
          %3460 = vmatpush.msra.mxu0 0.0
          %3461 = vmatpush.msra.mxu0 0.0
          %3462 = vmatpush.msra.mxu0 0.0
          %3463 = vmatpush.msra.mxu0 0.0
          %3464 = vmatpush.msra.mxu0 0.0
          %3465 = vmatpush.msra.mxu0 %v3449
          %3466 = vmatpush.msra.mxu0 %v3448
          %3467 = vmatpush.msra.mxu0 %v3447
          %3468 = vmatpush.msra.mxu0 %v3446
          %3469 = vmatpush.msra.mxu0 %v3445
          %3470 = vmatpush.msra.mxu0 %v3444
          %3471 = vmatpush.msra.mxu0 %v3443
          %3472 = vmatpush.msra.mxu0 %v3442
          %3473 = vmatmul.f32.gmra.mxu0 %v3455
          %v3474 = vpop.f32.mrf.mxu0
          %v3475 = vadd.f32 %v3452, %v3474
          %3476 = vdwg.mxu0
          %v3477 = vmax.f32 %v3475, 0.0
          %v3478 = vld [vmem:[%s22] sm:$0xff]
          %v3479 = vld [vmem:[%s22 + $0x8] sm:$0xff]
          %v3480 = vld [vmem:[%s22 + $0x10] sm:$0xff]
          %v3481 = vld [vmem:[%s22 + $0x18] sm:$0xff]
          %v3482 = vld [vmem:[%s22 + $0x20] sm:$0xff]
          %v3483 = vld [vmem:[%s22 + $0x28] sm:$0xff]
          %v3484 = vld [vmem:[%s22 + $0x30] sm:$0xff]
          %v3485 = vld [vmem:[%s22 + $0x38] sm:$0xff]
          %v3486 = vld [vmem:[%s22 + $0x40] sm:$0xff]
          %v3487 = vld [vmem:[%s22 + $0x48] sm:$0xff]
          %v3488 = vld [vmem:[%s22 + $0x50] sm:$0xff]
          %v3489 = vld [vmem:[%s22 + $0x58] sm:$0xff]
          %v3490 = vld [vmem:[%s22 + $0x60] sm:$0xff]
          %v3491 = vld [vmem:[%s22 + $0x68] sm:$0xff]
          %v3492 = vld [vmem:[%s22 + $0x70] sm:$0xff]
          %v3493 = vld [vmem:[%s22 + $0x78] sm:$0xff]
          %v3494 = vld [vmem:[%s23] sm:$0x1]
          %v3496 = vperm.slane %v3494, 0
          %3498 = vmatpush.msra.mxu0 %v3493
          %3499 = vmatpush.msra.mxu0 %v3492
          %3500 = vmatpush.msra.mxu0 %v3491
          %3501 = vmatpush.msra.mxu0 %v3490
          %3502 = vmatpush.msra.mxu0 %v3489
          %3503 = vmatpush.msra.mxu0 %v3488
          %3504 = vmatpush.msra.mxu0 %v3487
          %3505 = vmatpush.msra.mxu0 %v3486
          %3506 = vmatpush.msra.mxu0 %v3485
          %3507 = vmatpush.msra.mxu0 %v3484
          %3508 = vmatpush.msra.mxu0 %v3483
          %3509 = vmatpush.msra.mxu0 %v3482
          %3510 = vmatpush.msra.mxu0 %v3481
          %3511 = vmatpush.msra.mxu0 %v3480
          %3512 = vmatpush.msra.mxu0 %v3479
          %3513 = vmatpush.msra.mxu0 %v3478
          %3514 = vmatmul.f32.gmra.mxu0 %v3477
          %v3515 = vpop.f32.mrf.mxu0
          %v3516 = vadd.f32 %v3496, %v3515
          %3517 = vdwg.mxu0
          %v3518 = vmax.f32 %v3516, 0.0
          %v3519 = vld [vmem:[%s24] sm:$0xff]
          %v3520 = vld [vmem:[%s24 + $0x8] sm:$0xff]
          %v3521 = vld [vmem:[%s24 + $0x10] sm:$0xff]
          %v3522 = vld [vmem:[%s24 + $0x18] sm:$0xff]
          %v3523 = vld [vmem:[%s24 + $0x20] sm:$0xff]
          %v3524 = vld [vmem:[%s24 + $0x28] sm:$0xff]
          %v3525 = vld [vmem:[%s24 + $0x30] sm:$0xff]
          %v3526 = vld [vmem:[%s24 + $0x38] sm:$0xff]
          %v3527 = vld [vmem:[%s25] sm:$0x1]
          %v3529 = vperm.slane %v3527, 0
          %v3532 = vsel %vm1087, %v3518, 0
          %3534 = vmatpush.msra.mxu0 0.0
          %3535 = vmatpush.msra.mxu0 0.0
          %3536 = vmatpush.msra.mxu0 0.0
          %3537 = vmatpush.msra.mxu0 0.0
          %3538 = vmatpush.msra.mxu0 0.0
          %3539 = vmatpush.msra.mxu0 0.0
          %3540 = vmatpush.msra.mxu0 0.0
          %3541 = vmatpush.msra.mxu0 0.0
          %3542 = vmatpush.msra.mxu0 %v3526
          %3543 = vmatpush.msra.mxu0 %v3525
          %3544 = vmatpush.msra.mxu0 %v3524
          %3545 = vmatpush.msra.mxu0 %v3523
          %3546 = vmatpush.msra.mxu0 %v3522
          %3547 = vmatpush.msra.mxu0 %v3521
          %3548 = vmatpush.msra.mxu0 %v3520
          %3549 = vmatpush.msra.mxu0 %v3519
          %3550 = vmatmul.f32.gmra.mxu0 %v3532
          %v3551 = vpop.f32.mrf.mxu0
          %v3552 = vadd.f32 %v3529, %v3551
          %3553 = vdwg.mxu0
          %vm3554 = vcmask 17408
          %3555 = vst.msk [vmem:[#allocation4] sm:$0x3] %vm3554, %v3552
        $region132: #{tpu_custom_call.1} parent=123 // pred_fallthru
          _
        // Predicated region
        $region133: #{tpu_custom_call.1} parent=123 // pred_check
          %p3556 = pneg %p677
        $region134: #{tpu_custom_call.1} parent=123 // pred_check_branch
          %3558 = sbr.rel (%p3556) target = $region136
        $region135: #{tpu_custom_call.1} parent=123 // pred_region
          %3560 = vsyncadd [#allocation5], 0
          %s3562 = sshll.u32 [#allocation4], 4
          %s3563 = int_to_ptr.vmem [resolvable:$true] %s3562
          %s3564 = sshll.u32 %s26, 4
          %s3565 = int_to_ptr.hbm [resolvable:$true] %s3564
          %3567 = dma.vmem_to_hbm [thread:$0]  %s3563, 32, %s3565, [#allocation5]
        $region136: #{tpu_custom_call.1} parent=123 // pred_fallthru
          _
        // Predicated region
        $region137: #{tpu_custom_call.1} parent=123 // pred_check
          %p3568 = pneg %p677
        $region138: #{tpu_custom_call.1} parent=123 // pred_check_branch
          %3570 = sbr.rel (%p3568) target = $region140
        $region139: #{tpu_custom_call.1} parent=123 // pred_region
          %3572 = dma.done [#allocation5], 32
        $region140: #{tpu_custom_call.1} parent=123 // pred_fallthru
          _
      $region124: #{tpu_custom_call.1} parent=5 // pred_fallthru
        _
      %p3573 = scmp.le.s32.totalorder 2, %s33
      // Predicated region
      $region141: #{tpu_custom_call.1} parent=5 // pred_check
        %p3574 = pneg %p3573
      $region142: #{tpu_custom_call.1} parent=5 // pred_check_branch
        %3576 = sbr.rel (%p3574) target = $region144
      $region143: #{tpu_custom_call.1} parent=5 // pred_region
        %s3577 = ssub.s32 %s33, 2
      $region144: #{tpu_custom_call.1} parent=5 // pred_fallthru
        _
    $region6: #{tpu_custom_call.1} parent=1 // loop_footer
      %s37 = sadd.s32 1, %s33
    $region7: #{tpu_custom_call.1} parent=1 // loop_footer_branch
      %32 = sbr.rel target = $region3
    $region8: #{tpu_custom_call.1} parent=1 // loop_exit
      _
    %3578 = vsyncpa [#allocation5], 1
    %s3579 = scalar_lea.sflag [#allocation5], 1
    %3580 = vsyncpa %s3579, 1

</llo_original>
